<compile_context>
chip_gen: v7x
topology: tpu7x:2x2x1
jax: 0.10.0
libtpu: 0.0.40
codegen_flags: <defaults>
</compile_context>

<pallas_src>
import functools

import jax
import jax.numpy as jnp
from jax.experimental import pallas as pl
from jax.experimental.pallas import tpu as pltpu


def _rup(x, m):
    return ((x + m - 1) // m) * m


def _const_spec(shape):
    """Full-array block whose index is grid-invariant (weights)."""
    nd = len(shape)
    return pl.BlockSpec(shape, lambda b, _nd=nd: (0,) * _nd)


# ----------------------------------------------------------------------------
# Fused CLIP-ViT encoder kernel: one grid step == one image, all weights VMEM-
# resident, all layers statically unrolled.
# ----------------------------------------------------------------------------
def _vit_kernel(
    patches_ref,            # [1, s_pad, Kp] bf16 (row 0 = class slot, zeros)
    base_ref,               # [s_pad, Wp]    f32  class-token + positional table
    conv_w_ref,             # [Kp, Wp]       bf16 conv1 as matmul (no bias)
    ln_pre_g_ref, ln_pre_b_ref,            # [1, Wp] f32
    ln1_g_ref, ln1_b_ref,                  # [L, 1, Wp] f32
    wqkv_ref, bqkv_ref,                    # [L, Wp, 3Wp] bf16 / [L, 1, 3Wp] f32
    wo_ref, bo_ref,                        # [L, Wp, Wp] bf16 / [L, 1, Wp] f32
    ln2_g_ref, ln2_b_ref,                  # [L, 1, Wp] f32
    wfc_ref, bfc_ref,                      # [L, Wp, Hp] bf16 / [L, 1, Hp] f32
    wpr_ref, bpr_ref,                      # [L, Hp, Wp] bf16 / [L, 1, Wp] f32
    ln_post_g_ref, ln_post_b_ref,          # [1, Wp] f32
    proj_ref,               # [Wp, Ep] bf16 (no bias)
    out_ref,                # [1, s_pad, Ep] f32
    *, layers, s_pad, seq, width, heads, dh, wp,
):
    f32, bf16 = jnp.float32, jnp.bfloat16
    scale = 1.0 / float(dh) ** 0.5
    inv_w = 1.0 / float(width)

    # ---- static masks, hoisted out of all loops (JAX does not CSE iota) ----
    lane = jax.lax.broadcasted_iota(jnp.int32, (1, wp), 1)
    lane_valid = (lane < width).astype(f32)                  # real feature lanes
    head_masks = [((lane >= h * dh) & (lane < (h + 1) * dh)).astype(f32)
                  for h in range(heads)]                     # per-head lane select
    kid = jax.lax.broadcasted_iota(jnp.int32, (1, s_pad), 1)
    key_valid = kid < seq                                    # mask padded key rows

    def layernorm(x, g, b):                  # f32, eps=1e-5, over the real width
        mu = jnp.sum(x, axis=-1, keepdims=True) * inv_w
        xc = (x - mu) * lane_valid
        var = jnp.sum(xc * xc, axis=-1, keepdims=True) * inv_w
        return xc * jax.lax.rsqrt(var + 1e-5) * g + b

    def matmul(x, w):                        # bf16 MXU operands, f32 accumulate
        return jnp.dot(x.astype(bf16), w, preferred_element_type=f32)

    # --- patch embed (conv as matmul, no bias) + class token + pos embedding ---
    x = matmul(patches_ref[0], conv_w_ref[...]) + base_ref[...]      # [s_pad, Wp]

    # --- ln_pre ---
    x = layernorm(x, ln_pre_g_ref[...], ln_pre_b_ref[...])

    for l in range(layers):                  # static unroll, everything fused
        # ---------------- multi-head self attention ----------------
        xn = layernorm(x, ln1_g_ref[l], ln1_b_ref[l])
        qkv = matmul(xn, wqkv_ref[l]) + bqkv_ref[l]                  # [s_pad, 3Wp]
        q = qkv[:, :wp]                       # 128-lane-aligned slices (free)
        k = qkv[:, wp:2 * wp].astype(bf16)
        v = qkv[:, 2 * wp:]

        attn = jnp.zeros((s_pad, wp), dtype=f32)
        for h in range(heads):
            hm = head_masks[h]
            qh = (q * hm).astype(bf16)
            vh = (v * hm).astype(bf16)
            logits = jax.lax.dot_general(                            # q @ k^T
                qh, k, (((1,), (1,)), ((), ())),
                preferred_element_type=f32) * scale                  # [s_pad, s_pad]
            logits = jnp.where(key_valid, logits, -1e30)
            logits = logits - jnp.max(logits, axis=-1, keepdims=True)
            pr = jnp.exp(logits)
            pr = pr * pl.reciprocal(jnp.sum(pr, axis=-1, keepdims=True),
                                    approx=True)
            attn = attn + jnp.dot(pr.astype(bf16), vh,
                                  preferred_element_type=f32)
        o = matmul(attn, wo_ref[l]) + bo_ref[l]
        x = x + o                                         # fused residual add

        # ---------------- MLP (QuickGELU) ----------------
        xn = layernorm(x, ln2_g_ref[l], ln2_b_ref[l])
        hdn = matmul(xn, wfc_ref[l]) + bfc_ref[l]         # [s_pad, Hp]
        hdn = hdn * jax.nn.sigmoid(1.702 * hdn)           # QuickGELU (f32, EUP)
        o = matmul(hdn, wpr_ref[l]) + bpr_ref[l]
        x = x + o                                         # fused residual add

    # --- ln_post + output projection (no bias); class row sliced in wrapper ---
    xn = layernorm(x, ln_post_g_ref[...], ln_post_b_ref[...])
    out_ref[0] = matmul(xn, proj_ref[...]).astype(out_ref.dtype)


# ----------------------------------------------------------------------------
# CLIP ViT image encoder (parameter init + jitted forward glue)
# ----------------------------------------------------------------------------
class ImageExtractor:
    """JAX/Pallas port of towhee mcprop ImageExtractor (CLIP image tower).

    `finetune` only controls grad-enablement in PyTorch; forward math is
    identical, so it is accepted and ignored here (inference only).
    """

    def __init__(self, *, image_size=16, channels=4, patch=8, width=32,
                 layers=2, heads=2, embed_dim=16, finetune=False, seed=0):
        assert width % heads == 0 and image_size % patch == 0
        self.finetune = finetune
        self.patch = patch
        self.width = width
        self.heads = heads
        self.dh = width // heads
        self.layers = layers
        self.embed_dim = embed_dim
        grid = image_size // patch
        self.seq = grid * grid + 1
        self.kdim = channels * patch * patch

        # lane-/sublane-dense padded sizes
        self.wp = _rup(width, 128)
        self.hp = _rup(4 * width, 128)
        self.ep = _rup(embed_dim, 128)
        self.kp = _rup(self.kdim, 128)
        self.s_pad = _rup(self.seq, 8)

        key = jax.random.PRNGKey(seed)
        keys = jax.random.split(key, 4 + layers)

        def nrm(k, shape, scale=0.02):
            return scale * jax.random.normal(k, shape, dtype=jnp.float32)

        f32, bf16 = jnp.float32, jnp.bfloat16
        wp, hp, ep, kp, s_pad = self.wp, self.hp, self.ep, self.kp, self.s_pad

        def padw(a, rows, cols):   # zero-pad 2-D matmul weight, cast bf16 for MXU
            out = jnp.zeros((rows, cols), f32).at[:a.shape[0], :a.shape[1]].set(a)
            return out.astype(bf16)

        def padv(a, cols):         # zero-pad 1-D bias / LN param to [1, cols] f32
            return jnp.zeros((1, cols), f32).at[0, :a.shape[0]].set(a)

        ones_w = jnp.ones((width,), f32)
        zeros_w = jnp.zeros((width,), f32)

        p = {}
        # conv1 (no bias) laid out as [C*p*p, width] matmul weight, lane-padded
        p["conv_w"] = padw(nrm(keys[0], (width, self.kdim)).T, kp, wp)
        # class token + positional embedding folded into a single [s_pad, wp]
        # table (NOT tiled per batch; broadcast-added inside the kernel)
        cls = nrm(keys[1], (width,))
        pos = nrm(keys[2], (self.seq, width))
        base = jnp.zeros((s_pad, wp), f32)
        base = base.at[0, :width].set(cls + pos[0])
        base = base.at[1:self.seq, :width].set(pos[1:])
        p["base"] = base
        p["ln_pre_g"], p["ln_pre_b"] = padv(ones_w, wp), padv(zeros_w, wp)
        p["ln_post_g"], p["ln_post_b"] = padv(ones_w, wp), padv(zeros_w, wp)

        blk = {n: [] for n in ("ln1_g", "ln1_b", "wqkv", "bqkv", "wo", "bo",
                               "ln2_g", "ln2_b", "wfc", "bfc", "wpr", "bpr")}
        for l in range(layers):
            bk_ = jax.random.split(keys[3 + l], 6)
            blk["ln1_g"].append(padv(ones_w, wp))
            blk["ln1_b"].append(padv(zeros_w, wp))
            # fused QKV weight: q -> cols [0, width), k -> [wp, wp+width),
            # v -> [2*wp, 2*wp+width)  (128-aligned slices inside the kernel)
            wqkv = jnp.zeros((wp, 3 * wp), f32)
            wqkv = wqkv.at[:width, 0:width].set(nrm(bk_[0], (width, width)))
            wqkv = wqkv.at[:width, wp:wp + width].set(nrm(bk_[1], (width, width)))
            wqkv = wqkv.at[:width, 2 * wp:2 * wp + width].set(
                nrm(bk_[2], (width, width)))
            blk["wqkv"].append(wqkv.astype(bf16))
            blk["bqkv"].append(jnp.zeros((1, 3 * wp), f32))
            blk["wo"].append(padw(nrm(bk_[3], (width, width)), wp, wp))
            blk["bo"].append(padv(zeros_w, wp))
            blk["ln2_g"].append(padv(ones_w, wp))
            blk["ln2_b"].append(padv(zeros_w, wp))
            blk["wfc"].append(padw(nrm(bk_[4], (width, 4 * width)), wp, hp))
            blk["bfc"].append(padv(jnp.zeros((4 * width,), f32), hp))
            blk["wpr"].append(padw(nrm(bk_[5], (4 * width, width)), hp, wp))
            blk["bpr"].append(padv(zeros_w, wp))
        for name, lst in blk.items():
            p[name] = jnp.stack(lst, axis=0)            # stacked [L, ...] params
        p["proj"] = padw(nrm(keys[3 + layers], (width, embed_dim)), wp, ep)
        self.params = p

        # One jit region for the whole forward: patch unfold, pallas_call and the
        # class-row / embed-dim slice all fuse into a single executable.
        self._forward = jax.jit(self._encode_impl)

    def __call__(self, img):
        # with torch.set_grad_enabled(self.finetune):  -> no-op for inference
        return self.encode_image(img)

    def encode_image(self, img):
        return self._forward(self.params, img)

    def _encode_impl(self, params, img):
        p = params
        patch, wp, ep, kp, s_pad = self.patch, self.wp, self.ep, self.kp, self.s_pad
        N, C, H, W = img.shape
        gh, gw = H // patch, W // patch
        P = gh * gw
        assert P + 1 == self.seq and C * patch * patch == self.kdim

        # --- patch unfold (stride=kernel conv as matmul rows); row 0 = class slot.
        # TODO(synk): fold this NCHW unfold into the kernel's DMA via an index_map /
        # pl.ANY gather for non-toy configs; here it fuses into the same jit region.
        x = img.reshape(N, C, gh, patch, gw, patch)
        x = x.transpose(0, 2, 4, 1, 3, 5).reshape(N, P, self.kdim)
        patches = jnp.zeros((N, s_pad, kp), jnp.bfloat16)
        patches = patches.at[:, 1:P + 1, :self.kdim].set(x.astype(jnp.bfloat16))

        kern = functools.partial(
            _vit_kernel, layers=self.layers, s_pad=s_pad, seq=self.seq,
            width=self.width, heads=self.heads, dh=self.dh, wp=wp)

        # TODO(synk): for real CLIP sizes (width 768+, 12+ layers) add a layer grid
        # axis and stream per-layer weight blocks (all-VMEM-resident won't fit).
        weights = [p["base"], p["conv_w"], p["ln_pre_g"], p["ln_pre_b"],
                   p["ln1_g"], p["ln1_b"], p["wqkv"], p["bqkv"], p["wo"], p["bo"],
                   p["ln2_g"], p["ln2_b"], p["wfc"], p["bfc"], p["wpr"], p["bpr"],
                   p["ln_post_g"], p["ln_post_b"], p["proj"]]

        out = pl.pallas_call(
            kern,
            grid=(N,),
            out_shape=jax.ShapeDtypeStruct((N, s_pad, ep), jnp.float32),
            in_specs=[pl.BlockSpec((1, s_pad, kp), lambda b: (b, 0, 0))]
                     + [_const_spec(w.shape) for w in weights],
            out_specs=pl.BlockSpec((1, s_pad, ep), lambda b: (b, 0, 0)),
            compiler_params=pltpu.CompilerParams(
                dimension_semantics=("parallel",)),
        )(patches, *weights)

        # class-token row, real embed columns (fused into this jit region)
        return out[:, 0, :self.embed_dim]


if __name__ == "__main__":
    key = jax.random.PRNGKey(0)
    img = jax.random.normal(key, (2, 4, 16, 16), dtype=jnp.float32)  # NCHW

    model = ImageExtractor(image_size=16, channels=4, patch=8, width=32,
                           layers=2, heads=2, embed_dim=16, finetune=False, seed=0)
    feats = model(img)
    feats = jax.block_until_ready(feats)
    assert feats.shape == (2, 16) and feats.dtype == jnp.float32
    assert bool(jnp.all(jnp.isfinite(feats)))
    print("KERNEL_OK")
</pallas_src>

<mosaic_0001>
module attributes {stable_mosaic.version = 11 : i64} {
  func.func @_vit_kernel(%arg0: i32, %arg1: memref<1x8x256xbf16, #tpu.memory_space<vmem>>, %arg2: memref<8x128xf32, #tpu.memory_space<vmem>>, %arg3: memref<256x128xbf16, #tpu.memory_space<vmem>>, %arg4: memref<1x128xf32, #tpu.memory_space<vmem>>, %arg5: memref<1x128xf32, #tpu.memory_space<vmem>>, %arg6: memref<2x1x128xf32, #tpu.memory_space<vmem>>, %arg7: memref<2x1x128xf32, #tpu.memory_space<vmem>>, %arg8: memref<2x128x384xbf16, #tpu.memory_space<vmem>>, %arg9: memref<2x1x384xf32, #tpu.memory_space<vmem>>, %arg10: memref<2x128x128xbf16, #tpu.memory_space<vmem>>, %arg11: memref<2x1x128xf32, #tpu.memory_space<vmem>>, %arg12: memref<2x1x128xf32, #tpu.memory_space<vmem>>, %arg13: memref<2x1x128xf32, #tpu.memory_space<vmem>>, %arg14: memref<2x128x128xbf16, #tpu.memory_space<vmem>>, %arg15: memref<2x1x128xf32, #tpu.memory_space<vmem>>, %arg16: memref<2x128x128xbf16, #tpu.memory_space<vmem>>, %arg17: memref<2x1x128xf32, #tpu.memory_space<vmem>>, %arg18: memref<1x128xf32, #tpu.memory_space<vmem>>, %arg19: memref<1x128xf32, #tpu.memory_space<vmem>>, %arg20: memref<128x128xbf16, #tpu.memory_space<vmem>>, %arg21: memref<1x8x128xf32, #tpu.memory_space<vmem>>) attributes {dimension_semantics = [#tpu.dimension_semantics<parallel>], iteration_bounds = array<i64: 2>, scalar_prefetch = 0 : i64, scratch_operands = 0 : i64, tpu.core_type = #tpu.core_type<tc>, window_params = [{transform_indices = @transform_0, window_bounds = array<i64: 1, 8, 256>}, {pipeline_mode = #tpu.pipeline_mode<synchronous>, transform_indices = @transform_1, window_bounds = array<i64: 8, 128>}, {pipeline_mode = #tpu.pipeline_mode<synchronous>, transform_indices = @transform_2, window_bounds = array<i64: 256, 128>}, {pipeline_mode = #tpu.pipeline_mode<synchronous>, transform_indices = @transform_3, window_bounds = array<i64: 1, 128>}, {pipeline_mode = #tpu.pipeline_mode<synchronous>, transform_indices = @transform_4, window_bounds = array<i64: 1, 128>}, {pipeline_mode = #tpu.pipeline_mode<synchronous>, transform_indices = @transform_5, window_bounds = array<i64: 2, 1, 128>}, {pipeline_mode = #tpu.pipeline_mode<synchronous>, transform_indices = @transform_6, window_bounds = array<i64: 2, 1, 128>}, {pipeline_mode = #tpu.pipeline_mode<synchronous>, transform_indices = @transform_7, window_bounds = array<i64: 2, 128, 384>}, {pipeline_mode = #tpu.pipeline_mode<synchronous>, transform_indices = @transform_8, window_bounds = array<i64: 2, 1, 384>}, {pipeline_mode = #tpu.pipeline_mode<synchronous>, transform_indices = @transform_9, window_bounds = array<i64: 2, 128, 128>}, {pipeline_mode = #tpu.pipeline_mode<synchronous>, transform_indices = @transform_10, window_bounds = array<i64: 2, 1, 128>}, {pipeline_mode = #tpu.pipeline_mode<synchronous>, transform_indices = @transform_11, window_bounds = array<i64: 2, 1, 128>}, {pipeline_mode = #tpu.pipeline_mode<synchronous>, transform_indices = @transform_12, window_bounds = array<i64: 2, 1, 128>}, {pipeline_mode = #tpu.pipeline_mode<synchronous>, transform_indices = @transform_13, window_bounds = array<i64: 2, 128, 128>}, {pipeline_mode = #tpu.pipeline_mode<synchronous>, transform_indices = @transform_14, window_bounds = array<i64: 2, 1, 128>}, {pipeline_mode = #tpu.pipeline_mode<synchronous>, transform_indices = @transform_15, window_bounds = array<i64: 2, 128, 128>}, {pipeline_mode = #tpu.pipeline_mode<synchronous>, transform_indices = @transform_16, window_bounds = array<i64: 2, 1, 128>}, {pipeline_mode = #tpu.pipeline_mode<synchronous>, transform_indices = @transform_17, window_bounds = array<i64: 1, 128>}, {pipeline_mode = #tpu.pipeline_mode<synchronous>, transform_indices = @transform_18, window_bounds = array<i64: 1, 128>}, {pipeline_mode = #tpu.pipeline_mode<synchronous>, transform_indices = @transform_19, window_bounds = array<i64: 128, 128>}, {transform_indices = @transform_20, window_bounds = array<i64: 1, 8, 128>}]} {
    %0 = tpu.iota {dimensions = array<i32: 1>} : vector<1x128xi32>
    %c32_i32 = arith.constant 32 : i32
    %1 = vector.broadcast %c32_i32 : i32 to vector<1x128xi32>
    %2 = arith.cmpi slt, %0, %1 : vector<1x128xi32>
    %3 = arith.extui %2 : vector<1x128xi1> to vector<1x128xi32>
    %4 = arith.sitofp %3 : vector<1x128xi32> to vector<1x128xf32>
    %c0_i32 = arith.constant 0 : i32
    %5 = vector.broadcast %c0_i32 : i32 to vector<1x128xi32>
    %6 = arith.cmpi sge, %0, %5 : vector<1x128xi32>
    %c16_i32 = arith.constant 16 : i32
    %7 = vector.broadcast %c16_i32 : i32 to vector<1x128xi32>
    %8 = arith.cmpi slt, %0, %7 : vector<1x128xi32>
    %9 = arith.andi %6, %8 : vector<1x128xi1>
    %10 = arith.extui %9 : vector<1x128xi1> to vector<1x128xi32>
    %11 = arith.sitofp %10 : vector<1x128xi32> to vector<1x128xf32>
    %c16_i32_0 = arith.constant 16 : i32
    %12 = vector.broadcast %c16_i32_0 : i32 to vector<1x128xi32>
    %13 = arith.cmpi sge, %0, %12 : vector<1x128xi32>
    %c32_i32_1 = arith.constant 32 : i32
    %14 = vector.broadcast %c32_i32_1 : i32 to vector<1x128xi32>
    %15 = arith.cmpi slt, %0, %14 : vector<1x128xi32>
    %16 = arith.andi %13, %15 : vector<1x128xi1>
    %17 = arith.extui %16 : vector<1x128xi1> to vector<1x128xi32>
    %18 = arith.sitofp %17 : vector<1x128xi32> to vector<1x128xf32>
    %19 = tpu.iota {dimensions = array<i32: 1>} : vector<1x8xi32>
    %c5_i32 = arith.constant 5 : i32
    %20 = vector.broadcast %c5_i32 : i32 to vector<1x8xi32>
    %21 = arith.cmpi slt, %19, %20 : vector<1x8xi32>
    %c0 = arith.constant 0 : index
    %c0_2 = arith.constant 0 : index
    %c0_3 = arith.constant 0 : index
    %22 = vector.load %arg1[%c0, %c0_2, %c0_3] : memref<1x8x256xbf16, #tpu.memory_space<vmem>>, vector<1x8x256xbf16>
    %23 = vector.shape_cast %22 : vector<1x8x256xbf16> to vector<8x256xbf16>
    %c0_4 = arith.constant 0 : index
    %c0_5 = arith.constant 0 : index
    %24 = vector.load %arg3[%c0_4, %c0_5] : memref<256x128xbf16, #tpu.memory_space<vmem>>, vector<256x128xbf16>
    %cst = arith.constant dense<0.000000e+00> : vector<8x128xf32>
    %25 = tpu.matmul %23, %24, %cst {dimension_numbers = #tpu.dot_dimension_numbers<[1], [0], [0], [1], [0, 0, 1, 1], [], []>} : vector<8x256xbf16>, vector<256x128xbf16>, vector<8x128xf32> -> vector<8x128xf32>
    %c0_6 = arith.constant 0 : index
    %c0_7 = arith.constant 0 : index
    %26 = vector.load %arg2[%c0_6, %c0_7] : memref<8x128xf32, #tpu.memory_space<vmem>>, vector<8x128xf32>
    %27 = arith.addf %25, %26 : vector<8x128xf32>
    %c0_8 = arith.constant 0 : index
    %c0_9 = arith.constant 0 : index
    %28 = vector.load %arg4[%c0_8, %c0_9] : memref<1x128xf32, #tpu.memory_space<vmem>>, vector<1x128xf32>
    %c0_10 = arith.constant 0 : index
    %c0_11 = arith.constant 0 : index
    %29 = vector.load %arg5[%c0_10, %c0_11] : memref<1x128xf32, #tpu.memory_space<vmem>>, vector<1x128xf32>
    %cst_12 = arith.constant dense<0.000000e+00> : vector<8xf32>
    %30 = vector.multi_reduction <add>, %27, %cst_12 [1] : vector<8x128xf32> to vector<8xf32>
    %31 = vector.shape_cast %30 : vector<8xf32> to vector<8x1xf32>
    %cst_13 = arith.constant 3.125000e-02 : f32
    %32 = vector.broadcast %cst_13 : f32 to vector<8x1xf32>
    %33 = arith.mulf %31, %32 : vector<8x1xf32>
    %34 = vector.broadcast %33 : vector<8x1xf32> to vector<8x128xf32>
    %35 = arith.subf %27, %34 : vector<8x128xf32>
    %36 = vector.broadcast %4 : vector<1x128xf32> to vector<8x128xf32>
    %37 = arith.mulf %35, %36 : vector<8x128xf32>
    %38 = arith.mulf %37, %37 : vector<8x128xf32>
    %cst_14 = arith.constant dense<0.000000e+00> : vector<8xf32>
    %39 = vector.multi_reduction <add>, %38, %cst_14 [1] : vector<8x128xf32> to vector<8xf32>
    %40 = vector.shape_cast %39 : vector<8xf32> to vector<8x1xf32>
    %cst_15 = arith.constant 3.125000e-02 : f32
    %41 = vector.broadcast %cst_15 : f32 to vector<8x1xf32>
    %42 = arith.mulf %40, %41 : vector<8x1xf32>
    %cst_16 = arith.constant 9.99999974E-6 : f32
    %43 = vector.broadcast %cst_16 : f32 to vector<8x1xf32>
    %44 = arith.addf %42, %43 : vector<8x1xf32>
    %45 = math.rsqrt %44 : vector<8x1xf32>
    %46 = vector.broadcast %45 : vector<8x1xf32> to vector<8x128xf32>
    %47 = arith.mulf %37, %46 : vector<8x128xf32>
    %48 = vector.broadcast %28 : vector<1x128xf32> to vector<8x128xf32>
    %49 = arith.mulf %47, %48 : vector<8x128xf32>
    %50 = vector.broadcast %29 : vector<1x128xf32> to vector<8x128xf32>
    %51 = arith.addf %49, %50 : vector<8x128xf32>
    %c0_17 = arith.constant 0 : index
    %c0_18 = arith.constant 0 : index
    %c0_19 = arith.constant 0 : index
    %52 = vector.load %arg6[%c0_17, %c0_18, %c0_19] : memref<2x1x128xf32, #tpu.memory_space<vmem>>, vector<1x1x128xf32>
    %53 = vector.shape_cast %52 : vector<1x1x128xf32> to vector<1x128xf32>
    %c0_20 = arith.constant 0 : index
    %c0_21 = arith.constant 0 : index
    %c0_22 = arith.constant 0 : index
    %54 = vector.load %arg7[%c0_20, %c0_21, %c0_22] : memref<2x1x128xf32, #tpu.memory_space<vmem>>, vector<1x1x128xf32>
    %55 = vector.shape_cast %54 : vector<1x1x128xf32> to vector<1x128xf32>
    %cst_23 = arith.constant dense<0.000000e+00> : vector<8xf32>
    %56 = vector.multi_reduction <add>, %51, %cst_23 [1] : vector<8x128xf32> to vector<8xf32>
    %57 = vector.shape_cast %56 : vector<8xf32> to vector<8x1xf32>
    %cst_24 = arith.constant 3.125000e-02 : f32
    %58 = vector.broadcast %cst_24 : f32 to vector<8x1xf32>
    %59 = arith.mulf %57, %58 : vector<8x1xf32>
    %60 = vector.broadcast %59 : vector<8x1xf32> to vector<8x128xf32>
    %61 = arith.subf %51, %60 : vector<8x128xf32>
    %62 = vector.broadcast %4 : vector<1x128xf32> to vector<8x128xf32>
    %63 = arith.mulf %61, %62 : vector<8x128xf32>
    %64 = arith.mulf %63, %63 : vector<8x128xf32>
    %cst_25 = arith.constant dense<0.000000e+00> : vector<8xf32>
    %65 = vector.multi_reduction <add>, %64, %cst_25 [1] : vector<8x128xf32> to vector<8xf32>
    %66 = vector.shape_cast %65 : vector<8xf32> to vector<8x1xf32>
    %cst_26 = arith.constant 3.125000e-02 : f32
    %67 = vector.broadcast %cst_26 : f32 to vector<8x1xf32>
    %68 = arith.mulf %66, %67 : vector<8x1xf32>
    %cst_27 = arith.constant 9.99999974E-6 : f32
    %69 = vector.broadcast %cst_27 : f32 to vector<8x1xf32>
    %70 = arith.addf %68, %69 : vector<8x1xf32>
    %71 = math.rsqrt %70 : vector<8x1xf32>
    %72 = vector.broadcast %71 : vector<8x1xf32> to vector<8x128xf32>
    %73 = arith.mulf %63, %72 : vector<8x128xf32>
    %74 = vector.broadcast %53 : vector<1x128xf32> to vector<8x128xf32>
    %75 = arith.mulf %73, %74 : vector<8x128xf32>
    %76 = vector.broadcast %55 : vector<1x128xf32> to vector<8x128xf32>
    %77 = arith.addf %75, %76 : vector<8x128xf32>
    %c0_28 = arith.constant 0 : index
    %c0_29 = arith.constant 0 : index
    %c0_30 = arith.constant 0 : index
    %78 = vector.load %arg8[%c0_28, %c0_29, %c0_30] : memref<2x128x384xbf16, #tpu.memory_space<vmem>>, vector<1x128x384xbf16>
    %79 = vector.shape_cast %78 : vector<1x128x384xbf16> to vector<128x384xbf16>
    %80 = arith.truncf %77 : vector<8x128xf32> to vector<8x128xbf16>
    %cst_31 = arith.constant dense<0.000000e+00> : vector<8x384xf32>
    %81 = tpu.matmul %80, %79, %cst_31 {dimension_numbers = #tpu.dot_dimension_numbers<[1], [0], [0], [1], [0, 0, 1, 1], [], []>} : vector<8x128xbf16>, vector<128x384xbf16>, vector<8x384xf32> -> vector<8x384xf32>
    %c0_32 = arith.constant 0 : index
    %c0_33 = arith.constant 0 : index
    %c0_34 = arith.constant 0 : index
    %82 = vector.load %arg9[%c0_32, %c0_33, %c0_34] : memref<2x1x384xf32, #tpu.memory_space<vmem>>, vector<1x1x384xf32>
    %83 = vector.shape_cast %82 : vector<1x1x384xf32> to vector<1x384xf32>
    %84 = vector.broadcast %83 : vector<1x384xf32> to vector<8x384xf32>
    %85 = arith.addf %81, %84 : vector<8x384xf32>
    %86 = vector.extract_strided_slice %85 {offsets = [0, 0], sizes = [8, 128], strides = [1, 1]} : vector<8x384xf32> to vector<8x128xf32>
    %87 = vector.extract_strided_slice %85 {offsets = [0, 128], sizes = [8, 128], strides = [1, 1]} : vector<8x384xf32> to vector<8x128xf32>
    %88 = arith.truncf %87 : vector<8x128xf32> to vector<8x128xbf16>
    %89 = vector.extract_strided_slice %85 {offsets = [0, 256], sizes = [8, 128], strides = [1, 1]} : vector<8x384xf32> to vector<8x128xf32>
    %cst_35 = arith.constant 0.000000e+00 : f32
    %90 = vector.broadcast %cst_35 : f32 to vector<8x128xf32>
    %91 = vector.broadcast %11 : vector<1x128xf32> to vector<8x128xf32>
    %92 = arith.mulf %86, %91 : vector<8x128xf32>
    %93 = arith.truncf %92 : vector<8x128xf32> to vector<8x128xbf16>
    %94 = vector.broadcast %11 : vector<1x128xf32> to vector<8x128xf32>
    %95 = arith.mulf %89, %94 : vector<8x128xf32>
    %96 = arith.truncf %95 : vector<8x128xf32> to vector<8x128xbf16>
    %cst_36 = arith.constant dense<0.000000e+00> : vector<8x8xf32>
    %97 = tpu.matmul %93, %88, %cst_36 {dimension_numbers = #tpu.dot_dimension_numbers<[1], [1], [0], [0], [0, 0, 1, 0], [], []>} : vector<8x128xbf16>, vector<8x128xbf16>, vector<8x8xf32> -> vector<8x8xf32>
    %cst_37 = arith.constant 2.500000e-01 : f32
    %98 = vector.broadcast %cst_37 : f32 to vector<8x8xf32>
    %99 = arith.mulf %97, %98 : vector<8x8xf32>
    %cst_38 = arith.constant -1.000000e+30 : f32
    %100 = vector.shape_cast %21 : vector<1x8xi1> to vector<1x8xi1>
    %101 = vector.broadcast %100 : vector<1x8xi1> to vector<8x8xi1>
    %102 = vector.broadcast %cst_38 : f32 to vector<8x8xf32>
    %103 = arith.select %101, %99, %102 : vector<8x8xi1>, vector<8x8xf32>
    %cst_39 = arith.constant dense<0xFF800000> : vector<8xf32>
    %104 = vector.multi_reduction <maximumf>, %103, %cst_39 [1] : vector<8x8xf32> to vector<8xf32>
    %105 = vector.shape_cast %104 : vector<8xf32> to vector<8x1xf32>
    %106 = vector.broadcast %105 : vector<8x1xf32> to vector<8x8xf32>
    %107 = arith.subf %103, %106 : vector<8x8xf32>
    %108 = math.exp %107 : vector<8x8xf32>
    %cst_40 = arith.constant dense<0.000000e+00> : vector<8xf32>
    %109 = vector.multi_reduction <add>, %108, %cst_40 [1] : vector<8x8xf32> to vector<8xf32>
    %110 = vector.shape_cast %109 : vector<8xf32> to vector<8x1xf32>
    %111 = tpu.reciprocal %110 {approx = true} : vector<8x1xf32> -> vector<8x1xf32>
    %112 = vector.broadcast %111 : vector<8x1xf32> to vector<8x8xf32>
    %113 = arith.mulf %108, %112 : vector<8x8xf32>
    %114 = arith.truncf %113 : vector<8x8xf32> to vector<8x8xbf16>
    %cst_41 = arith.constant dense<0.000000e+00> : vector<8x128xf32>
    %115 = tpu.matmul %114, %96, %cst_41 {dimension_numbers = #tpu.dot_dimension_numbers<[1], [0], [0], [1], [0, 0, 1, 1], [], []>} : vector<8x8xbf16>, vector<8x128xbf16>, vector<8x128xf32> -> vector<8x128xf32>
    %116 = arith.addf %90, %115 : vector<8x128xf32>
    %117 = vector.broadcast %18 : vector<1x128xf32> to vector<8x128xf32>
    %118 = arith.mulf %86, %117 : vector<8x128xf32>
    %119 = arith.truncf %118 : vector<8x128xf32> to vector<8x128xbf16>
    %120 = vector.broadcast %18 : vector<1x128xf32> to vector<8x128xf32>
    %121 = arith.mulf %89, %120 : vector<8x128xf32>
    %122 = arith.truncf %121 : vector<8x128xf32> to vector<8x128xbf16>
    %cst_42 = arith.constant dense<0.000000e+00> : vector<8x8xf32>
    %123 = tpu.matmul %119, %88, %cst_42 {dimension_numbers = #tpu.dot_dimension_numbers<[1], [1], [0], [0], [0, 0, 1, 0], [], []>} : vector<8x128xbf16>, vector<8x128xbf16>, vector<8x8xf32> -> vector<8x8xf32>
    %cst_43 = arith.constant 2.500000e-01 : f32
    %124 = vector.broadcast %cst_43 : f32 to vector<8x8xf32>
    %125 = arith.mulf %123, %124 : vector<8x8xf32>
    %cst_44 = arith.constant -1.000000e+30 : f32
    %126 = vector.shape_cast %21 : vector<1x8xi1> to vector<1x8xi1>
    %127 = vector.broadcast %126 : vector<1x8xi1> to vector<8x8xi1>
    %128 = vector.broadcast %cst_44 : f32 to vector<8x8xf32>
    %129 = arith.select %127, %125, %128 : vector<8x8xi1>, vector<8x8xf32>
    %cst_45 = arith.constant dense<0xFF800000> : vector<8xf32>
    %130 = vector.multi_reduction <maximumf>, %129, %cst_45 [1] : vector<8x8xf32> to vector<8xf32>
    %131 = vector.shape_cast %130 : vector<8xf32> to vector<8x1xf32>
    %132 = vector.broadcast %131 : vector<8x1xf32> to vector<8x8xf32>
    %133 = arith.subf %129, %132 : vector<8x8xf32>
    %134 = math.exp %133 : vector<8x8xf32>
    %cst_46 = arith.constant dense<0.000000e+00> : vector<8xf32>
    %135 = vector.multi_reduction <add>, %134, %cst_46 [1] : vector<8x8xf32> to vector<8xf32>
    %136 = vector.shape_cast %135 : vector<8xf32> to vector<8x1xf32>
    %137 = tpu.reciprocal %136 {approx = true} : vector<8x1xf32> -> vector<8x1xf32>
    %138 = vector.broadcast %137 : vector<8x1xf32> to vector<8x8xf32>
    %139 = arith.mulf %134, %138 : vector<8x8xf32>
    %140 = arith.truncf %139 : vector<8x8xf32> to vector<8x8xbf16>
    %cst_47 = arith.constant dense<0.000000e+00> : vector<8x128xf32>
    %141 = tpu.matmul %140, %122, %cst_47 {dimension_numbers = #tpu.dot_dimension_numbers<[1], [0], [0], [1], [0, 0, 1, 1], [], []>} : vector<8x8xbf16>, vector<8x128xbf16>, vector<8x128xf32> -> vector<8x128xf32>
    %142 = arith.addf %116, %141 : vector<8x128xf32>
    %c0_48 = arith.constant 0 : index
    %c0_49 = arith.constant 0 : index
    %c0_50 = arith.constant 0 : index
    %143 = vector.load %arg10[%c0_48, %c0_49, %c0_50] : memref<2x128x128xbf16, #tpu.memory_space<vmem>>, vector<1x128x128xbf16>
    %144 = vector.shape_cast %143 : vector<1x128x128xbf16> to vector<128x128xbf16>
    %145 = arith.truncf %142 : vector<8x128xf32> to vector<8x128xbf16>
    %cst_51 = arith.constant dense<0.000000e+00> : vector<8x128xf32>
    %146 = tpu.matmul %145, %144, %cst_51 {dimension_numbers = #tpu.dot_dimension_numbers<[1], [0], [0], [1], [0, 0, 1, 1], [], []>} : vector<8x128xbf16>, vector<128x128xbf16>, vector<8x128xf32> -> vector<8x128xf32>
    %c0_52 = arith.constant 0 : index
    %c0_53 = arith.constant 0 : index
    %c0_54 = arith.constant 0 : index
    %147 = vector.load %arg11[%c0_52, %c0_53, %c0_54] : memref<2x1x128xf32, #tpu.memory_space<vmem>>, vector<1x1x128xf32>
    %148 = vector.shape_cast %147 : vector<1x1x128xf32> to vector<1x128xf32>
    %149 = vector.broadcast %148 : vector<1x128xf32> to vector<8x128xf32>
    %150 = arith.addf %146, %149 : vector<8x128xf32>
    %151 = arith.addf %51, %150 : vector<8x128xf32>
    %c0_55 = arith.constant 0 : index
    %c0_56 = arith.constant 0 : index
    %c0_57 = arith.constant 0 : index
    %152 = vector.load %arg12[%c0_55, %c0_56, %c0_57] : memref<2x1x128xf32, #tpu.memory_space<vmem>>, vector<1x1x128xf32>
    %153 = vector.shape_cast %152 : vector<1x1x128xf32> to vector<1x128xf32>
    %c0_58 = arith.constant 0 : index
    %c0_59 = arith.constant 0 : index
    %c0_60 = arith.constant 0 : index
    %154 = vector.load %arg13[%c0_58, %c0_59, %c0_60] : memref<2x1x128xf32, #tpu.memory_space<vmem>>, vector<1x1x128xf32>
    %155 = vector.shape_cast %154 : vector<1x1x128xf32> to vector<1x128xf32>
    %cst_61 = arith.constant dense<0.000000e+00> : vector<8xf32>
    %156 = vector.multi_reduction <add>, %151, %cst_61 [1] : vector<8x128xf32> to vector<8xf32>
    %157 = vector.shape_cast %156 : vector<8xf32> to vector<8x1xf32>
    %cst_62 = arith.constant 3.125000e-02 : f32
    %158 = vector.broadcast %cst_62 : f32 to vector<8x1xf32>
    %159 = arith.mulf %157, %158 : vector<8x1xf32>
    %160 = vector.broadcast %159 : vector<8x1xf32> to vector<8x128xf32>
    %161 = arith.subf %151, %160 : vector<8x128xf32>
    %162 = vector.broadcast %4 : vector<1x128xf32> to vector<8x128xf32>
    %163 = arith.mulf %161, %162 : vector<8x128xf32>
    %164 = arith.mulf %163, %163 : vector<8x128xf32>
    %cst_63 = arith.constant dense<0.000000e+00> : vector<8xf32>
    %165 = vector.multi_reduction <add>, %164, %cst_63 [1] : vector<8x128xf32> to vector<8xf32>
    %166 = vector.shape_cast %165 : vector<8xf32> to vector<8x1xf32>
    %cst_64 = arith.constant 3.125000e-02 : f32
    %167 = vector.broadcast %cst_64 : f32 to vector<8x1xf32>
    %168 = arith.mulf %166, %167 : vector<8x1xf32>
    %cst_65 = arith.constant 9.99999974E-6 : f32
    %169 = vector.broadcast %cst_65 : f32 to vector<8x1xf32>
    %170 = arith.addf %168, %169 : vector<8x1xf32>
    %171 = math.rsqrt %170 : vector<8x1xf32>
    %172 = vector.broadcast %171 : vector<8x1xf32> to vector<8x128xf32>
    %173 = arith.mulf %163, %172 : vector<8x128xf32>
    %174 = vector.broadcast %153 : vector<1x128xf32> to vector<8x128xf32>
    %175 = arith.mulf %173, %174 : vector<8x128xf32>
    %176 = vector.broadcast %155 : vector<1x128xf32> to vector<8x128xf32>
    %177 = arith.addf %175, %176 : vector<8x128xf32>
    %c0_66 = arith.constant 0 : index
    %c0_67 = arith.constant 0 : index
    %c0_68 = arith.constant 0 : index
    %178 = vector.load %arg14[%c0_66, %c0_67, %c0_68] : memref<2x128x128xbf16, #tpu.memory_space<vmem>>, vector<1x128x128xbf16>
    %179 = vector.shape_cast %178 : vector<1x128x128xbf16> to vector<128x128xbf16>
    %180 = arith.truncf %177 : vector<8x128xf32> to vector<8x128xbf16>
    %cst_69 = arith.constant dense<0.000000e+00> : vector<8x128xf32>
    %181 = tpu.matmul %180, %179, %cst_69 {dimension_numbers = #tpu.dot_dimension_numbers<[1], [0], [0], [1], [0, 0, 1, 1], [], []>} : vector<8x128xbf16>, vector<128x128xbf16>, vector<8x128xf32> -> vector<8x128xf32>
    %c0_70 = arith.constant 0 : index
    %c0_71 = arith.constant 0 : index
    %c0_72 = arith.constant 0 : index
    %182 = vector.load %arg15[%c0_70, %c0_71, %c0_72] : memref<2x1x128xf32, #tpu.memory_space<vmem>>, vector<1x1x128xf32>
    %183 = vector.shape_cast %182 : vector<1x1x128xf32> to vector<1x128xf32>
    %184 = vector.broadcast %183 : vector<1x128xf32> to vector<8x128xf32>
    %185 = arith.addf %181, %184 : vector<8x128xf32>
    %cst_73 = arith.constant 1.702000e+00 : f32
    %186 = vector.broadcast %cst_73 : f32 to vector<8x128xf32>
    %187 = arith.mulf %186, %185 : vector<8x128xf32>
    %188 = arith.negf %187 : vector<8x128xf32>
    %189 = math.exp %188 : vector<8x128xf32>
    %cst_74 = arith.constant 1.000000e+00 : f32
    %190 = vector.broadcast %cst_74 : f32 to vector<8x128xf32>
    %191 = arith.addf %190, %189 : vector<8x128xf32>
    %192 = arith.divf %190, %191 : vector<8x128xf32>
    %193 = arith.mulf %185, %192 : vector<8x128xf32>
    %c0_75 = arith.constant 0 : index
    %c0_76 = arith.constant 0 : index
    %c0_77 = arith.constant 0 : index
    %194 = vector.load %arg16[%c0_75, %c0_76, %c0_77] : memref<2x128x128xbf16, #tpu.memory_space<vmem>>, vector<1x128x128xbf16>
    %195 = vector.shape_cast %194 : vector<1x128x128xbf16> to vector<128x128xbf16>
    %196 = arith.truncf %193 : vector<8x128xf32> to vector<8x128xbf16>
    %cst_78 = arith.constant dense<0.000000e+00> : vector<8x128xf32>
    %197 = tpu.matmul %196, %195, %cst_78 {dimension_numbers = #tpu.dot_dimension_numbers<[1], [0], [0], [1], [0, 0, 1, 1], [], []>} : vector<8x128xbf16>, vector<128x128xbf16>, vector<8x128xf32> -> vector<8x128xf32>
    %c0_79 = arith.constant 0 : index
    %c0_80 = arith.constant 0 : index
    %c0_81 = arith.constant 0 : index
    %198 = vector.load %arg17[%c0_79, %c0_80, %c0_81] : memref<2x1x128xf32, #tpu.memory_space<vmem>>, vector<1x1x128xf32>
    %199 = vector.shape_cast %198 : vector<1x1x128xf32> to vector<1x128xf32>
    %200 = vector.broadcast %199 : vector<1x128xf32> to vector<8x128xf32>
    %201 = arith.addf %197, %200 : vector<8x128xf32>
    %202 = arith.addf %151, %201 : vector<8x128xf32>
    %c1 = arith.constant 1 : index
    %c0_82 = arith.constant 0 : index
    %c0_83 = arith.constant 0 : index
    %203 = vector.load %arg6[%c1, %c0_82, %c0_83] : memref<2x1x128xf32, #tpu.memory_space<vmem>>, vector<1x1x128xf32>
    %204 = vector.shape_cast %203 : vector<1x1x128xf32> to vector<1x128xf32>
    %c1_84 = arith.constant 1 : index
    %c0_85 = arith.constant 0 : index
    %c0_86 = arith.constant 0 : index
    %205 = vector.load %arg7[%c1_84, %c0_85, %c0_86] : memref<2x1x128xf32, #tpu.memory_space<vmem>>, vector<1x1x128xf32>
    %206 = vector.shape_cast %205 : vector<1x1x128xf32> to vector<1x128xf32>
    %cst_87 = arith.constant dense<0.000000e+00> : vector<8xf32>
    %207 = vector.multi_reduction <add>, %202, %cst_87 [1] : vector<8x128xf32> to vector<8xf32>
    %208 = vector.shape_cast %207 : vector<8xf32> to vector<8x1xf32>
    %cst_88 = arith.constant 3.125000e-02 : f32
    %209 = vector.broadcast %cst_88 : f32 to vector<8x1xf32>
    %210 = arith.mulf %208, %209 : vector<8x1xf32>
    %211 = vector.broadcast %210 : vector<8x1xf32> to vector<8x128xf32>
    %212 = arith.subf %202, %211 : vector<8x128xf32>
    %213 = vector.broadcast %4 : vector<1x128xf32> to vector<8x128xf32>
    %214 = arith.mulf %212, %213 : vector<8x128xf32>
    %215 = arith.mulf %214, %214 : vector<8x128xf32>
    %cst_89 = arith.constant dense<0.000000e+00> : vector<8xf32>
    %216 = vector.multi_reduction <add>, %215, %cst_89 [1] : vector<8x128xf32> to vector<8xf32>
    %217 = vector.shape_cast %216 : vector<8xf32> to vector<8x1xf32>
    %cst_90 = arith.constant 3.125000e-02 : f32
    %218 = vector.broadcast %cst_90 : f32 to vector<8x1xf32>
    %219 = arith.mulf %217, %218 : vector<8x1xf32>
    %cst_91 = arith.constant 9.99999974E-6 : f32
    %220 = vector.broadcast %cst_91 : f32 to vector<8x1xf32>
    %221 = arith.addf %219, %220 : vector<8x1xf32>
    %222 = math.rsqrt %221 : vector<8x1xf32>
    %223 = vector.broadcast %222 : vector<8x1xf32> to vector<8x128xf32>
    %224 = arith.mulf %214, %223 : vector<8x128xf32>
    %225 = vector.broadcast %204 : vector<1x128xf32> to vector<8x128xf32>
    %226 = arith.mulf %224, %225 : vector<8x128xf32>
    %227 = vector.broadcast %206 : vector<1x128xf32> to vector<8x128xf32>
    %228 = arith.addf %226, %227 : vector<8x128xf32>
    %c1_92 = arith.constant 1 : index
    %c0_93 = arith.constant 0 : index
    %c0_94 = arith.constant 0 : index
    %229 = vector.load %arg8[%c1_92, %c0_93, %c0_94] : memref<2x128x384xbf16, #tpu.memory_space<vmem>>, vector<1x128x384xbf16>
    %230 = vector.shape_cast %229 : vector<1x128x384xbf16> to vector<128x384xbf16>
    %231 = arith.truncf %228 : vector<8x128xf32> to vector<8x128xbf16>
    %cst_95 = arith.constant dense<0.000000e+00> : vector<8x384xf32>
    %232 = tpu.matmul %231, %230, %cst_95 {dimension_numbers = #tpu.dot_dimension_numbers<[1], [0], [0], [1], [0, 0, 1, 1], [], []>} : vector<8x128xbf16>, vector<128x384xbf16>, vector<8x384xf32> -> vector<8x384xf32>
    %c1_96 = arith.constant 1 : index
    %c0_97 = arith.constant 0 : index
    %c0_98 = arith.constant 0 : index
    %233 = vector.load %arg9[%c1_96, %c0_97, %c0_98] : memref<2x1x384xf32, #tpu.memory_space<vmem>>, vector<1x1x384xf32>
    %234 = vector.shape_cast %233 : vector<1x1x384xf32> to vector<1x384xf32>
    %235 = vector.broadcast %234 : vector<1x384xf32> to vector<8x384xf32>
    %236 = arith.addf %232, %235 : vector<8x384xf32>
    %237 = vector.extract_strided_slice %236 {offsets = [0, 0], sizes = [8, 128], strides = [1, 1]} : vector<8x384xf32> to vector<8x128xf32>
    %238 = vector.extract_strided_slice %236 {offsets = [0, 128], sizes = [8, 128], strides = [1, 1]} : vector<8x384xf32> to vector<8x128xf32>
    %239 = arith.truncf %238 : vector<8x128xf32> to vector<8x128xbf16>
    %240 = vector.extract_strided_slice %236 {offsets = [0, 256], sizes = [8, 128], strides = [1, 1]} : vector<8x384xf32> to vector<8x128xf32>
    %cst_99 = arith.constant 0.000000e+00 : f32
    %241 = vector.broadcast %cst_99 : f32 to vector<8x128xf32>
    %242 = vector.broadcast %11 : vector<1x128xf32> to vector<8x128xf32>
    %243 = arith.mulf %237, %242 : vector<8x128xf32>
    %244 = arith.truncf %243 : vector<8x128xf32> to vector<8x128xbf16>
    %245 = vector.broadcast %11 : vector<1x128xf32> to vector<8x128xf32>
    %246 = arith.mulf %240, %245 : vector<8x128xf32>
    %247 = arith.truncf %246 : vector<8x128xf32> to vector<8x128xbf16>
    %cst_100 = arith.constant dense<0.000000e+00> : vector<8x8xf32>
    %248 = tpu.matmul %244, %239, %cst_100 {dimension_numbers = #tpu.dot_dimension_numbers<[1], [1], [0], [0], [0, 0, 1, 0], [], []>} : vector<8x128xbf16>, vector<8x128xbf16>, vector<8x8xf32> -> vector<8x8xf32>
    %cst_101 = arith.constant 2.500000e-01 : f32
    %249 = vector.broadcast %cst_101 : f32 to vector<8x8xf32>
    %250 = arith.mulf %248, %249 : vector<8x8xf32>
    %cst_102 = arith.constant -1.000000e+30 : f32
    %251 = vector.shape_cast %21 : vector<1x8xi1> to vector<1x8xi1>
    %252 = vector.broadcast %251 : vector<1x8xi1> to vector<8x8xi1>
    %253 = vector.broadcast %cst_102 : f32 to vector<8x8xf32>
    %254 = arith.select %252, %250, %253 : vector<8x8xi1>, vector<8x8xf32>
    %cst_103 = arith.constant dense<0xFF800000> : vector<8xf32>
    %255 = vector.multi_reduction <maximumf>, %254, %cst_103 [1] : vector<8x8xf32> to vector<8xf32>
    %256 = vector.shape_cast %255 : vector<8xf32> to vector<8x1xf32>
    %257 = vector.broadcast %256 : vector<8x1xf32> to vector<8x8xf32>
    %258 = arith.subf %254, %257 : vector<8x8xf32>
    %259 = math.exp %258 : vector<8x8xf32>
    %cst_104 = arith.constant dense<0.000000e+00> : vector<8xf32>
    %260 = vector.multi_reduction <add>, %259, %cst_104 [1] : vector<8x8xf32> to vector<8xf32>
    %261 = vector.shape_cast %260 : vector<8xf32> to vector<8x1xf32>
    %262 = tpu.reciprocal %261 {approx = true} : vector<8x1xf32> -> vector<8x1xf32>
    %263 = vector.broadcast %262 : vector<8x1xf32> to vector<8x8xf32>
    %264 = arith.mulf %259, %263 : vector<8x8xf32>
    %265 = arith.truncf %264 : vector<8x8xf32> to vector<8x8xbf16>
    %cst_105 = arith.constant dense<0.000000e+00> : vector<8x128xf32>
    %266 = tpu.matmul %265, %247, %cst_105 {dimension_numbers = #tpu.dot_dimension_numbers<[1], [0], [0], [1], [0, 0, 1, 1], [], []>} : vector<8x8xbf16>, vector<8x128xbf16>, vector<8x128xf32> -> vector<8x128xf32>
    %267 = arith.addf %241, %266 : vector<8x128xf32>
    %268 = vector.broadcast %18 : vector<1x128xf32> to vector<8x128xf32>
    %269 = arith.mulf %237, %268 : vector<8x128xf32>
    %270 = arith.truncf %269 : vector<8x128xf32> to vector<8x128xbf16>
    %271 = vector.broadcast %18 : vector<1x128xf32> to vector<8x128xf32>
    %272 = arith.mulf %240, %271 : vector<8x128xf32>
    %273 = arith.truncf %272 : vector<8x128xf32> to vector<8x128xbf16>
    %cst_106 = arith.constant dense<0.000000e+00> : vector<8x8xf32>
    %274 = tpu.matmul %270, %239, %cst_106 {dimension_numbers = #tpu.dot_dimension_numbers<[1], [1], [0], [0], [0, 0, 1, 0], [], []>} : vector<8x128xbf16>, vector<8x128xbf16>, vector<8x8xf32> -> vector<8x8xf32>
    %cst_107 = arith.constant 2.500000e-01 : f32
    %275 = vector.broadcast %cst_107 : f32 to vector<8x8xf32>
    %276 = arith.mulf %274, %275 : vector<8x8xf32>
    %cst_108 = arith.constant -1.000000e+30 : f32
    %277 = vector.shape_cast %21 : vector<1x8xi1> to vector<1x8xi1>
    %278 = vector.broadcast %277 : vector<1x8xi1> to vector<8x8xi1>
    %279 = vector.broadcast %cst_108 : f32 to vector<8x8xf32>
    %280 = arith.select %278, %276, %279 : vector<8x8xi1>, vector<8x8xf32>
    %cst_109 = arith.constant dense<0xFF800000> : vector<8xf32>
    %281 = vector.multi_reduction <maximumf>, %280, %cst_109 [1] : vector<8x8xf32> to vector<8xf32>
    %282 = vector.shape_cast %281 : vector<8xf32> to vector<8x1xf32>
    %283 = vector.broadcast %282 : vector<8x1xf32> to vector<8x8xf32>
    %284 = arith.subf %280, %283 : vector<8x8xf32>
    %285 = math.exp %284 : vector<8x8xf32>
    %cst_110 = arith.constant dense<0.000000e+00> : vector<8xf32>
    %286 = vector.multi_reduction <add>, %285, %cst_110 [1] : vector<8x8xf32> to vector<8xf32>
    %287 = vector.shape_cast %286 : vector<8xf32> to vector<8x1xf32>
    %288 = tpu.reciprocal %287 {approx = true} : vector<8x1xf32> -> vector<8x1xf32>
    %289 = vector.broadcast %288 : vector<8x1xf32> to vector<8x8xf32>
    %290 = arith.mulf %285, %289 : vector<8x8xf32>
    %291 = arith.truncf %290 : vector<8x8xf32> to vector<8x8xbf16>
    %cst_111 = arith.constant dense<0.000000e+00> : vector<8x128xf32>
    %292 = tpu.matmul %291, %273, %cst_111 {dimension_numbers = #tpu.dot_dimension_numbers<[1], [0], [0], [1], [0, 0, 1, 1], [], []>} : vector<8x8xbf16>, vector<8x128xbf16>, vector<8x128xf32> -> vector<8x128xf32>
    %293 = arith.addf %267, %292 : vector<8x128xf32>
    %c1_112 = arith.constant 1 : index
    %c0_113 = arith.constant 0 : index
    %c0_114 = arith.constant 0 : index
    %294 = vector.load %arg10[%c1_112, %c0_113, %c0_114] : memref<2x128x128xbf16, #tpu.memory_space<vmem>>, vector<1x128x128xbf16>
    %295 = vector.shape_cast %294 : vector<1x128x128xbf16> to vector<128x128xbf16>
    %296 = arith.truncf %293 : vector<8x128xf32> to vector<8x128xbf16>
    %cst_115 = arith.constant dense<0.000000e+00> : vector<8x128xf32>
    %297 = tpu.matmul %296, %295, %cst_115 {dimension_numbers = #tpu.dot_dimension_numbers<[1], [0], [0], [1], [0, 0, 1, 1], [], []>} : vector<8x128xbf16>, vector<128x128xbf16>, vector<8x128xf32> -> vector<8x128xf32>
    %c1_116 = arith.constant 1 : index
    %c0_117 = arith.constant 0 : index
    %c0_118 = arith.constant 0 : index
    %298 = vector.load %arg11[%c1_116, %c0_117, %c0_118] : memref<2x1x128xf32, #tpu.memory_space<vmem>>, vector<1x1x128xf32>
    %299 = vector.shape_cast %298 : vector<1x1x128xf32> to vector<1x128xf32>
    %300 = vector.broadcast %299 : vector<1x128xf32> to vector<8x128xf32>
    %301 = arith.addf %297, %300 : vector<8x128xf32>
    %302 = arith.addf %202, %301 : vector<8x128xf32>
    %c1_119 = arith.constant 1 : index
    %c0_120 = arith.constant 0 : index
    %c0_121 = arith.constant 0 : index
    %303 = vector.load %arg12[%c1_119, %c0_120, %c0_121] : memref<2x1x128xf32, #tpu.memory_space<vmem>>, vector<1x1x128xf32>
    %304 = vector.shape_cast %303 : vector<1x1x128xf32> to vector<1x128xf32>
    %c1_122 = arith.constant 1 : index
    %c0_123 = arith.constant 0 : index
    %c0_124 = arith.constant 0 : index
    %305 = vector.load %arg13[%c1_122, %c0_123, %c0_124] : memref<2x1x128xf32, #tpu.memory_space<vmem>>, vector<1x1x128xf32>
    %306 = vector.shape_cast %305 : vector<1x1x128xf32> to vector<1x128xf32>
    %cst_125 = arith.constant dense<0.000000e+00> : vector<8xf32>
    %307 = vector.multi_reduction <add>, %302, %cst_125 [1] : vector<8x128xf32> to vector<8xf32>
    %308 = vector.shape_cast %307 : vector<8xf32> to vector<8x1xf32>
    %cst_126 = arith.constant 3.125000e-02 : f32
    %309 = vector.broadcast %cst_126 : f32 to vector<8x1xf32>
    %310 = arith.mulf %308, %309 : vector<8x1xf32>
    %311 = vector.broadcast %310 : vector<8x1xf32> to vector<8x128xf32>
    %312 = arith.subf %302, %311 : vector<8x128xf32>
    %313 = vector.broadcast %4 : vector<1x128xf32> to vector<8x128xf32>
    %314 = arith.mulf %312, %313 : vector<8x128xf32>
    %315 = arith.mulf %314, %314 : vector<8x128xf32>
    %cst_127 = arith.constant dense<0.000000e+00> : vector<8xf32>
    %316 = vector.multi_reduction <add>, %315, %cst_127 [1] : vector<8x128xf32> to vector<8xf32>
    %317 = vector.shape_cast %316 : vector<8xf32> to vector<8x1xf32>
    %cst_128 = arith.constant 3.125000e-02 : f32
    %318 = vector.broadcast %cst_128 : f32 to vector<8x1xf32>
    %319 = arith.mulf %317, %318 : vector<8x1xf32>
    %cst_129 = arith.constant 9.99999974E-6 : f32
    %320 = vector.broadcast %cst_129 : f32 to vector<8x1xf32>
    %321 = arith.addf %319, %320 : vector<8x1xf32>
    %322 = math.rsqrt %321 : vector<8x1xf32>
    %323 = vector.broadcast %322 : vector<8x1xf32> to vector<8x128xf32>
    %324 = arith.mulf %314, %323 : vector<8x128xf32>
    %325 = vector.broadcast %304 : vector<1x128xf32> to vector<8x128xf32>
    %326 = arith.mulf %324, %325 : vector<8x128xf32>
    %327 = vector.broadcast %306 : vector<1x128xf32> to vector<8x128xf32>
    %328 = arith.addf %326, %327 : vector<8x128xf32>
    %c1_130 = arith.constant 1 : index
    %c0_131 = arith.constant 0 : index
    %c0_132 = arith.constant 0 : index
    %329 = vector.load %arg14[%c1_130, %c0_131, %c0_132] : memref<2x128x128xbf16, #tpu.memory_space<vmem>>, vector<1x128x128xbf16>
    %330 = vector.shape_cast %329 : vector<1x128x128xbf16> to vector<128x128xbf16>
    %331 = arith.truncf %328 : vector<8x128xf32> to vector<8x128xbf16>
    %cst_133 = arith.constant dense<0.000000e+00> : vector<8x128xf32>
    %332 = tpu.matmul %331, %330, %cst_133 {dimension_numbers = #tpu.dot_dimension_numbers<[1], [0], [0], [1], [0, 0, 1, 1], [], []>} : vector<8x128xbf16>, vector<128x128xbf16>, vector<8x128xf32> -> vector<8x128xf32>
    %c1_134 = arith.constant 1 : index
    %c0_135 = arith.constant 0 : index
    %c0_136 = arith.constant 0 : index
    %333 = vector.load %arg15[%c1_134, %c0_135, %c0_136] : memref<2x1x128xf32, #tpu.memory_space<vmem>>, vector<1x1x128xf32>
    %334 = vector.shape_cast %333 : vector<1x1x128xf32> to vector<1x128xf32>
    %335 = vector.broadcast %334 : vector<1x128xf32> to vector<8x128xf32>
    %336 = arith.addf %332, %335 : vector<8x128xf32>
    %cst_137 = arith.constant 1.702000e+00 : f32
    %337 = vector.broadcast %cst_137 : f32 to vector<8x128xf32>
    %338 = arith.mulf %337, %336 : vector<8x128xf32>
    %339 = arith.negf %338 : vector<8x128xf32>
    %340 = math.exp %339 : vector<8x128xf32>
    %cst_138 = arith.constant 1.000000e+00 : f32
    %341 = vector.broadcast %cst_138 : f32 to vector<8x128xf32>
    %342 = arith.addf %341, %340 : vector<8x128xf32>
    %343 = arith.divf %341, %342 : vector<8x128xf32>
    %344 = arith.mulf %336, %343 : vector<8x128xf32>
    %c1_139 = arith.constant 1 : index
    %c0_140 = arith.constant 0 : index
    %c0_141 = arith.constant 0 : index
    %345 = vector.load %arg16[%c1_139, %c0_140, %c0_141] : memref<2x128x128xbf16, #tpu.memory_space<vmem>>, vector<1x128x128xbf16>
    %346 = vector.shape_cast %345 : vector<1x128x128xbf16> to vector<128x128xbf16>
    %347 = arith.truncf %344 : vector<8x128xf32> to vector<8x128xbf16>
    %cst_142 = arith.constant dense<0.000000e+00> : vector<8x128xf32>
    %348 = tpu.matmul %347, %346, %cst_142 {dimension_numbers = #tpu.dot_dimension_numbers<[1], [0], [0], [1], [0, 0, 1, 1], [], []>} : vector<8x128xbf16>, vector<128x128xbf16>, vector<8x128xf32> -> vector<8x128xf32>
    %c1_143 = arith.constant 1 : index
    %c0_144 = arith.constant 0 : index
    %c0_145 = arith.constant 0 : index
    %349 = vector.load %arg17[%c1_143, %c0_144, %c0_145] : memref<2x1x128xf32, #tpu.memory_space<vmem>>, vector<1x1x128xf32>
    %350 = vector.shape_cast %349 : vector<1x1x128xf32> to vector<1x128xf32>
    %351 = vector.broadcast %350 : vector<1x128xf32> to vector<8x128xf32>
    %352 = arith.addf %348, %351 : vector<8x128xf32>
    %353 = arith.addf %302, %352 : vector<8x128xf32>
    %c0_146 = arith.constant 0 : index
    %c0_147 = arith.constant 0 : index
    %354 = vector.load %arg18[%c0_146, %c0_147] : memref<1x128xf32, #tpu.memory_space<vmem>>, vector<1x128xf32>
    %c0_148 = arith.constant 0 : index
    %c0_149 = arith.constant 0 : index
    %355 = vector.load %arg19[%c0_148, %c0_149] : memref<1x128xf32, #tpu.memory_space<vmem>>, vector<1x128xf32>
    %cst_150 = arith.constant dense<0.000000e+00> : vector<8xf32>
    %356 = vector.multi_reduction <add>, %353, %cst_150 [1] : vector<8x128xf32> to vector<8xf32>
    %357 = vector.shape_cast %356 : vector<8xf32> to vector<8x1xf32>
    %cst_151 = arith.constant 3.125000e-02 : f32
    %358 = vector.broadcast %cst_151 : f32 to vector<8x1xf32>
    %359 = arith.mulf %357, %358 : vector<8x1xf32>
    %360 = vector.broadcast %359 : vector<8x1xf32> to vector<8x128xf32>
    %361 = arith.subf %353, %360 : vector<8x128xf32>
    %362 = vector.broadcast %4 : vector<1x128xf32> to vector<8x128xf32>
    %363 = arith.mulf %361, %362 : vector<8x128xf32>
    %364 = arith.mulf %363, %363 : vector<8x128xf32>
    %cst_152 = arith.constant dense<0.000000e+00> : vector<8xf32>
    %365 = vector.multi_reduction <add>, %364, %cst_152 [1] : vector<8x128xf32> to vector<8xf32>
    %366 = vector.shape_cast %365 : vector<8xf32> to vector<8x1xf32>
    %cst_153 = arith.constant 3.125000e-02 : f32
    %367 = vector.broadcast %cst_153 : f32 to vector<8x1xf32>
    %368 = arith.mulf %366, %367 : vector<8x1xf32>
    %cst_154 = arith.constant 9.99999974E-6 : f32
    %369 = vector.broadcast %cst_154 : f32 to vector<8x1xf32>
    %370 = arith.addf %368, %369 : vector<8x1xf32>
    %371 = math.rsqrt %370 : vector<8x1xf32>
    %372 = vector.broadcast %371 : vector<8x1xf32> to vector<8x128xf32>
    %373 = arith.mulf %363, %372 : vector<8x128xf32>
    %374 = vector.broadcast %354 : vector<1x128xf32> to vector<8x128xf32>
    %375 = arith.mulf %373, %374 : vector<8x128xf32>
    %376 = vector.broadcast %355 : vector<1x128xf32> to vector<8x128xf32>
    %377 = arith.addf %375, %376 : vector<8x128xf32>
    %c0_155 = arith.constant 0 : index
    %c0_156 = arith.constant 0 : index
    %378 = vector.load %arg20[%c0_155, %c0_156] : memref<128x128xbf16, #tpu.memory_space<vmem>>, vector<128x128xbf16>
    %379 = arith.truncf %377 : vector<8x128xf32> to vector<8x128xbf16>
    %cst_157 = arith.constant dense<0.000000e+00> : vector<8x128xf32>
    %380 = tpu.matmul %379, %378, %cst_157 {dimension_numbers = #tpu.dot_dimension_numbers<[1], [0], [0], [1], [0, 0, 1, 1], [], []>} : vector<8x128xbf16>, vector<128x128xbf16>, vector<8x128xf32> -> vector<8x128xf32>
    %c0_158 = arith.constant 0 : index
    %c0_159 = arith.constant 0 : index
    %c0_160 = arith.constant 0 : index
    %381 = vector.load %arg21[%c0_158, %c0_159, %c0_160] : memref<1x8x128xf32, #tpu.memory_space<vmem>>, vector<1x8x128xf32>
    %382 = vector.shape_cast %381 : vector<1x8x128xf32> to vector<8x128xf32>
    %383 = vector.shape_cast %380 : vector<8x128xf32> to vector<1x8x128xf32>
    tpu.vector_store %arg21[%c0_158, %c0_159, %c0_160], %383 {strides = array<i32>} : memref<1x8x128xf32, #tpu.memory_space<vmem>>, vector<1x8x128xf32>,
    return
  }
  func.func @transform_0(%arg0: i32) -> (i32, i32, i32) {
    %c0_i32 = arith.constant 0 : i32
    %c0_i32_0 = arith.constant 0 : i32
    %c0_i32_1 = arith.constant 0 : i32
    return %arg0, %c0_i32, %c0_i32_0 : i32, i32, i32
  }
  func.func @transform_1(%arg0: i32) -> (i32, i32) {
    %c0_i32 = arith.constant 0 : i32
    %c0_i32_0 = arith.constant 0 : i32
    %c0_i32_1 = arith.constant 0 : i32
    return %c0_i32, %c0_i32_0 : i32, i32
  }
  func.func @transform_2(%arg0: i32) -> (i32, i32) {
    %c0_i32 = arith.constant 0 : i32
    %c0_i32_0 = arith.constant 0 : i32
    %c0_i32_1 = arith.constant 0 : i32
    return %c0_i32, %c0_i32_0 : i32, i32
  }
  func.func @transform_3(%arg0: i32) -> (i32, i32) {
    %c0_i32 = arith.constant 0 : i32
    %c0_i32_0 = arith.constant 0 : i32
    %c0_i32_1 = arith.constant 0 : i32
    return %c0_i32, %c0_i32_0 : i32, i32
  }
  func.func @transform_4(%arg0: i32) -> (i32, i32) {
    %c0_i32 = arith.constant 0 : i32
    %c0_i32_0 = arith.constant 0 : i32
    %c0_i32_1 = arith.constant 0 : i32
    return %c0_i32, %c0_i32_0 : i32, i32
  }
  func.func @transform_5(%arg0: i32) -> (i32, i32, i32) {
    %c0_i32 = arith.constant 0 : i32
    %c0_i32_0 = arith.constant 0 : i32
    %c0_i32_1 = arith.constant 0 : i32
    %c0_i32_2 = arith.constant 0 : i32
    return %c0_i32, %c0_i32_0, %c0_i32_1 : i32, i32, i32
  }
  func.func @transform_6(%arg0: i32) -> (i32, i32, i32) {
    %c0_i32 = arith.constant 0 : i32
    %c0_i32_0 = arith.constant 0 : i32
    %c0_i32_1 = arith.constant 0 : i32
    %c0_i32_2 = arith.constant 0 : i32
    return %c0_i32, %c0_i32_0, %c0_i32_1 : i32, i32, i32
  }
  func.func @transform_7(%arg0: i32) -> (i32, i32, i32) {
    %c0_i32 = arith.constant 0 : i32
    %c0_i32_0 = arith.constant 0 : i32
    %c0_i32_1 = arith.constant 0 : i32
    %c0_i32_2 = arith.constant 0 : i32
    return %c0_i32, %c0_i32_0, %c0_i32_1 : i32, i32, i32
  }
  func.func @transform_8(%arg0: i32) -> (i32, i32, i32) {
    %c0_i32 = arith.constant 0 : i32
    %c0_i32_0 = arith.constant 0 : i32
    %c0_i32_1 = arith.constant 0 : i32
    %c0_i32_2 = arith.constant 0 : i32
    return %c0_i32, %c0_i32_0, %c0_i32_1 : i32, i32, i32
  }
  func.func @transform_9(%arg0: i32) -> (i32, i32, i32) {
    %c0_i32 = arith.constant 0 : i32
    %c0_i32_0 = arith.constant 0 : i32
    %c0_i32_1 = arith.constant 0 : i32
    %c0_i32_2 = arith.constant 0 : i32
    return %c0_i32, %c0_i32_0, %c0_i32_1 : i32, i32, i32
  }
  func.func @transform_10(%arg0: i32) -> (i32, i32, i32) {
    %c0_i32 = arith.constant 0 : i32
    %c0_i32_0 = arith.constant 0 : i32
    %c0_i32_1 = arith.constant 0 : i32
    %c0_i32_2 = arith.constant 0 : i32
    return %c0_i32, %c0_i32_0, %c0_i32_1 : i32, i32, i32
  }
  func.func @transform_11(%arg0: i32) -> (i32, i32, i32) {
    %c0_i32 = arith.constant 0 : i32
    %c0_i32_0 = arith.constant 0 : i32
    %c0_i32_1 = arith.constant 0 : i32
    %c0_i32_2 = arith.constant 0 : i32
    return %c0_i32, %c0_i32_0, %c0_i32_1 : i32, i32, i32
  }
  func.func @transform_12(%arg0: i32) -> (i32, i32, i32) {
    %c0_i32 = arith.constant 0 : i32
    %c0_i32_0 = arith.constant 0 : i32
    %c0_i32_1 = arith.constant 0 : i32
    %c0_i32_2 = arith.constant 0 : i32
    return %c0_i32, %c0_i32_0, %c0_i32_1 : i32, i32, i32
  }
  func.func @transform_13(%arg0: i32) -> (i32, i32, i32) {
    %c0_i32 = arith.constant 0 : i32
    %c0_i32_0 = arith.constant 0 : i32
    %c0_i32_1 = arith.constant 0 : i32
    %c0_i32_2 = arith.constant 0 : i32
    return %c0_i32, %c0_i32_0, %c0_i32_1 : i32, i32, i32
  }
  func.func @transform_14(%arg0: i32) -> (i32, i32, i32) {
    %c0_i32 = arith.constant 0 : i32
    %c0_i32_0 = arith.constant 0 : i32
    %c0_i32_1 = arith.constant 0 : i32
    %c0_i32_2 = arith.constant 0 : i32
    return %c0_i32, %c0_i32_0, %c0_i32_1 : i32, i32, i32
  }
  func.func @transform_15(%arg0: i32) -> (i32, i32, i32) {
    %c0_i32 = arith.constant 0 : i32
    %c0_i32_0 = arith.constant 0 : i32
    %c0_i32_1 = arith.constant 0 : i32
    %c0_i32_2 = arith.constant 0 : i32
    return %c0_i32, %c0_i32_0, %c0_i32_1 : i32, i32, i32
  }
  func.func @transform_16(%arg0: i32) -> (i32, i32, i32) {
    %c0_i32 = arith.constant 0 : i32
    %c0_i32_0 = arith.constant 0 : i32
    %c0_i32_1 = arith.constant 0 : i32
    %c0_i32_2 = arith.constant 0 : i32
    return %c0_i32, %c0_i32_0, %c0_i32_1 : i32, i32, i32
  }
  func.func @transform_17(%arg0: i32) -> (i32, i32) {
    %c0_i32 = arith.constant 0 : i32
    %c0_i32_0 = arith.constant 0 : i32
    %c0_i32_1 = arith.constant 0 : i32
    return %c0_i32, %c0_i32_0 : i32, i32
  }
  func.func @transform_18(%arg0: i32) -> (i32, i32) {
    %c0_i32 = arith.constant 0 : i32
    %c0_i32_0 = arith.constant 0 : i32
    %c0_i32_1 = arith.constant 0 : i32
    return %c0_i32, %c0_i32_0 : i32, i32
  }
  func.func @transform_19(%arg0: i32) -> (i32, i32) {
    %c0_i32 = arith.constant 0 : i32
    %c0_i32_0 = arith.constant 0 : i32
    %c0_i32_1 = arith.constant 0 : i32
    return %c0_i32, %c0_i32_0 : i32, i32
  }
  func.func @transform_20(%arg0: i32) -> (i32, i32, i32) {
    %c0_i32 = arith.constant 0 : i32
    %c0_i32_0 = arith.constant 0 : i32
    %c0_i32_1 = arith.constant 0 : i32
    return %arg0, %c0_i32, %c0_i32_0 : i32, i32, i32
  }
}

</mosaic_0001>

<llo_original>
// kernel: _encode_impl.1
$region0: #{_encode_impl.1}
  #allocation0 [shape = 'u32[]', space=smem, size = 0x4, offset = 0x4, fixed_abs, tag = 'smem constant byte address 0x4 - core index']
  #allocation1 [shape = 'u32[144,128]{1,0:T(1,128)}', space=vmem, size = 0x12000, scoped, tag = 'internal scratch']
  %s0 = inlined_call_operand.vmem [shape: bf16[2,8,256], index: 0, kind: input, shape index: {}]
  %s1 = inlined_call_operand.hbm [shape: f32[8,128], index: 1, kind: input, shape index: {}]
  %s2 = inlined_call_operand.vmem [shape: bf16[256,128], index: 2, kind: input, shape index: {}]
  %s3 = inlined_call_operand.vmem [shape: f32[1,128], index: 3, kind: input, shape index: {}]
  %s4 = inlined_call_operand.vmem [shape: f32[1,128], index: 4, kind: input, shape index: {}]
  %s5 = inlined_call_operand.vmem [shape: f32[2,1,128], index: 5, kind: input, shape index: {}]
  %s6 = inlined_call_operand.hbm [shape: f32[2,1,128], index: 6, kind: input, shape index: {}]
  %s7 = inlined_call_operand.vmem [shape: bf16[2,128,384], index: 7, kind: input, shape index: {}]
  %s8 = inlined_call_operand.hbm [shape: f32[2,1,384], index: 8, kind: input, shape index: {}]
  %s9 = inlined_call_operand.vmem [shape: bf16[2,128,128], index: 9, kind: input, shape index: {}]
  %s10 = inlined_call_operand.hbm [shape: f32[2,1,128], index: 10, kind: input, shape index: {}]
  %s11 = inlined_call_operand.hbm [shape: f32[2,1,128], index: 11, kind: input, shape index: {}]
  %s12 = inlined_call_operand.hbm [shape: f32[2,1,128], index: 12, kind: input, shape index: {}]
  %s13 = inlined_call_operand.vmem [shape: bf16[2,128,128], index: 13, kind: input, shape index: {}]
  %s14 = inlined_call_operand.hbm [shape: f32[2,1,128], index: 14, kind: input, shape index: {}]
  %s15 = inlined_call_operand.hbm [shape: bf16[2,128,128], index: 15, kind: input, shape index: {}]
  %s16 = inlined_call_operand.hbm [shape: f32[2,1,128], index: 16, kind: input, shape index: {}]
  %s17 = inlined_call_operand.hbm [shape: f32[1,128], index: 17, kind: input, shape index: {}]
  %s18 = inlined_call_operand.hbm [shape: f32[1,128], index: 18, kind: input, shape index: {}]
  %s19 = inlined_call_operand.vmem [shape: bf16[128,128], index: 19, kind: input, shape index: {}]
  %s20 = inlined_call_operand.vmem [shape: f32[2,8,128], index: 20, kind: output, shape index: {}]
  %s21 = sld [smem:[#allocation0]]
  $region157: #{_encode_impl.1} parent=0
    _
  %s23 = ssub.s32 1, %s21
  %s24 = scalar_select 0, %s23, %s21
  $region1: #{_encode_impl.1} parent=0
    #allocation2 [shape = 'u8[4096]{0}', space=vmem, size = 0x1000, scoped, tag = 'input window, operand 1, single buffered']
    #allocation3 [shape = 's32[2]{0}', space=sflag, size = 0x8, scoped, tag = 'scoped memory for _encode_impl.1']
    #allocation4 [shape = 'u8[1024]{0}', space=vmem, size = 0x400, scoped, tag = 'input window, operand 6, single buffered']
    #allocation5 [shape = 's32[1]{0}', space=sflag, size = 0x4, scoped, tag = 'scoped memory for _encode_impl.1']
    #allocation6 [shape = 'u8[3072]{0}', space=vmem, size = 0xc00, scoped, tag = 'input window, operand 8, single buffered']
    #allocation7 [shape = 'u8[1024]{0}', space=vmem, size = 0x400, scoped, tag = 'input window, operand 10, single buffered']
    #allocation8 [shape = 's32[1]{0}', space=sflag, size = 0x4, scoped, tag = 'scoped memory for _encode_impl.1']
    #allocation9 [shape = 'u8[1024]{0}', space=vmem, size = 0x400, scoped, tag = 'input window, operand 11, single buffered']
    #allocation10 [shape = 'u8[1024]{0}', space=vmem, size = 0x400, scoped, tag = 'input window, operand 12, single buffered']
    #allocation11 [shape = 's32[1]{0}', space=sflag, size = 0x4, scoped, tag = 'scoped memory for _encode_impl.1']
    #allocation12 [shape = 'u8[1024]{0}', space=vmem, size = 0x400, scoped, tag = 'input window, operand 14, single buffered']
    #allocation13 [shape = 'u8[65536]{0}', space=vmem, size = 0x10000, scoped, tag = 'input window, operand 15, single buffered']
    #allocation14 [shape = 's32[1]{0}', space=sflag, size = 0x4, scoped, tag = 'scoped memory for _encode_impl.1']
    #allocation15 [shape = 'u8[1024]{0}', space=vmem, size = 0x400, scoped, tag = 'input window, operand 16, single buffered']
    #allocation16 [shape = 'u8[512]{0}', space=vmem, size = 0x400, scoped, tag = 'input window, operand 17, single buffered']
    #allocation17 [shape = 's32[1]{0}', space=sflag, size = 0x4, scoped, tag = 'scoped memory for _encode_impl.1']
    #allocation18 [shape = 'u8[512]{0}', space=vmem, size = 0x400, scoped, tag = 'input window, operand 18, single buffered']
    %25 = vsyncpa [#allocation3], 0
    %26 = vsyncpa [#allocation5], 0
    %27 = vsyncpa [#allocation8], 0
    %28 = vsyncpa [#allocation11], 0
    %29 = vsyncpa [#allocation14], 0
    %30 = vsyncpa [#allocation17], 0
    loop: start=0, step=1, limit=4
    $region2: #{_encode_impl.1} parent=1 // loop_pre_header
      _
    $region3: #{_encode_impl.1} parent=1 // loop_header
      %s32 = sphi 0, %s36
      %p33 = scmp.ge.s32.totalorder %s32, 4
      %s42 = sphi 0, %s44
      %s45 = sphi 0, %s42
      %s46 = sphi 0, %s45
      %s62 = sphi 0, %s46
      %s66 = sphi 0, %s66
      %s68 = sphi 0, %s66
      %s69 = sphi 0, %s68
      %s83 = sphi 0, %s69
      %s87 = sphi 0, %s87
      %s89 = sphi 0, %s87
      %s90 = sphi 0, %s89
      %s104 = sphi 0, %s90
      %s108 = sphi 0, %s108
      %s110 = sphi 0, %s108
      %s111 = sphi 0, %s110
      %s125 = sphi 0, %s111
      %s129 = sphi 0, %s129
      %s131 = sphi 0, %s129
      %s132 = sphi 0, %s131
      %s146 = sphi 0, %s132
      %s150 = sphi 0, %s150
      %s152 = sphi 0, %s150
      %s153 = sphi 0, %s152
      %s167 = sphi 0, %s153
      %s171 = sphi 0, %s171
      %s173 = sphi 0, %s171
      %s174 = sphi 0, %s173
      %s188 = sphi 0, %s174
      %s192 = sphi 0, %s192
      %s194 = sphi 0, %s192
      %s195 = sphi 0, %s194
      %s209 = sphi 0, %s195
      %s213 = sphi 0, %s213
      %s215 = sphi 0, %s213
      %s216 = sphi 0, %s215
      %s230 = sphi 0, %s216
      %s234 = sphi 0, %s234
      %s236 = sphi 0, %s234
      %s237 = sphi 0, %s236
      %s251 = sphi 0, %s237
      %s255 = sphi 0, %s255
      %s257 = sphi 0, %s255
      %s258 = sphi 0, %s257
      %s272 = sphi 0, %s258
      %s276 = sphi 0, %s276
      %s278 = sphi 0, %s276
      %s279 = sphi 0, %s278
      %s293 = sphi 0, %s279
      %s297 = sphi 0, %s297
      %s299 = sphi 0, %s297
      %s300 = sphi 0, %s299
      %s314 = sphi 0, %s300
      %s318 = sphi 0, %s318
      %s320 = sphi 0, %s318
      %s321 = sphi 0, %s320
      %s335 = sphi 0, %s321
      %s339 = sphi 0, %s339
      %s341 = sphi 0, %s339
      %s342 = sphi 0, %s341
      %s356 = sphi 0, %s342
      %s360 = sphi 0, %s360
      %s362 = sphi 0, %s360
      %s363 = sphi 0, %s362
      %s377 = sphi 0, %s363
      %s381 = sphi 0, %s381
      %s383 = sphi 0, %s381
      %s384 = sphi 0, %s383
      %s398 = sphi 0, %s384
      %s402 = sphi 0, %s402
      %s404 = sphi 0, %s402
      %s405 = sphi 0, %s404
      %s419 = sphi 0, %s405
      %s423 = sphi 0, %s423
      %s425 = sphi 0, %s423
      %s426 = sphi 0, %s425
      %s440 = sphi 0, %s426
      %s444 = sphi 0, %s444
      %s446 = sphi 0, %s444
      %s447 = sphi 0, %s446
      %s461 = sphi 0, %s447
      %s467 = sphi 0, %s469
      %s470 = sphi 0, %s467
      %s471 = sphi 0, %s470
      %s487 = sphi 0, %s471
    $region4: #{_encode_impl.1} parent=1 // loop_header_branch
      %35 = sbr.rel (%p33) target = $region8
    $region5: #{_encode_impl.1} parent=1 // loop_body
      %s37 = ssub.s32 %s32, 1
      %s38 = ssub.s32 %s32, 2
      %s39 = sadd.s32 %s32, 1
      %s40 = ssub.s32 %s32, %s39
      %p41 = scmp.eq.s32.totalorder %s40, 0
      %s43 = sadd.s32 %s42, 1
      %s44 = scalar_select %p41, %s42, %s43
      %p47 = pneg %p41
      %p48 = scmp.eq.s32.totalorder %s32, 1
      %p49 = por %p47, %p48
      %p50 = scmp.ne.s32.totalorder %s42, %s45
      %p51 = scmp.eq.s32.totalorder %s32, 0
      %p52 = por %p50, %p51
      %p53 = scmp.ne.s32.totalorder %s42, %s45
      %p54 = scmp.eq.s32.totalorder %s37, 1
      %p55 = por %p53, %p54
      %p56 = scmp.ne.s32.totalorder %s45, %s46
      %p57 = scmp.eq.s32.totalorder %s37, 0
      %p58 = por %p56, %p57
      %p59 = scmp.ne.s32.totalorder %s45, %s46
      %p60 = scmp.eq.s32.totalorder %s38, 1
      %p61 = por %p59, %p60
      %p63 = scmp.ne.s32.totalorder %s46, %s62
      %p64 = scmp.eq.s32.totalorder %s38, 0
      %p65 = por %p63, %p64
      %s67 = sadd.s32 %s66, 1
      %p70 = scmp.eq.s32.totalorder %s32, 1
      %p71 = scmp.ne.s32.totalorder %s66, %s68
      %p72 = scmp.eq.s32.totalorder %s32, 0
      %p73 = por %p71, %p72
      %p74 = scmp.ne.s32.totalorder %s66, %s68
      %p75 = scmp.eq.s32.totalorder %s37, 1
      %p76 = por %p74, %p75
      %p77 = scmp.ne.s32.totalorder %s68, %s69
      %p78 = scmp.eq.s32.totalorder %s37, 0
      %p79 = por %p77, %p78
      %p80 = scmp.ne.s32.totalorder %s68, %s69
      %p81 = scmp.eq.s32.totalorder %s38, 1
      %p82 = por %p80, %p81
      %p84 = scmp.ne.s32.totalorder %s69, %s83
      %p85 = scmp.eq.s32.totalorder %s38, 0
      %p86 = por %p84, %p85
      %s88 = sadd.s32 %s87, 1
      %p91 = scmp.eq.s32.totalorder %s32, 1
      %p92 = scmp.ne.s32.totalorder %s87, %s89
      %p93 = scmp.eq.s32.totalorder %s32, 0
      %p94 = por %p92, %p93
      %p95 = scmp.ne.s32.totalorder %s87, %s89
      %p96 = scmp.eq.s32.totalorder %s37, 1
      %p97 = por %p95, %p96
      %p98 = scmp.ne.s32.totalorder %s89, %s90
      %p99 = scmp.eq.s32.totalorder %s37, 0
      %p100 = por %p98, %p99
      %p101 = scmp.ne.s32.totalorder %s89, %s90
      %p102 = scmp.eq.s32.totalorder %s38, 1
      %p103 = por %p101, %p102
      %p105 = scmp.ne.s32.totalorder %s90, %s104
      %p106 = scmp.eq.s32.totalorder %s38, 0
      %p107 = por %p105, %p106
      %s109 = sadd.s32 %s108, 1
      %p112 = scmp.eq.s32.totalorder %s32, 1
      %p113 = scmp.ne.s32.totalorder %s108, %s110
      %p114 = scmp.eq.s32.totalorder %s32, 0
      %p115 = por %p113, %p114
      %p116 = scmp.ne.s32.totalorder %s108, %s110
      %p117 = scmp.eq.s32.totalorder %s37, 1
      %p118 = por %p116, %p117
      %p119 = scmp.ne.s32.totalorder %s110, %s111
      %p120 = scmp.eq.s32.totalorder %s37, 0
      %p121 = por %p119, %p120
      %p122 = scmp.ne.s32.totalorder %s110, %s111
      %p123 = scmp.eq.s32.totalorder %s38, 1
      %p124 = por %p122, %p123
      %p126 = scmp.ne.s32.totalorder %s111, %s125
      %p127 = scmp.eq.s32.totalorder %s38, 0
      %p128 = por %p126, %p127
      %s130 = sadd.s32 %s129, 1
      %p133 = scmp.eq.s32.totalorder %s32, 1
      %p134 = scmp.ne.s32.totalorder %s129, %s131
      %p135 = scmp.eq.s32.totalorder %s32, 0
      %p136 = por %p134, %p135
      %p137 = scmp.ne.s32.totalorder %s129, %s131
      %p138 = scmp.eq.s32.totalorder %s37, 1
      %p139 = por %p137, %p138
      %p140 = scmp.ne.s32.totalorder %s131, %s132
      %p141 = scmp.eq.s32.totalorder %s37, 0
      %p142 = por %p140, %p141
      %p143 = scmp.ne.s32.totalorder %s131, %s132
      %p144 = scmp.eq.s32.totalorder %s38, 1
      %p145 = por %p143, %p144
      %p147 = scmp.ne.s32.totalorder %s132, %s146
      %p148 = scmp.eq.s32.totalorder %s38, 0
      %p149 = por %p147, %p148
      %s151 = sadd.s32 %s150, 1
      %p154 = scmp.eq.s32.totalorder %s32, 1
      %p155 = scmp.ne.s32.totalorder %s150, %s152
      %p156 = scmp.eq.s32.totalorder %s32, 0
      %p157 = por %p155, %p156
      %p158 = scmp.ne.s32.totalorder %s150, %s152
      %p159 = scmp.eq.s32.totalorder %s37, 1
      %p160 = por %p158, %p159
      %p161 = scmp.ne.s32.totalorder %s152, %s153
      %p162 = scmp.eq.s32.totalorder %s37, 0
      %p163 = por %p161, %p162
      %p164 = scmp.ne.s32.totalorder %s152, %s153
      %p165 = scmp.eq.s32.totalorder %s38, 1
      %p166 = por %p164, %p165
      %p168 = scmp.ne.s32.totalorder %s153, %s167
      %p169 = scmp.eq.s32.totalorder %s38, 0
      %p170 = por %p168, %p169
      %s172 = sadd.s32 %s171, 1
      %p175 = scmp.eq.s32.totalorder %s32, 1
      %p176 = scmp.ne.s32.totalorder %s171, %s173
      %p177 = scmp.eq.s32.totalorder %s32, 0
      %p178 = por %p176, %p177
      %p179 = scmp.ne.s32.totalorder %s171, %s173
      %p180 = scmp.eq.s32.totalorder %s37, 1
      %p181 = por %p179, %p180
      %p182 = scmp.ne.s32.totalorder %s173, %s174
      %p183 = scmp.eq.s32.totalorder %s37, 0
      %p184 = por %p182, %p183
      %p185 = scmp.ne.s32.totalorder %s173, %s174
      %p186 = scmp.eq.s32.totalorder %s38, 1
      %p187 = por %p185, %p186
      %p189 = scmp.ne.s32.totalorder %s174, %s188
      %p190 = scmp.eq.s32.totalorder %s38, 0
      %p191 = por %p189, %p190
      %s193 = sadd.s32 %s192, 1
      %p196 = scmp.eq.s32.totalorder %s32, 1
      %p197 = scmp.ne.s32.totalorder %s192, %s194
      %p198 = scmp.eq.s32.totalorder %s32, 0
      %p199 = por %p197, %p198
      %p200 = scmp.ne.s32.totalorder %s192, %s194
      %p201 = scmp.eq.s32.totalorder %s37, 1
      %p202 = por %p200, %p201
      %p203 = scmp.ne.s32.totalorder %s194, %s195
      %p204 = scmp.eq.s32.totalorder %s37, 0
      %p205 = por %p203, %p204
      %p206 = scmp.ne.s32.totalorder %s194, %s195
      %p207 = scmp.eq.s32.totalorder %s38, 1
      %p208 = por %p206, %p207
      %p210 = scmp.ne.s32.totalorder %s195, %s209
      %p211 = scmp.eq.s32.totalorder %s38, 0
      %p212 = por %p210, %p211
      %s214 = sadd.s32 %s213, 1
      %p217 = scmp.eq.s32.totalorder %s32, 1
      %p218 = scmp.ne.s32.totalorder %s213, %s215
      %p219 = scmp.eq.s32.totalorder %s32, 0
      %p220 = por %p218, %p219
      %p221 = scmp.ne.s32.totalorder %s213, %s215
      %p222 = scmp.eq.s32.totalorder %s37, 1
      %p223 = por %p221, %p222
      %p224 = scmp.ne.s32.totalorder %s215, %s216
      %p225 = scmp.eq.s32.totalorder %s37, 0
      %p226 = por %p224, %p225
      %p227 = scmp.ne.s32.totalorder %s215, %s216
      %p228 = scmp.eq.s32.totalorder %s38, 1
      %p229 = por %p227, %p228
      %p231 = scmp.ne.s32.totalorder %s216, %s230
      %p232 = scmp.eq.s32.totalorder %s38, 0
      %p233 = por %p231, %p232
      %s235 = sadd.s32 %s234, 1
      %p238 = scmp.eq.s32.totalorder %s32, 1
      %p239 = scmp.ne.s32.totalorder %s234, %s236
      %p240 = scmp.eq.s32.totalorder %s32, 0
      %p241 = por %p239, %p240
      %p242 = scmp.ne.s32.totalorder %s234, %s236
      %p243 = scmp.eq.s32.totalorder %s37, 1
      %p244 = por %p242, %p243
      %p245 = scmp.ne.s32.totalorder %s236, %s237
      %p246 = scmp.eq.s32.totalorder %s37, 0
      %p247 = por %p245, %p246
      %p248 = scmp.ne.s32.totalorder %s236, %s237
      %p249 = scmp.eq.s32.totalorder %s38, 1
      %p250 = por %p248, %p249
      %p252 = scmp.ne.s32.totalorder %s237, %s251
      %p253 = scmp.eq.s32.totalorder %s38, 0
      %p254 = por %p252, %p253
      %s256 = sadd.s32 %s255, 1
      %p259 = scmp.eq.s32.totalorder %s32, 1
      %p260 = scmp.ne.s32.totalorder %s255, %s257
      %p261 = scmp.eq.s32.totalorder %s32, 0
      %p262 = por %p260, %p261
      %p263 = scmp.ne.s32.totalorder %s255, %s257
      %p264 = scmp.eq.s32.totalorder %s37, 1
      %p265 = por %p263, %p264
      %p266 = scmp.ne.s32.totalorder %s257, %s258
      %p267 = scmp.eq.s32.totalorder %s37, 0
      %p268 = por %p266, %p267
      %p269 = scmp.ne.s32.totalorder %s257, %s258
      %p270 = scmp.eq.s32.totalorder %s38, 1
      %p271 = por %p269, %p270
      %p273 = scmp.ne.s32.totalorder %s258, %s272
      %p274 = scmp.eq.s32.totalorder %s38, 0
      %p275 = por %p273, %p274
      %s277 = sadd.s32 %s276, 1
      %p280 = scmp.eq.s32.totalorder %s32, 1
      %p281 = scmp.ne.s32.totalorder %s276, %s278
      %p282 = scmp.eq.s32.totalorder %s32, 0
      %p283 = por %p281, %p282
      %p284 = scmp.ne.s32.totalorder %s276, %s278
      %p285 = scmp.eq.s32.totalorder %s37, 1
      %p286 = por %p284, %p285
      %p287 = scmp.ne.s32.totalorder %s278, %s279
      %p288 = scmp.eq.s32.totalorder %s37, 0
      %p289 = por %p287, %p288
      %p290 = scmp.ne.s32.totalorder %s278, %s279
      %p291 = scmp.eq.s32.totalorder %s38, 1
      %p292 = por %p290, %p291
      %p294 = scmp.ne.s32.totalorder %s279, %s293
      %p295 = scmp.eq.s32.totalorder %s38, 0
      %p296 = por %p294, %p295
      %s298 = sadd.s32 %s297, 1
      %p301 = scmp.eq.s32.totalorder %s32, 1
      %p302 = scmp.ne.s32.totalorder %s297, %s299
      %p303 = scmp.eq.s32.totalorder %s32, 0
      %p304 = por %p302, %p303
      %p305 = scmp.ne.s32.totalorder %s297, %s299
      %p306 = scmp.eq.s32.totalorder %s37, 1
      %p307 = por %p305, %p306
      %p308 = scmp.ne.s32.totalorder %s299, %s300
      %p309 = scmp.eq.s32.totalorder %s37, 0
      %p310 = por %p308, %p309
      %p311 = scmp.ne.s32.totalorder %s299, %s300
      %p312 = scmp.eq.s32.totalorder %s38, 1
      %p313 = por %p311, %p312
      %p315 = scmp.ne.s32.totalorder %s300, %s314
      %p316 = scmp.eq.s32.totalorder %s38, 0
      %p317 = por %p315, %p316
      %s319 = sadd.s32 %s318, 1
      %p322 = scmp.eq.s32.totalorder %s32, 1
      %p323 = scmp.ne.s32.totalorder %s318, %s320
      %p324 = scmp.eq.s32.totalorder %s32, 0
      %p325 = por %p323, %p324
      %p326 = scmp.ne.s32.totalorder %s318, %s320
      %p327 = scmp.eq.s32.totalorder %s37, 1
      %p328 = por %p326, %p327
      %p329 = scmp.ne.s32.totalorder %s320, %s321
      %p330 = scmp.eq.s32.totalorder %s37, 0
      %p331 = por %p329, %p330
      %p332 = scmp.ne.s32.totalorder %s320, %s321
      %p333 = scmp.eq.s32.totalorder %s38, 1
      %p334 = por %p332, %p333
      %p336 = scmp.ne.s32.totalorder %s321, %s335
      %p337 = scmp.eq.s32.totalorder %s38, 0
      %p338 = por %p336, %p337
      %s340 = sadd.s32 %s339, 1
      %p343 = scmp.eq.s32.totalorder %s32, 1
      %p344 = scmp.ne.s32.totalorder %s339, %s341
      %p345 = scmp.eq.s32.totalorder %s32, 0
      %p346 = por %p344, %p345
      %p347 = scmp.ne.s32.totalorder %s339, %s341
      %p348 = scmp.eq.s32.totalorder %s37, 1
      %p349 = por %p347, %p348
      %p350 = scmp.ne.s32.totalorder %s341, %s342
      %p351 = scmp.eq.s32.totalorder %s37, 0
      %p352 = por %p350, %p351
      %p353 = scmp.ne.s32.totalorder %s341, %s342
      %p354 = scmp.eq.s32.totalorder %s38, 1
      %p355 = por %p353, %p354
      %p357 = scmp.ne.s32.totalorder %s342, %s356
      %p358 = scmp.eq.s32.totalorder %s38, 0
      %p359 = por %p357, %p358
      %s361 = sadd.s32 %s360, 1
      %p364 = scmp.eq.s32.totalorder %s32, 1
      %p365 = scmp.ne.s32.totalorder %s360, %s362
      %p366 = scmp.eq.s32.totalorder %s32, 0
      %p367 = por %p365, %p366
      %p368 = scmp.ne.s32.totalorder %s360, %s362
      %p369 = scmp.eq.s32.totalorder %s37, 1
      %p370 = por %p368, %p369
      %p371 = scmp.ne.s32.totalorder %s362, %s363
      %p372 = scmp.eq.s32.totalorder %s37, 0
      %p373 = por %p371, %p372
      %p374 = scmp.ne.s32.totalorder %s362, %s363
      %p375 = scmp.eq.s32.totalorder %s38, 1
      %p376 = por %p374, %p375
      %p378 = scmp.ne.s32.totalorder %s363, %s377
      %p379 = scmp.eq.s32.totalorder %s38, 0
      %p380 = por %p378, %p379
      %s382 = sadd.s32 %s381, 1
      %p385 = scmp.eq.s32.totalorder %s32, 1
      %p386 = scmp.ne.s32.totalorder %s381, %s383
      %p387 = scmp.eq.s32.totalorder %s32, 0
      %p388 = por %p386, %p387
      %p389 = scmp.ne.s32.totalorder %s381, %s383
      %p390 = scmp.eq.s32.totalorder %s37, 1
      %p391 = por %p389, %p390
      %p392 = scmp.ne.s32.totalorder %s383, %s384
      %p393 = scmp.eq.s32.totalorder %s37, 0
      %p394 = por %p392, %p393
      %p395 = scmp.ne.s32.totalorder %s383, %s384
      %p396 = scmp.eq.s32.totalorder %s38, 1
      %p397 = por %p395, %p396
      %p399 = scmp.ne.s32.totalorder %s384, %s398
      %p400 = scmp.eq.s32.totalorder %s38, 0
      %p401 = por %p399, %p400
      %s403 = sadd.s32 %s402, 1
      %p406 = scmp.eq.s32.totalorder %s32, 1
      %p407 = scmp.ne.s32.totalorder %s402, %s404
      %p408 = scmp.eq.s32.totalorder %s32, 0
      %p409 = por %p407, %p408
      %p410 = scmp.ne.s32.totalorder %s402, %s404
      %p411 = scmp.eq.s32.totalorder %s37, 1
      %p412 = por %p410, %p411
      %p413 = scmp.ne.s32.totalorder %s404, %s405
      %p414 = scmp.eq.s32.totalorder %s37, 0
      %p415 = por %p413, %p414
      %p416 = scmp.ne.s32.totalorder %s404, %s405
      %p417 = scmp.eq.s32.totalorder %s38, 1
      %p418 = por %p416, %p417
      %p420 = scmp.ne.s32.totalorder %s405, %s419
      %p421 = scmp.eq.s32.totalorder %s38, 0
      %p422 = por %p420, %p421
      %s424 = sadd.s32 %s423, 1
      %p427 = scmp.eq.s32.totalorder %s32, 1
      %p428 = scmp.ne.s32.totalorder %s423, %s425
      %p429 = scmp.eq.s32.totalorder %s32, 0
      %p430 = por %p428, %p429
      %p431 = scmp.ne.s32.totalorder %s423, %s425
      %p432 = scmp.eq.s32.totalorder %s37, 1
      %p433 = por %p431, %p432
      %p434 = scmp.ne.s32.totalorder %s425, %s426
      %p435 = scmp.eq.s32.totalorder %s37, 0
      %p436 = por %p434, %p435
      %p437 = scmp.ne.s32.totalorder %s425, %s426
      %p438 = scmp.eq.s32.totalorder %s38, 1
      %p439 = por %p437, %p438
      %p441 = scmp.ne.s32.totalorder %s426, %s440
      %p442 = scmp.eq.s32.totalorder %s38, 0
      %p443 = por %p441, %p442
      %s445 = sadd.s32 %s444, 1
      %p448 = scmp.eq.s32.totalorder %s32, 1
      %p449 = scmp.ne.s32.totalorder %s444, %s446
      %p450 = scmp.eq.s32.totalorder %s32, 0
      %p451 = por %p449, %p450
      %p452 = scmp.ne.s32.totalorder %s444, %s446
      %p453 = scmp.eq.s32.totalorder %s37, 1
      %p454 = por %p452, %p453
      %p455 = scmp.ne.s32.totalorder %s446, %s447
      %p456 = scmp.eq.s32.totalorder %s37, 0
      %p457 = por %p455, %p456
      %p458 = scmp.ne.s32.totalorder %s446, %s447
      %p459 = scmp.eq.s32.totalorder %s38, 1
      %p460 = por %p458, %p459
      %p462 = scmp.ne.s32.totalorder %s447, %s461
      %p463 = scmp.eq.s32.totalorder %s38, 0
      %p464 = por %p462, %p463
      %s465 = ssub.s32 %s32, %s39
      %p466 = scmp.eq.s32.totalorder %s465, 0
      %s468 = sadd.s32 %s467, 1
      %s469 = scalar_select %p466, %s467, %s468
      %p472 = pneg %p466
      %p473 = scmp.eq.s32.totalorder %s32, 1
      %p474 = por %p472, %p473
      %p475 = scmp.ne.s32.totalorder %s467, %s470
      %p476 = scmp.eq.s32.totalorder %s32, 0
      %p477 = por %p475, %p476
      %p478 = scmp.ne.s32.totalorder %s467, %s470
      %p479 = scmp.eq.s32.totalorder %s37, 1
      %p480 = por %p478, %p479
      %p481 = scmp.ne.s32.totalorder %s470, %s471
      %p482 = scmp.eq.s32.totalorder %s37, 0
      %p483 = por %p481, %p482
      %p484 = scmp.ne.s32.totalorder %s470, %s471
      %p485 = scmp.eq.s32.totalorder %s38, 1
      %p486 = por %p484, %p485
      %p488 = scmp.ne.s32.totalorder %s471, %s487
      %p489 = scmp.eq.s32.totalorder %s38, 0
      %p490 = por %p488, %p489
      %p491 = scmp.le.s32.totalorder 1, %s32
      %p492 = scmp.lt.s32.totalorder %s32, 3
      %p493 = pnand %p491, %p492
      %p494 = pneg %p493
      // Predicated region
      $region9: #{_encode_impl.1} parent=5 // pred_check
        _
      $region10: #{_encode_impl.1} parent=5 // pred_check_branch
        %496 = sbr.rel (%p493) target = $region12
      $region11: #{_encode_impl.1} parent=5 // pred_region
        %s497 = ssub.s32 %s32, 1
        // Predicated region
        $region13: #{_encode_impl.1} parent=11 // pred_check
          %p498 = pneg %p79
        $region14: #{_encode_impl.1} parent=11 // pred_check_branch
          %500 = sbr.rel (%p498) target = $region16
        $region15: #{_encode_impl.1} parent=11 // pred_region
          %s502 = ssub.s32 128, 128
          %503 = vsyncadd [#allocation3], %s502
          %s505 = sshll.u32 [#allocation2], 4
          %s506 = int_to_ptr.vmem [resolvable:$true] %s505
          %508 = dma.hbm_to_vmem [thread:$0]  %s1, 128, %s506, [#allocation3]
        $region16: #{_encode_impl.1} parent=11 // pred_fallthru
          _
        // Predicated region
        $region17: #{_encode_impl.1} parent=11 // pred_check
          %p509 = pneg %p100
        $region18: #{_encode_impl.1} parent=11 // pred_check_branch
          %511 = sbr.rel (%p509) target = $region20
        $region19: #{_encode_impl.1} parent=11 // pred_region
          _
        $region20: #{_encode_impl.1} parent=11 // pred_fallthru
          _
        // Predicated region
        $region21: #{_encode_impl.1} parent=11 // pred_check
          %p512 = pneg %p121
        $region22: #{_encode_impl.1} parent=11 // pred_check_branch
          %514 = sbr.rel (%p512) target = $region24
        $region23: #{_encode_impl.1} parent=11 // pred_region
          _
        $region24: #{_encode_impl.1} parent=11 // pred_fallthru
          _
        // Predicated region
        $region25: #{_encode_impl.1} parent=11 // pred_check
          %p515 = pneg %p142
        $region26: #{_encode_impl.1} parent=11 // pred_check_branch
          %517 = sbr.rel (%p515) target = $region28
        $region27: #{_encode_impl.1} parent=11 // pred_region
          _
        $region28: #{_encode_impl.1} parent=11 // pred_fallthru
          _
        // Predicated region
        $region29: #{_encode_impl.1} parent=11 // pred_check
          %p518 = pneg %p163
        $region30: #{_encode_impl.1} parent=11 // pred_check_branch
          %520 = sbr.rel (%p518) target = $region32
        $region31: #{_encode_impl.1} parent=11 // pred_region
          _
        $region32: #{_encode_impl.1} parent=11 // pred_fallthru
          _
        // Predicated region
        $region33: #{_encode_impl.1} parent=11 // pred_check
          %p521 = pneg %p184
        $region34: #{_encode_impl.1} parent=11 // pred_check_branch
          %523 = sbr.rel (%p521) target = $region36
        $region35: #{_encode_impl.1} parent=11 // pred_region
          %s525 = ssub.s32 32, 32
          %526 = vsyncadd [#allocation5], %s525
          %s527 = sshll.u32 [#allocation4], 4
          %s528 = int_to_ptr.vmem [resolvable:$true] %s527
          %533 = dma.hbm_to_vmem [thread:$0]  %s6, 32, %s528, [#allocation5], 16, 16, 1
        $region36: #{_encode_impl.1} parent=11 // pred_fallthru
          _
        // Predicated region
        $region37: #{_encode_impl.1} parent=11 // pred_check
          %p534 = pneg %p205
        $region38: #{_encode_impl.1} parent=11 // pred_check_branch
          %536 = sbr.rel (%p534) target = $region40
        $region39: #{_encode_impl.1} parent=11 // pred_region
          _
        $region40: #{_encode_impl.1} parent=11 // pred_fallthru
          _
        // Predicated region
        $region41: #{_encode_impl.1} parent=11 // pred_check
          %p537 = pneg %p226
        $region42: #{_encode_impl.1} parent=11 // pred_check_branch
          %539 = sbr.rel (%p537) target = $region44
        $region43: #{_encode_impl.1} parent=11 // pred_region
          %s541 = ssub.s32 96, 96
          %542 = vsyncadd [#allocation5], %s541
          %s543 = sshll.u32 [#allocation6], 4
          %s544 = int_to_ptr.vmem [resolvable:$true] %s543
          %549 = dma.hbm_to_vmem [thread:$0]  %s8, 96, %s544, [#allocation5], 48, 48, 3
        $region44: #{_encode_impl.1} parent=11 // pred_fallthru
          _
        // Predicated region
        $region45: #{_encode_impl.1} parent=11 // pred_check
          %p550 = pneg %p247
        $region46: #{_encode_impl.1} parent=11 // pred_check_branch
          %552 = sbr.rel (%p550) target = $region48
        $region47: #{_encode_impl.1} parent=11 // pred_region
          _
        $region48: #{_encode_impl.1} parent=11 // pred_fallthru
          _
        // Predicated region
        $region49: #{_encode_impl.1} parent=11 // pred_check
          %p553 = pneg %p268
        $region50: #{_encode_impl.1} parent=11 // pred_check_branch
          %555 = sbr.rel (%p553) target = $region52
        $region51: #{_encode_impl.1} parent=11 // pred_region
          %s557 = ssub.s32 32, 32
          %558 = vsyncadd [#allocation8], %s557
          %s559 = sshll.u32 [#allocation7], 4
          %s560 = int_to_ptr.vmem [resolvable:$true] %s559
          %565 = dma.hbm_to_vmem [thread:$0]  %s10, 32, %s560, [#allocation8], 16, 16, 1
        $region52: #{_encode_impl.1} parent=11 // pred_fallthru
          _
        // Predicated region
        $region53: #{_encode_impl.1} parent=11 // pred_check
          %p566 = pneg %p289
        $region54: #{_encode_impl.1} parent=11 // pred_check_branch
          %568 = sbr.rel (%p566) target = $region56
        $region55: #{_encode_impl.1} parent=11 // pred_region
          %s570 = ssub.s32 32, 32
          %571 = vsyncadd [#allocation8], %s570
          %s572 = sshll.u32 [#allocation9], 4
          %s573 = int_to_ptr.vmem [resolvable:$true] %s572
          %578 = dma.hbm_to_vmem [thread:$0]  %s11, 32, %s573, [#allocation8], 16, 16, 1
        $region56: #{_encode_impl.1} parent=11 // pred_fallthru
          _
        // Predicated region
        $region57: #{_encode_impl.1} parent=11 // pred_check
          %p579 = pneg %p310
        $region58: #{_encode_impl.1} parent=11 // pred_check_branch
          %581 = sbr.rel (%p579) target = $region60
        $region59: #{_encode_impl.1} parent=11 // pred_region
          %s583 = ssub.s32 32, 32
          %584 = vsyncadd [#allocation11], %s583
          %s585 = sshll.u32 [#allocation10], 4
          %s586 = int_to_ptr.vmem [resolvable:$true] %s585
          %591 = dma.hbm_to_vmem [thread:$0]  %s12, 32, %s586, [#allocation11], 16, 16, 1
        $region60: #{_encode_impl.1} parent=11 // pred_fallthru
          _
        // Predicated region
        $region61: #{_encode_impl.1} parent=11 // pred_check
          %p592 = pneg %p331
        $region62: #{_encode_impl.1} parent=11 // pred_check_branch
          %594 = sbr.rel (%p592) target = $region64
        $region63: #{_encode_impl.1} parent=11 // pred_region
          _
        $region64: #{_encode_impl.1} parent=11 // pred_fallthru
          _
        // Predicated region
        $region65: #{_encode_impl.1} parent=11 // pred_check
          %p595 = pneg %p352
        $region66: #{_encode_impl.1} parent=11 // pred_check_branch
          %597 = sbr.rel (%p595) target = $region68
        $region67: #{_encode_impl.1} parent=11 // pred_region
          %s599 = ssub.s32 32, 32
          %600 = vsyncadd [#allocation11], %s599
          %s601 = sshll.u32 [#allocation12], 4
          %s602 = int_to_ptr.vmem [resolvable:$true] %s601
          %607 = dma.hbm_to_vmem [thread:$0]  %s14, 32, %s602, [#allocation11], 16, 16, 1
        $region68: #{_encode_impl.1} parent=11 // pred_fallthru
          _
        // Predicated region
        $region69: #{_encode_impl.1} parent=11 // pred_check
          %p608 = pneg %p373
        $region70: #{_encode_impl.1} parent=11 // pred_check_branch
          %610 = sbr.rel (%p608) target = $region72
        $region71: #{_encode_impl.1} parent=11 // pred_region
          %s612 = ssub.s32 2048, 2048
          %613 = vsyncadd [#allocation14], %s612
          %s614 = sshll.u32 [#allocation13], 4
          %s615 = int_to_ptr.vmem [resolvable:$true] %s614
          %620 = dma.hbm_to_vmem [thread:$0]  %s15, 2048, %s615, [#allocation14], 64, 64, 4
        $region72: #{_encode_impl.1} parent=11 // pred_fallthru
          _
        // Predicated region
        $region73: #{_encode_impl.1} parent=11 // pred_check
          %p621 = pneg %p394
        $region74: #{_encode_impl.1} parent=11 // pred_check_branch
          %623 = sbr.rel (%p621) target = $region76
        $region75: #{_encode_impl.1} parent=11 // pred_region
          %s625 = ssub.s32 32, 32
          %626 = vsyncadd [#allocation14], %s625
          %s627 = sshll.u32 [#allocation15], 4
          %s628 = int_to_ptr.vmem [resolvable:$true] %s627
          %633 = dma.hbm_to_vmem [thread:$0]  %s16, 32, %s628, [#allocation14], 16, 16, 1
        $region76: #{_encode_impl.1} parent=11 // pred_fallthru
          _
        // Predicated region
        $region77: #{_encode_impl.1} parent=11 // pred_check
          %p634 = pneg %p415
        $region78: #{_encode_impl.1} parent=11 // pred_check_branch
          %636 = sbr.rel (%p634) target = $region80
        $region79: #{_encode_impl.1} parent=11 // pred_region
          %s638 = ssub.s32 16, 16
          %639 = vsyncadd [#allocation17], %s638
          %s641 = sshll.u32 [#allocation16], 4
          %s642 = int_to_ptr.vmem [resolvable:$true] %s641
          %644 = dma.hbm_to_vmem [thread:$0]  %s17, 16, %s642, [#allocation17]
        $region80: #{_encode_impl.1} parent=11 // pred_fallthru
          _
        // Predicated region
        $region81: #{_encode_impl.1} parent=11 // pred_check
          %p645 = pneg %p436
        $region82: #{_encode_impl.1} parent=11 // pred_check_branch
          %647 = sbr.rel (%p645) target = $region84
        $region83: #{_encode_impl.1} parent=11 // pred_region
          %s649 = ssub.s32 16, 16
          %650 = vsyncadd [#allocation17], %s649
          %s652 = sshll.u32 [#allocation18], 4
          %s653 = int_to_ptr.vmem [resolvable:$true] %s652
          %655 = dma.hbm_to_vmem [thread:$0]  %s18, 16, %s653, [#allocation17]
        $region84: #{_encode_impl.1} parent=11 // pred_fallthru
          _
        // Predicated region
        $region85: #{_encode_impl.1} parent=11 // pred_check
          %p656 = pneg %p457
        $region86: #{_encode_impl.1} parent=11 // pred_check_branch
          %658 = sbr.rel (%p656) target = $region88
        $region87: #{_encode_impl.1} parent=11 // pred_region
          _
        $region88: #{_encode_impl.1} parent=11 // pred_fallthru
          _
      $region12: #{_encode_impl.1} parent=5 // pred_fallthru
        _
      %p659 = scmp.lt.s32.totalorder %s32, 2
      // Predicated region
      $region89: #{_encode_impl.1} parent=5 // pred_check
        %p660 = pneg %p659
      $region90: #{_encode_impl.1} parent=5 // pred_check_branch
        %662 = sbr.rel (%p660) target = $region92
      $region91: #{_encode_impl.1} parent=5 // pred_region
        // Predicated region
        $region93: #{_encode_impl.1} parent=91 // pred_check
          %p663 = pneg %p52
        $region94: #{_encode_impl.1} parent=91 // pred_check_branch
          %665 = sbr.rel (%p663) target = $region96
        $region95: #{_encode_impl.1} parent=91 // pred_region
          %p666 = scmp.lt.s32.totalorder %s32, 1
          %s667 = scalar_select %p666, %s32, 1
          %s668 = smul.addr %s667, 2
          %s669 = smul.addr %s668, 4
          %s670 = scalar_lea.vmem %s0, %s669
        $region96: #{_encode_impl.1} parent=91 // pred_fallthru
          _
      $region92: #{_encode_impl.1} parent=5 // pred_fallthru
        _
      %p671 = scmp.le.s32.totalorder 1, %s32
      %p672 = scmp.lt.s32.totalorder %s32, 3
      %p673 = pnand %p671, %p672
      %p674 = pneg %p673
      // Predicated region
      $region97: #{_encode_impl.1} parent=5 // pred_check
        _
      $region98: #{_encode_impl.1} parent=5 // pred_check_branch
        %676 = sbr.rel (%p673) target = $region100
      $region99: #{_encode_impl.1} parent=5 // pred_region
        %s677 = ssub.s32 %s32, 1
        // Predicated region
        $region101: #{_encode_impl.1} parent=99 // pred_check
          %p678 = pneg %p79
        $region102: #{_encode_impl.1} parent=99 // pred_check_branch
          %680 = sbr.rel (%p678) target = $region104
        $region103: #{_encode_impl.1} parent=99 // pred_region
          %681 = dma.done [#allocation3], 128
        $region104: #{_encode_impl.1} parent=99 // pred_fallthru
          _
        // Predicated region
        $region105: #{_encode_impl.1} parent=99 // pred_check
          %p682 = pneg %p184
        $region106: #{_encode_impl.1} parent=99 // pred_check_branch
          %684 = sbr.rel (%p682) target = $region108
        $region107: #{_encode_impl.1} parent=99 // pred_region
          %685 = dma.done [#allocation5], 32
        $region108: #{_encode_impl.1} parent=99 // pred_fallthru
          _
        // Predicated region
        $region109: #{_encode_impl.1} parent=99 // pred_check
          %p686 = pneg %p226
        $region110: #{_encode_impl.1} parent=99 // pred_check_branch
          %688 = sbr.rel (%p686) target = $region112
        $region111: #{_encode_impl.1} parent=99 // pred_region
          %689 = dma.done [#allocation5], 96
        $region112: #{_encode_impl.1} parent=99 // pred_fallthru
          _
        // Predicated region
        $region113: #{_encode_impl.1} parent=99 // pred_check
          %p690 = pneg %p268
        $region114: #{_encode_impl.1} parent=99 // pred_check_branch
          %692 = sbr.rel (%p690) target = $region116
        $region115: #{_encode_impl.1} parent=99 // pred_region
          %693 = dma.done [#allocation8], 32
        $region116: #{_encode_impl.1} parent=99 // pred_fallthru
          _
        // Predicated region
        $region117: #{_encode_impl.1} parent=99 // pred_check
          %p694 = pneg %p289
        $region118: #{_encode_impl.1} parent=99 // pred_check_branch
          %696 = sbr.rel (%p694) target = $region120
        $region119: #{_encode_impl.1} parent=99 // pred_region
          %697 = dma.done [#allocation8], 32
        $region120: #{_encode_impl.1} parent=99 // pred_fallthru
          _
        // Predicated region
        $region121: #{_encode_impl.1} parent=99 // pred_check
          %p698 = pneg %p310
        $region122: #{_encode_impl.1} parent=99 // pred_check_branch
          %700 = sbr.rel (%p698) target = $region124
        $region123: #{_encode_impl.1} parent=99 // pred_region
          %701 = dma.done [#allocation11], 32
        $region124: #{_encode_impl.1} parent=99 // pred_fallthru
          _
        // Predicated region
        $region125: #{_encode_impl.1} parent=99 // pred_check
          %p702 = pneg %p352
        $region126: #{_encode_impl.1} parent=99 // pred_check_branch
          %704 = sbr.rel (%p702) target = $region128
        $region127: #{_encode_impl.1} parent=99 // pred_region
          %705 = dma.done [#allocation11], 32
        $region128: #{_encode_impl.1} parent=99 // pred_fallthru
          _
        // Predicated region
        $region129: #{_encode_impl.1} parent=99 // pred_check
          %p706 = pneg %p373
        $region130: #{_encode_impl.1} parent=99 // pred_check_branch
          %708 = sbr.rel (%p706) target = $region132
        $region131: #{_encode_impl.1} parent=99 // pred_region
          %709 = dma.done [#allocation14], 2048
        $region132: #{_encode_impl.1} parent=99 // pred_fallthru
          _
        // Predicated region
        $region133: #{_encode_impl.1} parent=99 // pred_check
          %p710 = pneg %p394
        $region134: #{_encode_impl.1} parent=99 // pred_check_branch
          %712 = sbr.rel (%p710) target = $region136
        $region135: #{_encode_impl.1} parent=99 // pred_region
          %713 = dma.done [#allocation14], 32
        $region136: #{_encode_impl.1} parent=99 // pred_fallthru
          _
        // Predicated region
        $region137: #{_encode_impl.1} parent=99 // pred_check
          %p714 = pneg %p415
        $region138: #{_encode_impl.1} parent=99 // pred_check_branch
          %716 = sbr.rel (%p714) target = $region140
        $region139: #{_encode_impl.1} parent=99 // pred_region
          %717 = dma.done [#allocation17], 16
        $region140: #{_encode_impl.1} parent=99 // pred_fallthru
          _
        // Predicated region
        $region141: #{_encode_impl.1} parent=99 // pred_check
          %p718 = pneg %p436
        $region142: #{_encode_impl.1} parent=99 // pred_check_branch
          %720 = sbr.rel (%p718) target = $region144
        $region143: #{_encode_impl.1} parent=99 // pred_region
          %721 = dma.done [#allocation17], 16
        $region144: #{_encode_impl.1} parent=99 // pred_fallthru
          _
        %p722 = scmp.lt.s32.totalorder %s37, 1
        %s723 = scalar_select %p722, %s37, 1
        %s724 = smul.addr %s723, 2
        %s725 = smul.addr %s724, 4
        %s726 = scalar_lea.vmem %s0, %s725
        %p727 = pneg %p58
        %p728 = pneg %p55
        %p729 = pneg %p79
        %p730 = pneg %p76
        %p731 = pneg %p100
        %p732 = pneg %p97
        %p733 = pneg %p121
        %p734 = pneg %p118
        %p735 = pneg %p142
        %p736 = pneg %p139
        %p737 = pneg %p163
        %p738 = pneg %p160
        %p739 = pneg %p184
        %p740 = pneg %p181
        %p741 = pneg %p205
        %p742 = pneg %p202
        %p743 = pneg %p226
        %p744 = pneg %p223
        %p745 = pneg %p247
        %p746 = pneg %p244
        %p747 = pneg %p268
        %p748 = pneg %p265
        %p749 = pneg %p289
        %p750 = pneg %p286
        %p751 = pneg %p310
        %p752 = pneg %p307
        %p753 = pneg %p331
        %p754 = pneg %p328
        %p755 = pneg %p352
        %p756 = pneg %p349
        %p757 = pneg %p373
        %p758 = pneg %p370
        %p759 = pneg %p394
        %p760 = pneg %p391
        %p761 = pneg %p415
        %p762 = pneg %p412
        %p763 = pneg %p436
        %p764 = pneg %p433
        %p765 = pneg %p457
        %p766 = pneg %p454
        %p767 = pneg %p483
        %p768 = pneg %p480
        %p769 = scmp.lt.s32.totalorder %s37, 1
        %s770 = scalar_select %p769, %s37, 1
        %s771 = smul.addr %s770, 8
        %s772 = scalar_lea.vmem %s20, %s771
        %p773 = scmp.lt.s32.totalorder %s37, 1
        %s774 = scalar_select %p773, %s37, 1
        %s775 = smul.addr %s774, 2
        %s776 = smul.addr %s775, 4
        %s777 = scalar_lea.vmem %s0, %s776
        %p778 = scmp.lt.s32.totalorder %s37, 1
        %s779 = scalar_select %p778, %s37, 1
        %s780 = smul.addr %s779, 8
        %s781 = scalar_lea.vmem %s20, %s780
        %v783 = vlaneseq
        %v784 = vand.u32 %v783, 127
        %vm785 = vcmp.lt.s32.totalorder %v784, 32
        %v786 = vsel %vm785, 1, 0
        %v787 = vcvt.s32.f32 %v786
        %vm788 = vcmp.ge.s32.totalorder %v784, 0
        %vm789 = vcmp.lt.s32.totalorder %v784, 16
        %vm790 = vmand %vm788, %vm789
        %v791 = vsel %vm790, 1, 0
        %v792 = vcvt.s32.f32 %v791
        %vm793 = vcmp.ge.s32.totalorder %v784, 16
        %vm794 = vmand %vm793, %vm785
        %v795 = vsel %vm794, 1, 0
        %v796 = vcvt.s32.f32 %v795
        %vm797 = vcmp.lt.s32.totalorder %v784, 5
        %v798 = vld [vmem:[%s777] sm:$0xff]
        %v799 = vld [vmem:[%s2] sm:$0xf]
        %v800 = vld [vmem:[%s2 + $0x4] sm:$0xf]
        %v801 = vld [vmem:[%s2 + $0x8] sm:$0xf]
        %v802 = vld [vmem:[%s2 + $0xc] sm:$0xf]
        %v803 = vld [vmem:[%s2 + $0x10] sm:$0xf]
        %v804 = vld [vmem:[%s2 + $0x14] sm:$0xf]
        %v805 = vld [vmem:[%s2 + $0x18] sm:$0xf]
        %v806 = vld [vmem:[%s2 + $0x1c] sm:$0xf]
        %v807 = vld [vmem:[%s2 + $0x20] sm:$0xf]
        %v808 = vld [vmem:[%s2 + $0x24] sm:$0xf]
        %v809 = vld [vmem:[%s2 + $0x28] sm:$0xf]
        %v810 = vld [vmem:[%s2 + $0x2c] sm:$0xf]
        %v811 = vld [vmem:[%s2 + $0x30] sm:$0xf]
        %v812 = vld [vmem:[%s2 + $0x34] sm:$0xf]
        %v813 = vld [vmem:[%s2 + $0x38] sm:$0xf]
        %v814 = vld [vmem:[%s2 + $0x3c] sm:$0xf]
        %v815 = vld [vmem:[%s2 + $0x40] sm:$0xf]
        %v816 = vld [vmem:[%s2 + $0x44] sm:$0xf]
        %v817 = vld [vmem:[%s2 + $0x48] sm:$0xf]
        %v818 = vld [vmem:[%s2 + $0x4c] sm:$0xf]
        %v819 = vld [vmem:[%s2 + $0x50] sm:$0xf]
        %v820 = vld [vmem:[%s2 + $0x54] sm:$0xf]
        %v821 = vld [vmem:[%s2 + $0x58] sm:$0xf]
        %v822 = vld [vmem:[%s2 + $0x5c] sm:$0xf]
        %v823 = vld [vmem:[%s2 + $0x60] sm:$0xf]
        %v824 = vld [vmem:[%s2 + $0x64] sm:$0xf]
        %v825 = vld [vmem:[%s2 + $0x68] sm:$0xf]
        %v826 = vld [vmem:[%s2 + $0x6c] sm:$0xf]
        %v827 = vld [vmem:[%s2 + $0x70] sm:$0xf]
        %v828 = vld [vmem:[%s2 + $0x74] sm:$0xf]
        %v829 = vld [vmem:[%s2 + $0x78] sm:$0xf]
        %v830 = vld [vmem:[%s2 + $0x7c] sm:$0xf]
        %v831 = vld [vmem:[#allocation2] sm:$0xff]
        %v833 = vunpack.c.l.b16 %v798
        %v834 = vunpack.c.h.b16 %v798
        %v835 = vpack.c.b16 %v833, %v833
        %v836 = vpack.c.b16 %v834, %v834
        %v871 = vunpack.c.l.b16 %v799
        %v872 = vunpack.c.l.b16 %v800
        %v873 = vunpack.c.l.b16 %v801
        %v874 = vunpack.c.l.b16 %v802
        %v875 = vunpack.c.l.b16 %v803
        %v876 = vunpack.c.l.b16 %v804
        %v877 = vunpack.c.l.b16 %v805
        %v878 = vunpack.c.l.b16 %v806
        %v879 = vunpack.c.l.b16 %v807
        %v880 = vunpack.c.l.b16 %v808
        %v881 = vunpack.c.l.b16 %v809
        %v882 = vunpack.c.l.b16 %v810
        %v883 = vunpack.c.l.b16 %v811
        %v884 = vunpack.c.l.b16 %v812
        %v885 = vunpack.c.l.b16 %v813
        %v886 = vunpack.c.l.b16 %v814
        %v887 = vunpack.c.l.b16 %v815
        %v888 = vunpack.c.l.b16 %v816
        %v889 = vunpack.c.l.b16 %v817
        %v890 = vunpack.c.l.b16 %v818
        %v891 = vunpack.c.l.b16 %v819
        %v892 = vunpack.c.l.b16 %v820
        %v893 = vunpack.c.l.b16 %v821
        %v894 = vunpack.c.l.b16 %v822
        %v895 = vunpack.c.l.b16 %v823
        %v896 = vunpack.c.l.b16 %v824
        %v897 = vunpack.c.l.b16 %v825
        %v898 = vunpack.c.l.b16 %v826
        %v899 = vunpack.c.l.b16 %v827
        %v900 = vunpack.c.l.b16 %v828
        %v901 = vunpack.c.l.b16 %v829
        %v902 = vunpack.c.l.b16 %v830
        %v903 = vpack.c.b16 %v872, %v871
        %v904 = vpack.c.b16 %v874, %v873
        %v905 = vpack.c.b16 %v876, %v875
        %v906 = vpack.c.b16 %v878, %v877
        %v907 = vpack.c.b16 %v880, %v879
        %v908 = vpack.c.b16 %v882, %v881
        %v909 = vpack.c.b16 %v884, %v883
        %v910 = vpack.c.b16 %v886, %v885
        %v911 = vpack.c.b16 %v888, %v887
        %v912 = vpack.c.b16 %v890, %v889
        %v913 = vpack.c.b16 %v892, %v891
        %v914 = vpack.c.b16 %v894, %v893
        %v915 = vpack.c.b16 %v896, %v895
        %v916 = vpack.c.b16 %v898, %v897
        %v917 = vpack.c.b16 %v900, %v899
        %v918 = vpack.c.b16 %v902, %v901
        %935 = vmatprep.subr.bf16.mxu0 0
        %936 = vmatpush1.bf16.msra.mxu0 %v903
        %937 = vmatprep.subr.bf16.mxu0 0
        %938 = vmatpush1.bf16.msra.mxu0 %v904
        %939 = vmatprep.subr.bf16.mxu0 0
        %940 = vmatpush1.bf16.msra.mxu0 %v905
        %941 = vmatprep.subr.bf16.mxu0 0
        %942 = vmatpush1.bf16.msra.mxu0 %v906
        %943 = vmatprep.subr.bf16.mxu0 0
        %944 = vmatpush1.bf16.msra.mxu0 %v907
        %945 = vmatprep.subr.bf16.mxu0 0
        %946 = vmatpush1.bf16.msra.mxu0 %v908
        %947 = vmatprep.subr.bf16.mxu0 0
        %948 = vmatpush1.bf16.msra.mxu0 %v909
        %949 = vmatprep.subr.bf16.mxu0 0
        %950 = vmatpush1.bf16.msra.mxu0 %v910
        %951 = vmatprep.subr.bf16.mxu0 0
        %952 = vmatpush1.bf16.msra.mxu0 %v911
        %953 = vmatprep.subr.bf16.mxu0 0
        %954 = vmatpush1.bf16.msra.mxu0 %v912
        %955 = vmatprep.subr.bf16.mxu0 0
        %956 = vmatpush1.bf16.msra.mxu0 %v913
        %957 = vmatprep.subr.bf16.mxu0 0
        %958 = vmatpush1.bf16.msra.mxu0 %v914
        %959 = vmatprep.subr.bf16.mxu0 0
        %960 = vmatpush1.bf16.msra.mxu0 %v915
        %961 = vmatprep.subr.bf16.mxu0 0
        %962 = vmatpush1.bf16.msra.mxu0 %v916
        %963 = vmatprep.subr.bf16.mxu0 0
        %964 = vmatpush1.bf16.msra.mxu0 %v917
        %965 = vmatprep.subr.bf16.mxu0 0
        %966 = vmatpush1.bf16.msra.mxu0 %v918
        %967 = vmatprep.mubr.bf16.mxu0 %v836
        %968 = vmatmul.mubr.bf16.gmra.mrb[0].mxu0 %v835
        %v969 = vpop.f32.mrb[0].mxu0
        %v970 = vadd.f32 %v831, %v969
        %v971 = vpop.f32.mrb[0].mxu0
        %v972 = vpop.f32.mrb[0].mxu0
        %v973 = vpop.f32.mrb[0].mxu0
        %974 = vdwg.mxu0
        %v975 = vld [vmem:[%s3] sm:$0x1]
        %v976 = vld [vmem:[%s4] sm:$0x1]
        %977 = vadd.xlane.f32.xlu0 %v970
        %v978 = vpop.xlane.xlu0 %977
        %v979 = vmul.f32 %v978, 0.03125
        %v980 = vsub.f32 %v970, %v979
        %v981 = vmul.f32 %v980, %v787
        %v982 = vmul.f32 %v981, %v981
        %983 = vadd.xlane.f32.xlu0 %v982
        %v984 = vpop.xlane.xlu0 %983
        %v985 = vmul.f32 %v984, 0.03125
        %v986 = vadd.f32 %v985, 1e-05
        %v987 = vrsqrt.pop %v986
        %v988 = vmul.f32 %v981, %v987
        %v990 = vlaneseq
        %v991 = vshrl.u32 %v990, 7
        %v992 = vsub.s32 0, %v991
        %v993 = vrot.slane %v975, %v992
        %v995 = vmul.f32 %v988, %v993
        %v997 = vlaneseq
        %v998 = vshrl.u32 %v997, 7
        %v999 = vsub.s32 0, %v998
        %v1000 = vrot.slane %v976, %v999
        %v1002 = vadd.f32 %v995, %v1000
        %v1003 = vld [vmem:[%s5] sm:$0x1]
        %v1004 = vld [vmem:[#allocation4] sm:$0x1]
        %1005 = vadd.xlane.f32.xlu0 %v1002
        %v1006 = vpop.xlane.xlu0 %1005
        %v1007 = vmul.f32 %v1006, 0.03125
        %v1008 = vsub.f32 %v1002, %v1007
        %v1009 = vmul.f32 %v1008, %v787
        %v1010 = vmul.f32 %v1009, %v1009
        %1011 = vadd.xlane.f32.xlu0 %v1010
        %v1012 = vpop.xlane.xlu0 %1011
        %v1013 = vmul.f32 %v1012, 0.03125
        %v1014 = vadd.f32 %v1013, 1e-05
        %v1015 = vrsqrt.pop %v1014
        %v1016 = vmul.f32 %v1009, %v1015
        %v1018 = vlaneseq
        %v1019 = vshrl.u32 %v1018, 7
        %v1020 = vsub.s32 0, %v1019
        %v1021 = vrot.slane %v1003, %v1020
        %v1023 = vmul.f32 %v1016, %v1021
        %v1025 = vlaneseq
        %v1026 = vshrl.u32 %v1025, 7
        %v1027 = vsub.s32 0, %v1026
        %v1028 = vrot.slane %v1004, %v1027
        %v1030 = vadd.f32 %v1023, %v1028
        %v1031 = vld [vmem:[%s7] sm:$0xff]
        %v1032 = vld [vmem:[%s7 + $0x8] sm:$0xf]
        %v1033 = vld [vmem:[%s7 + $0xc] sm:$0xff]
        %v1034 = vld [vmem:[%s7 + $0x14] sm:$0xf]
        %v1035 = vld [vmem:[%s7 + $0x18] sm:$0xff]
        %v1036 = vld [vmem:[%s7 + $0x20] sm:$0xf]
        %v1037 = vld [vmem:[%s7 + $0x24] sm:$0xff]
        %v1038 = vld [vmem:[%s7 + $0x2c] sm:$0xf]
        %v1039 = vld [vmem:[%s7 + $0x30] sm:$0xff]
        %v1040 = vld [vmem:[%s7 + $0x38] sm:$0xf]
        %v1041 = vld [vmem:[%s7 + $0x3c] sm:$0xff]
        %v1042 = vld [vmem:[%s7 + $0x44] sm:$0xf]
        %v1043 = vld [vmem:[%s7 + $0x48] sm:$0xff]
        %v1044 = vld [vmem:[%s7 + $0x50] sm:$0xf]
        %v1045 = vld [vmem:[%s7 + $0x54] sm:$0xff]
        %v1046 = vld [vmem:[%s7 + $0x5c] sm:$0xf]
        %v1047 = vld [vmem:[%s7 + $0x60] sm:$0xff]
        %v1048 = vld [vmem:[%s7 + $0x68] sm:$0xf]
        %v1049 = vld [vmem:[%s7 + $0x6c] sm:$0xff]
        %v1050 = vld [vmem:[%s7 + $0x74] sm:$0xf]
        %v1051 = vld [vmem:[%s7 + $0x78] sm:$0xff]
        %v1052 = vld [vmem:[%s7 + $0x80] sm:$0xf]
        %v1053 = vld [vmem:[%s7 + $0x84] sm:$0xff]
        %v1054 = vld [vmem:[%s7 + $0x8c] sm:$0xf]
        %v1055 = vld [vmem:[%s7 + $0x90] sm:$0xff]
        %v1056 = vld [vmem:[%s7 + $0x98] sm:$0xf]
        %v1057 = vld [vmem:[%s7 + $0x9c] sm:$0xff]
        %v1058 = vld [vmem:[%s7 + $0xa4] sm:$0xf]
        %v1059 = vld [vmem:[%s7 + $0xa8] sm:$0xff]
        %v1060 = vld [vmem:[%s7 + $0xb0] sm:$0xf]
        %v1061 = vld [vmem:[%s7 + $0xb4] sm:$0xff]
        %v1062 = vld [vmem:[%s7 + $0xbc] sm:$0xf]
        %v1063 = vpack.c.bf16 %v1030, %v1030
        %v1064 = vld [vmem:[#allocation6] sm:$0x7]
        %v1066 = vlaneseq
        %v1067 = vshrl.u32 %v1066, 7
        %v1068 = vsub.s32 0, %v1067
        %v1069 = vrot.slane %v1064, %v1068
        %v1070 = vlaneseq
        %v1071 = vshrl.u32 %v1070, 7
        %v1072 = vsub.s32 1, %v1071
        %v1073 = vrot.slane %v1064, %v1072
        %v1074 = vlaneseq
        %v1075 = vshrl.u32 %v1074, 7
        %v1076 = vsub.s32 2, %v1075
        %v1077 = vrot.slane %v1064, %v1076
        %v1113 = vunpack.c.l.b16 %v1031
        %v1114 = vunpack.c.h.b16 %v1031
        %v1115 = vunpack.c.l.b16 %v1032
        %v1116 = vunpack.c.l.b16 %v1033
        %v1117 = vunpack.c.h.b16 %v1033
        %v1118 = vunpack.c.l.b16 %v1034
        %v1119 = vunpack.c.l.b16 %v1035
        %v1120 = vunpack.c.h.b16 %v1035
        %v1121 = vunpack.c.l.b16 %v1036
        %v1122 = vunpack.c.l.b16 %v1037
        %v1123 = vunpack.c.h.b16 %v1037
        %v1124 = vunpack.c.l.b16 %v1038
        %v1125 = vunpack.c.l.b16 %v1039
        %v1126 = vunpack.c.h.b16 %v1039
        %v1127 = vunpack.c.l.b16 %v1040
        %v1128 = vunpack.c.l.b16 %v1041
        %v1129 = vunpack.c.h.b16 %v1041
        %v1130 = vunpack.c.l.b16 %v1042
        %v1131 = vunpack.c.l.b16 %v1043
        %v1132 = vunpack.c.h.b16 %v1043
        %v1133 = vunpack.c.l.b16 %v1044
        %v1134 = vunpack.c.l.b16 %v1045
        %v1135 = vunpack.c.h.b16 %v1045
        %v1136 = vunpack.c.l.b16 %v1046
        %v1137 = vunpack.c.l.b16 %v1047
        %v1138 = vunpack.c.h.b16 %v1047
        %v1139 = vunpack.c.l.b16 %v1048
        %v1140 = vunpack.c.l.b16 %v1049
        %v1141 = vunpack.c.h.b16 %v1049
        %v1142 = vunpack.c.l.b16 %v1050
        %v1143 = vunpack.c.l.b16 %v1051
        %v1144 = vunpack.c.h.b16 %v1051
        %v1145 = vunpack.c.l.b16 %v1052
        %v1146 = vunpack.c.l.b16 %v1053
        %v1147 = vunpack.c.h.b16 %v1053
        %v1148 = vunpack.c.l.b16 %v1054
        %v1149 = vunpack.c.l.b16 %v1055
        %v1150 = vunpack.c.h.b16 %v1055
        %v1151 = vunpack.c.l.b16 %v1056
        %v1152 = vunpack.c.l.b16 %v1057
        %v1153 = vunpack.c.h.b16 %v1057
        %v1154 = vunpack.c.l.b16 %v1058
        %v1155 = vunpack.c.l.b16 %v1059
        %v1156 = vunpack.c.h.b16 %v1059
        %v1157 = vunpack.c.l.b16 %v1060
        %v1158 = vunpack.c.l.b16 %v1061
        %v1159 = vunpack.c.h.b16 %v1061
        %v1160 = vunpack.c.l.b16 %v1062
        %v1161 = vpack.c.b16 %v1116, %v1113
        %v1162 = vpack.c.b16 %v1117, %v1114
        %v1163 = vpack.c.b16 %v1118, %v1115
        %v1164 = vpack.c.b16 %v1122, %v1119
        %v1165 = vpack.c.b16 %v1123, %v1120
        %v1166 = vpack.c.b16 %v1124, %v1121
        %v1167 = vpack.c.b16 %v1128, %v1125
        %v1168 = vpack.c.b16 %v1129, %v1126
        %v1169 = vpack.c.b16 %v1130, %v1127
        %v1170 = vpack.c.b16 %v1134, %v1131
        %v1171 = vpack.c.b16 %v1135, %v1132
        %v1172 = vpack.c.b16 %v1136, %v1133
        %v1173 = vpack.c.b16 %v1140, %v1137
        %v1174 = vpack.c.b16 %v1141, %v1138
        %v1175 = vpack.c.b16 %v1142, %v1139
        %v1176 = vpack.c.b16 %v1146, %v1143
        %v1177 = vpack.c.b16 %v1147, %v1144
        %v1178 = vpack.c.b16 %v1148, %v1145
        %v1179 = vpack.c.b16 %v1152, %v1149
        %v1180 = vpack.c.b16 %v1153, %v1150
        %v1181 = vpack.c.b16 %v1154, %v1151
        %v1182 = vpack.c.b16 %v1158, %v1155
        %v1183 = vpack.c.b16 %v1159, %v1156
        %v1184 = vpack.c.b16 %v1160, %v1157
        %1209 = vmatprep.subr.bf16.mxu0 %v1162
        %1210 = vmatpush1.bf16.msra.mxu0 %v1161
        %1211 = vmatprep.subr.bf16.mxu0 %v1165
        %1212 = vmatpush1.bf16.msra.mxu0 %v1164
        %1213 = vmatprep.subr.bf16.mxu0 %v1168
        %1214 = vmatpush1.bf16.msra.mxu0 %v1167
        %1215 = vmatprep.subr.bf16.mxu0 %v1171
        %1216 = vmatpush1.bf16.msra.mxu0 %v1170
        %1217 = vmatprep.subr.bf16.mxu0 %v1174
        %1218 = vmatpush1.bf16.msra.mxu0 %v1173
        %1219 = vmatprep.subr.bf16.mxu0 %v1177
        %1220 = vmatpush1.bf16.msra.mxu0 %v1176
        %1221 = vmatprep.subr.bf16.mxu0 %v1180
        %1222 = vmatpush1.bf16.msra.mxu0 %v1179
        %1223 = vmatprep.subr.bf16.mxu0 %v1183
        %1224 = vmatpush1.bf16.msra.mxu0 %v1182
        %1225 = vmatprep.subr.bf16.mxu0 0
        %1226 = vmatpush1.bf16.msra.mxu0 0
        %1227 = vmatprep.subr.bf16.mxu0 0
        %1228 = vmatpush1.bf16.msra.mxu0 0
        %1229 = vmatprep.subr.bf16.mxu0 0
        %1230 = vmatpush1.bf16.msra.mxu0 0
        %1231 = vmatprep.subr.bf16.mxu0 0
        %1232 = vmatpush1.bf16.msra.mxu0 0
        %1233 = vmatprep.subr.bf16.mxu0 0
        %1234 = vmatpush1.bf16.msra.mxu0 0
        %1235 = vmatprep.subr.bf16.mxu0 0
        %1236 = vmatpush1.bf16.msra.mxu0 0
        %1237 = vmatprep.subr.bf16.mxu0 0
        %1238 = vmatpush1.bf16.msra.mxu0 0
        %1239 = vmatprep.subr.bf16.mxu0 0
        %1240 = vmatpush1.bf16.msra.mxu0 0
        %1241 = vmatprep.mubr.bf16.mxu0 0
        %1242 = vmatmul.mubr.bf16.gmra.mrb[0].mxu0 %v1063
        %v1243 = vpop.f32.mrb[0].mxu0
        %v1244 = vadd.f32 %v1069, %v1243
        %v1245 = vpop.f32.mrb[0].mxu0
        %v1246 = vadd.f32 %v1073, %v1245
        %v1247 = vpop.f32.mrb[0].mxu0
        %v1248 = vpop.f32.mrb[0].mxu0
        %1249 = vdwg.mxu0
        %1250 = vmatprep.subr.bf16.mxu0 0
        %1251 = vmatpush1.bf16.msra.mxu0 %v1163
        %1252 = vmatprep.subr.bf16.mxu0 0
        %1253 = vmatpush1.bf16.msra.mxu0 %v1166
        %1254 = vmatprep.subr.bf16.mxu0 0
        %1255 = vmatpush1.bf16.msra.mxu0 %v1169
        %1256 = vmatprep.subr.bf16.mxu0 0
        %1257 = vmatpush1.bf16.msra.mxu0 %v1172
        %1258 = vmatprep.subr.bf16.mxu0 0
        %1259 = vmatpush1.bf16.msra.mxu0 %v1175
        %1260 = vmatprep.subr.bf16.mxu0 0
        %1261 = vmatpush1.bf16.msra.mxu0 %v1178
        %1262 = vmatprep.subr.bf16.mxu0 0
        %1263 = vmatpush1.bf16.msra.mxu0 %v1181
        %1264 = vmatprep.subr.bf16.mxu0 0
        %1265 = vmatpush1.bf16.msra.mxu0 %v1184
        %1266 = vmatprep.subr.bf16.mxu0 0
        %1267 = vmatpush1.bf16.msra.mxu0 0
        %1268 = vmatprep.subr.bf16.mxu0 0
        %1269 = vmatpush1.bf16.msra.mxu0 0
        %1270 = vmatprep.subr.bf16.mxu0 0
        %1271 = vmatpush1.bf16.msra.mxu0 0
        %1272 = vmatprep.subr.bf16.mxu0 0
        %1273 = vmatpush1.bf16.msra.mxu0 0
        %1274 = vmatprep.subr.bf16.mxu0 0
        %1275 = vmatpush1.bf16.msra.mxu0 0
        %1276 = vmatprep.subr.bf16.mxu0 0
        %1277 = vmatpush1.bf16.msra.mxu0 0
        %1278 = vmatprep.subr.bf16.mxu0 0
        %1279 = vmatpush1.bf16.msra.mxu0 0
        %1280 = vmatprep.subr.bf16.mxu0 0
        %1281 = vmatpush1.bf16.msra.mxu0 0
        %1282 = vmatprep.mubr.bf16.mxu0 0
        %1283 = vmatmul.mubr.bf16.gmra.mrb[0].mxu0 %v1063
        %v1284 = vpop.f32.mrb[0].mxu0
        %v1285 = vadd.f32 %v1077, %v1284
        %v1286 = vpop.f32.mrb[0].mxu0
        %v1287 = vpop.f32.mrb[0].mxu0
        %v1288 = vpop.f32.mrb[0].mxu0
        %1289 = vdwg.mxu0
        %v1290 = vpack.c.bf16 %v1246, %v1246
        %v1291 = vmul.f32 %v1244, %v792
        %v1292 = vpack.c.bf16 %v1291, %v1291
        %v1293 = vmul.f32 %v1285, %v792
        %v1294 = vpack.c.bf16 %v1293, %v1293
        %1295 = vmatprep.subr.bf16.mxu0 0
        %1296 = vmatpush1.bf16.xpose.msra.mxu0 %v1290
        %1297 = vmatprep.subr.bf16.mxu0 0
        %1298 = vmatpush1.bf16.xpose.msra.mxu0 0
        %1299 = vmatprep.subr.bf16.mxu0 0
        %1300 = vmatpush1.bf16.xpose.msra.mxu0 0
        %1301 = vmatprep.subr.bf16.mxu0 0
        %1302 = vmatpush1.bf16.xpose.msra.mxu0 0
        %1303 = vmatprep.subr.bf16.mxu0 0
        %1304 = vmatpush1.bf16.xpose.msra.mxu0 0
        %1305 = vmatprep.subr.bf16.mxu0 0
        %1306 = vmatpush1.bf16.xpose.msra.mxu0 0
        %1307 = vmatprep.subr.bf16.mxu0 0
        %1308 = vmatpush1.bf16.xpose.msra.mxu0 0
        %1309 = vmatprep.subr.bf16.mxu0 0
        %1310 = vmatpush1.bf16.xpose.msra.mxu0 0
        %1311 = vmatprep.subr.bf16.mxu0 0
        %1312 = vmatpush1.bf16.xpose.msra.mxu0 0
        %1313 = vmatprep.subr.bf16.mxu0 0
        %1314 = vmatpush1.bf16.xpose.msra.mxu0 0
        %1315 = vmatprep.subr.bf16.mxu0 0
        %1316 = vmatpush1.bf16.xpose.msra.mxu0 0
        %1317 = vmatprep.subr.bf16.mxu0 0
        %1318 = vmatpush1.bf16.xpose.msra.mxu0 0
        %1319 = vmatprep.subr.bf16.mxu0 0
        %1320 = vmatpush1.bf16.xpose.msra.mxu0 0
        %1321 = vmatprep.subr.bf16.mxu0 0
        %1322 = vmatpush1.bf16.xpose.msra.mxu0 0
        %1323 = vmatprep.subr.bf16.mxu0 0
        %1324 = vmatpush1.bf16.xpose.msra.mxu0 0
        %1325 = vmatprep.subr.bf16.mxu0 0
        %1326 = vmatpush1.bf16.xpose.msra.mxu0 0
        %1327 = vmatprep.mubr.bf16.mxu0 0
        %1328 = vmatmul.mubr.bf16.gmra.mrb[0].mxu0 %v1292
        %v1329 = vpop.f32.mrb[0].mxu0
        %v1330 = vadd.f32 0.0, %v1329
        %v1331 = vpop.f32.mrb[0].mxu0
        %v1332 = vpop.f32.mrb[0].mxu0
        %v1333 = vpop.f32.mrb[0].mxu0
        %1334 = vdwg.mxu0
        %v1335 = vmul.f32 %v1330, 0.25
        %v1336 = vsel %vm797, 1, 0
        %vm1337 = vcmp.eq.s32.totalorder %v1336, 1
        %v1338 = vsel %vm1337, %v1335, -1e+30
        %vm1339 = vcmask 64512
        %v1340 = vsel %vm1339, %v1338, -inf
        %1341 = vmax.xlane.f32.xlu0 %v1340
        %v1342 = vpop.xlane.xlu0 %1341
        %v1343 = vsub.f32 %v1338, %v1342
        %v1344 = vmul.f32 %v1343, 1.442695
        %v1345 = vpow.pop %v1344
        %v1346 = vsel %vm1339, %v1345, 0.0
        %1347 = vadd.xlane.f32.xlu0 %v1346
        %v1348 = vpop.xlane.xlu0 %1347
        %v1349 = vrcp.pop %v1348
        %v1350 = vmul.f32 %v1345, %v1349
        %v1351 = vpack.c.bf16 %v1350, %v1350
        %v1352 = vmul.f32 %v1244, %v796
        %v1353 = vpack.c.bf16 %v1352, %v1352
        %v1354 = vmul.f32 %v1285, %v796
        %v1355 = vpack.c.bf16 %v1354, %v1354
        %1356 = vmatprep.subr.bf16.mxu0 0
        %1357 = vmatpush1.bf16.xpose.msra.mxu0 %v1290
        %1358 = vmatprep.subr.bf16.mxu0 0
        %1359 = vmatpush1.bf16.xpose.msra.mxu0 0
        %1360 = vmatprep.subr.bf16.mxu0 0
        %1361 = vmatpush1.bf16.xpose.msra.mxu0 0
        %1362 = vmatprep.subr.bf16.mxu0 0
        %1363 = vmatpush1.bf16.xpose.msra.mxu0 0
        %1364 = vmatprep.subr.bf16.mxu0 0
        %1365 = vmatpush1.bf16.xpose.msra.mxu0 0
        %1366 = vmatprep.subr.bf16.mxu0 0
        %1367 = vmatpush1.bf16.xpose.msra.mxu0 0
        %1368 = vmatprep.subr.bf16.mxu0 0
        %1369 = vmatpush1.bf16.xpose.msra.mxu0 0
        %1370 = vmatprep.subr.bf16.mxu0 0
        %1371 = vmatpush1.bf16.xpose.msra.mxu0 0
        %1372 = vmatprep.subr.bf16.mxu0 0
        %1373 = vmatpush1.bf16.xpose.msra.mxu0 0
        %1374 = vmatprep.subr.bf16.mxu0 0
        %1375 = vmatpush1.bf16.xpose.msra.mxu0 0
        %1376 = vmatprep.subr.bf16.mxu0 0
        %1377 = vmatpush1.bf16.xpose.msra.mxu0 0
        %1378 = vmatprep.subr.bf16.mxu0 0
        %1379 = vmatpush1.bf16.xpose.msra.mxu0 0
        %1380 = vmatprep.subr.bf16.mxu0 0
        %1381 = vmatpush1.bf16.xpose.msra.mxu0 0
        %1382 = vmatprep.subr.bf16.mxu0 0
        %1383 = vmatpush1.bf16.xpose.msra.mxu0 0
        %1384 = vmatprep.subr.bf16.mxu0 0
        %1385 = vmatpush1.bf16.xpose.msra.mxu0 0
        %1386 = vmatprep.subr.bf16.mxu0 0
        %1387 = vmatpush1.bf16.xpose.msra.mxu0 0
        %1388 = vmatprep.mubr.bf16.mxu0 0
        %1389 = vmatmul.mubr.bf16.gmra.mrb[0].mxu0 %v1353
        %v1390 = vpop.f32.mrb[0].mxu0
        %v1391 = vadd.f32 0.0, %v1390
        %v1392 = vpop.f32.mrb[0].mxu0
        %v1393 = vpop.f32.mrb[0].mxu0
        %v1394 = vpop.f32.mrb[0].mxu0
        %1395 = vdwg.mxu0
        %v1396 = vmul.f32 %v1391, 0.25
        %v1397 = vsel %vm1337, %v1396, -1e+30
        %v1398 = vsel %vm1339, %v1397, -inf
        %1399 = vmax.xlane.f32.xlu0 %v1398
        %v1400 = vpop.xlane.xlu0 %1399
        %v1401 = vsub.f32 %v1397, %v1400
        %v1402 = vmul.f32 %v1401, 1.442695
        %v1403 = vpow.pop %v1402
        %v1404 = vsel %vm1339, %v1403, 0.0
        %1405 = vadd.xlane.f32.xlu0 %v1404
        %v1406 = vpop.xlane.xlu0 %1405
        %v1407 = vrcp.pop %v1406
        %v1408 = vmul.f32 %v1403, %v1407
        %v1409 = vpack.c.bf16 %v1408, %v1408
        %v1411 = vsel %vm1339, %v1409, 0
        %vm1413 = vcmask 1043456
        %v1415 = vsel %vm1413, %v1355, 0
        %1417 = vmatprep.subr.bf16.mxu0 0
        %1418 = vmatpush1.bf16.msra.mxu0 %v1415
        %1419 = vmatprep.subr.bf16.mxu0 0
        %1420 = vmatpush1.bf16.msra.mxu0 0
        %1421 = vmatprep.subr.bf16.mxu0 0
        %1422 = vmatpush1.bf16.msra.mxu0 0
        %1423 = vmatprep.subr.bf16.mxu0 0
        %1424 = vmatpush1.bf16.msra.mxu0 0
        %1425 = vmatprep.subr.bf16.mxu0 0
        %1426 = vmatpush1.bf16.msra.mxu0 0
        %1427 = vmatprep.subr.bf16.mxu0 0
        %1428 = vmatpush1.bf16.msra.mxu0 0
        %1429 = vmatprep.subr.bf16.mxu0 0
        %1430 = vmatpush1.bf16.msra.mxu0 0
        %1431 = vmatprep.subr.bf16.mxu0 0
        %1432 = vmatpush1.bf16.msra.mxu0 0
        %1433 = vmatprep.subr.bf16.mxu0 0
        %1434 = vmatpush1.bf16.msra.mxu0 0
        %1435 = vmatprep.subr.bf16.mxu0 0
        %1436 = vmatpush1.bf16.msra.mxu0 0
        %1437 = vmatprep.subr.bf16.mxu0 0
        %1438 = vmatpush1.bf16.msra.mxu0 0
        %1439 = vmatprep.subr.bf16.mxu0 0
        %1440 = vmatpush1.bf16.msra.mxu0 0
        %1441 = vmatprep.subr.bf16.mxu0 0
        %1442 = vmatpush1.bf16.msra.mxu0 0
        %1443 = vmatprep.subr.bf16.mxu0 0
        %1444 = vmatpush1.bf16.msra.mxu0 0
        %1445 = vmatprep.subr.bf16.mxu0 0
        %1446 = vmatpush1.bf16.msra.mxu0 0
        %1447 = vmatprep.subr.bf16.mxu0 0
        %1448 = vmatpush1.bf16.msra.mxu0 0
        %1449 = vmatprep.mubr.bf16.mxu0 0
        %1450 = vmatmul.mubr.bf16.gmra.mrb[0].mxu0 %v1411
        %v1451 = vpop.f32.mrb[0].mxu0
        %v1452 = vadd.f32 0.0, %v1451
        %v1453 = vpop.f32.mrb[0].mxu0
        %v1454 = vpop.f32.mrb[0].mxu0
        %v1455 = vpop.f32.mrb[0].mxu0
        %1456 = vdwg.mxu0
        %v1458 = vsel %vm1339, %v1351, 0
        %v1461 = vsel %vm1413, %v1294, 0
        %1463 = vmatprep.subr.bf16.mxu0 0
        %1464 = vmatpush1.bf16.msra.mxu0 %v1461
        %1465 = vmatprep.subr.bf16.mxu0 0
        %1466 = vmatpush1.bf16.msra.mxu0 0
        %1467 = vmatprep.subr.bf16.mxu0 0
        %1468 = vmatpush1.bf16.msra.mxu0 0
        %1469 = vmatprep.subr.bf16.mxu0 0
        %1470 = vmatpush1.bf16.msra.mxu0 0
        %1471 = vmatprep.subr.bf16.mxu0 0
        %1472 = vmatpush1.bf16.msra.mxu0 0
        %1473 = vmatprep.subr.bf16.mxu0 0
        %1474 = vmatpush1.bf16.msra.mxu0 0
        %1475 = vmatprep.subr.bf16.mxu0 0
        %1476 = vmatpush1.bf16.msra.mxu0 0
        %1477 = vmatprep.subr.bf16.mxu0 0
        %1478 = vmatpush1.bf16.msra.mxu0 0
        %1479 = vmatprep.subr.bf16.mxu0 0
        %1480 = vmatpush1.bf16.msra.mxu0 0
        %1481 = vmatprep.subr.bf16.mxu0 0
        %1482 = vmatpush1.bf16.msra.mxu0 0
        %1483 = vmatprep.subr.bf16.mxu0 0
        %1484 = vmatpush1.bf16.msra.mxu0 0
        %1485 = vmatprep.subr.bf16.mxu0 0
        %1486 = vmatpush1.bf16.msra.mxu0 0
        %1487 = vmatprep.subr.bf16.mxu0 0
        %1488 = vmatpush1.bf16.msra.mxu0 0
        %1489 = vmatprep.subr.bf16.mxu0 0
        %1490 = vmatpush1.bf16.msra.mxu0 0
        %1491 = vmatprep.subr.bf16.mxu0 0
        %1492 = vmatpush1.bf16.msra.mxu0 0
        %1493 = vmatprep.subr.bf16.mxu0 0
        %1494 = vmatpush1.bf16.msra.mxu0 0
        %1495 = vmatprep.mubr.bf16.mxu0 0
        %1496 = vmatmul.mubr.bf16.gmra.mrb[0].mxu0 %v1458
        %v1497 = vpop.f32.mrb[0].mxu0
        %v1498 = vadd.f32 %v1452, %v1497
        %v1499 = vpop.f32.mrb[0].mxu0
        %v1500 = vpop.f32.mrb[0].mxu0
        %v1501 = vpop.f32.mrb[0].mxu0
        %1502 = vdwg.mxu0
        %v1503 = vld [vmem:[%s9] sm:$0xf]
        %v1504 = vld [vmem:[%s9 + $0x4] sm:$0xf]
        %v1505 = vld [vmem:[%s9 + $0x8] sm:$0xf]
        %v1506 = vld [vmem:[%s9 + $0xc] sm:$0xf]
        %v1507 = vld [vmem:[%s9 + $0x10] sm:$0xf]
        %v1508 = vld [vmem:[%s9 + $0x14] sm:$0xf]
        %v1509 = vld [vmem:[%s9 + $0x18] sm:$0xf]
        %v1510 = vld [vmem:[%s9 + $0x1c] sm:$0xf]
        %v1511 = vld [vmem:[%s9 + $0x20] sm:$0xf]
        %v1512 = vld [vmem:[%s9 + $0x24] sm:$0xf]
        %v1513 = vld [vmem:[%s9 + $0x28] sm:$0xf]
        %v1514 = vld [vmem:[%s9 + $0x2c] sm:$0xf]
        %v1515 = vld [vmem:[%s9 + $0x30] sm:$0xf]
        %v1516 = vld [vmem:[%s9 + $0x34] sm:$0xf]
        %v1517 = vld [vmem:[%s9 + $0x38] sm:$0xf]
        %v1518 = vld [vmem:[%s9 + $0x3c] sm:$0xf]
        %v1519 = vpack.c.bf16 %v1498, %v1498
        %v1520 = vld [vmem:[#allocation7] sm:$0x1]
        %v1522 = vlaneseq
        %v1523 = vshrl.u32 %v1522, 7
        %v1524 = vsub.s32 0, %v1523
        %v1525 = vrot.slane %v1520, %v1524
        %v1543 = vunpack.c.l.b16 %v1503
        %v1544 = vunpack.c.l.b16 %v1504
        %v1545 = vunpack.c.l.b16 %v1505
        %v1546 = vunpack.c.l.b16 %v1506
        %v1547 = vunpack.c.l.b16 %v1507
        %v1548 = vunpack.c.l.b16 %v1508
        %v1549 = vunpack.c.l.b16 %v1509
        %v1550 = vunpack.c.l.b16 %v1510
        %v1551 = vunpack.c.l.b16 %v1511
        %v1552 = vunpack.c.l.b16 %v1512
        %v1553 = vunpack.c.l.b16 %v1513
        %v1554 = vunpack.c.l.b16 %v1514
        %v1555 = vunpack.c.l.b16 %v1515
        %v1556 = vunpack.c.l.b16 %v1516
        %v1557 = vunpack.c.l.b16 %v1517
        %v1558 = vunpack.c.l.b16 %v1518
        %v1559 = vpack.c.b16 %v1544, %v1543
        %v1560 = vpack.c.b16 %v1546, %v1545
        %v1561 = vpack.c.b16 %v1548, %v1547
        %v1562 = vpack.c.b16 %v1550, %v1549
        %v1563 = vpack.c.b16 %v1552, %v1551
        %v1564 = vpack.c.b16 %v1554, %v1553
        %v1565 = vpack.c.b16 %v1556, %v1555
        %v1566 = vpack.c.b16 %v1558, %v1557
        %1575 = vmatprep.subr.bf16.mxu0 0
        %1576 = vmatpush1.bf16.msra.mxu0 %v1559
        %1577 = vmatprep.subr.bf16.mxu0 0
        %1578 = vmatpush1.bf16.msra.mxu0 %v1560
        %1579 = vmatprep.subr.bf16.mxu0 0
        %1580 = vmatpush1.bf16.msra.mxu0 %v1561
        %1581 = vmatprep.subr.bf16.mxu0 0
        %1582 = vmatpush1.bf16.msra.mxu0 %v1562
        %1583 = vmatprep.subr.bf16.mxu0 0
        %1584 = vmatpush1.bf16.msra.mxu0 %v1563
        %1585 = vmatprep.subr.bf16.mxu0 0
        %1586 = vmatpush1.bf16.msra.mxu0 %v1564
        %1587 = vmatprep.subr.bf16.mxu0 0
        %1588 = vmatpush1.bf16.msra.mxu0 %v1565
        %1589 = vmatprep.subr.bf16.mxu0 0
        %1590 = vmatpush1.bf16.msra.mxu0 %v1566
        %1591 = vmatprep.subr.bf16.mxu0 0
        %1592 = vmatpush1.bf16.msra.mxu0 0
        %1593 = vmatprep.subr.bf16.mxu0 0
        %1594 = vmatpush1.bf16.msra.mxu0 0
        %1595 = vmatprep.subr.bf16.mxu0 0
        %1596 = vmatpush1.bf16.msra.mxu0 0
        %1597 = vmatprep.subr.bf16.mxu0 0
        %1598 = vmatpush1.bf16.msra.mxu0 0
        %1599 = vmatprep.subr.bf16.mxu0 0
        %1600 = vmatpush1.bf16.msra.mxu0 0
        %1601 = vmatprep.subr.bf16.mxu0 0
        %1602 = vmatpush1.bf16.msra.mxu0 0
        %1603 = vmatprep.subr.bf16.mxu0 0
        %1604 = vmatpush1.bf16.msra.mxu0 0
        %1605 = vmatprep.subr.bf16.mxu0 0
        %1606 = vmatpush1.bf16.msra.mxu0 0
        %1607 = vmatprep.mubr.bf16.mxu0 0
        %1608 = vmatmul.mubr.bf16.gmra.mrb[0].mxu0 %v1519
        %v1609 = vpop.f32.mrb[0].mxu0
        %v1610 = vadd.f32 %v1525, %v1609
        %v1611 = vpop.f32.mrb[0].mxu0
        %v1612 = vpop.f32.mrb[0].mxu0
        %v1613 = vpop.f32.mrb[0].mxu0
        %1614 = vdwg.mxu0
        %v1615 = vadd.f32 %v1002, %v1610
        %v1616 = vld [vmem:[#allocation9] sm:$0x1]
        %v1617 = vld [vmem:[#allocation10] sm:$0x1]
        %1618 = vadd.xlane.f32.xlu0 %v1615
        %v1619 = vpop.xlane.xlu0 %1618
        %v1620 = vmul.f32 %v1619, 0.03125
        %v1621 = vsub.f32 %v1615, %v1620
        %v1622 = vmul.f32 %v1621, %v787
        %v1623 = vmul.f32 %v1622, %v1622
        %1624 = vadd.xlane.f32.xlu0 %v1623
        %v1625 = vpop.xlane.xlu0 %1624
        %v1626 = vmul.f32 %v1625, 0.03125
        %v1627 = vadd.f32 %v1626, 1e-05
        %v1628 = vrsqrt.pop %v1627
        %v1629 = vmul.f32 %v1622, %v1628
        %v1631 = vlaneseq
        %v1632 = vshrl.u32 %v1631, 7
        %v1633 = vsub.s32 0, %v1632
        %v1634 = vrot.slane %v1616, %v1633
        %v1636 = vmul.f32 %v1629, %v1634
        %v1638 = vlaneseq
        %v1639 = vshrl.u32 %v1638, 7
        %v1640 = vsub.s32 0, %v1639
        %v1641 = vrot.slane %v1617, %v1640
        %v1643 = vadd.f32 %v1636, %v1641
        %v1644 = vld [vmem:[%s13] sm:$0xf]
        %v1645 = vld [vmem:[%s13 + $0x4] sm:$0xf]
        %v1646 = vld [vmem:[%s13 + $0x8] sm:$0xf]
        %v1647 = vld [vmem:[%s13 + $0xc] sm:$0xf]
        %v1648 = vld [vmem:[%s13 + $0x10] sm:$0xf]
        %v1649 = vld [vmem:[%s13 + $0x14] sm:$0xf]
        %v1650 = vld [vmem:[%s13 + $0x18] sm:$0xf]
        %v1651 = vld [vmem:[%s13 + $0x1c] sm:$0xf]
        %v1652 = vld [vmem:[%s13 + $0x20] sm:$0xf]
        %v1653 = vld [vmem:[%s13 + $0x24] sm:$0xf]
        %v1654 = vld [vmem:[%s13 + $0x28] sm:$0xf]
        %v1655 = vld [vmem:[%s13 + $0x2c] sm:$0xf]
        %v1656 = vld [vmem:[%s13 + $0x30] sm:$0xf]
        %v1657 = vld [vmem:[%s13 + $0x34] sm:$0xf]
        %v1658 = vld [vmem:[%s13 + $0x38] sm:$0xf]
        %v1659 = vld [vmem:[%s13 + $0x3c] sm:$0xf]
        %v1660 = vpack.c.bf16 %v1643, %v1643
        %v1661 = vld [vmem:[#allocation12] sm:$0x1]
        %v1663 = vlaneseq
        %v1664 = vshrl.u32 %v1663, 7
        %v1665 = vsub.s32 0, %v1664
        %v1666 = vrot.slane %v1661, %v1665
        %v1684 = vunpack.c.l.b16 %v1644
        %v1685 = vunpack.c.l.b16 %v1645
        %v1686 = vunpack.c.l.b16 %v1646
        %v1687 = vunpack.c.l.b16 %v1647
        %v1688 = vunpack.c.l.b16 %v1648
        %v1689 = vunpack.c.l.b16 %v1649
        %v1690 = vunpack.c.l.b16 %v1650
        %v1691 = vunpack.c.l.b16 %v1651
        %v1692 = vunpack.c.l.b16 %v1652
        %v1693 = vunpack.c.l.b16 %v1653
        %v1694 = vunpack.c.l.b16 %v1654
        %v1695 = vunpack.c.l.b16 %v1655
        %v1696 = vunpack.c.l.b16 %v1656
        %v1697 = vunpack.c.l.b16 %v1657
        %v1698 = vunpack.c.l.b16 %v1658
        %v1699 = vunpack.c.l.b16 %v1659
        %v1700 = vpack.c.b16 %v1685, %v1684
        %v1701 = vpack.c.b16 %v1687, %v1686
        %v1702 = vpack.c.b16 %v1689, %v1688
        %v1703 = vpack.c.b16 %v1691, %v1690
        %v1704 = vpack.c.b16 %v1693, %v1692
        %v1705 = vpack.c.b16 %v1695, %v1694
        %v1706 = vpack.c.b16 %v1697, %v1696
        %v1707 = vpack.c.b16 %v1699, %v1698
        %1716 = vmatprep.subr.bf16.mxu0 0
        %1717 = vmatpush1.bf16.msra.mxu0 %v1700
        %1718 = vmatprep.subr.bf16.mxu0 0
        %1719 = vmatpush1.bf16.msra.mxu0 %v1701
        %1720 = vmatprep.subr.bf16.mxu0 0
        %1721 = vmatpush1.bf16.msra.mxu0 %v1702
        %1722 = vmatprep.subr.bf16.mxu0 0
        %1723 = vmatpush1.bf16.msra.mxu0 %v1703
        %1724 = vmatprep.subr.bf16.mxu0 0
        %1725 = vmatpush1.bf16.msra.mxu0 %v1704
        %1726 = vmatprep.subr.bf16.mxu0 0
        %1727 = vmatpush1.bf16.msra.mxu0 %v1705
        %1728 = vmatprep.subr.bf16.mxu0 0
        %1729 = vmatpush1.bf16.msra.mxu0 %v1706
        %1730 = vmatprep.subr.bf16.mxu0 0
        %1731 = vmatpush1.bf16.msra.mxu0 %v1707
        %1732 = vmatprep.subr.bf16.mxu0 0
        %1733 = vmatpush1.bf16.msra.mxu0 0
        %1734 = vmatprep.subr.bf16.mxu0 0
        %1735 = vmatpush1.bf16.msra.mxu0 0
        %1736 = vmatprep.subr.bf16.mxu0 0
        %1737 = vmatpush1.bf16.msra.mxu0 0
        %1738 = vmatprep.subr.bf16.mxu0 0
        %1739 = vmatpush1.bf16.msra.mxu0 0
        %1740 = vmatprep.subr.bf16.mxu0 0
        %1741 = vmatpush1.bf16.msra.mxu0 0
        %1742 = vmatprep.subr.bf16.mxu0 0
        %1743 = vmatpush1.bf16.msra.mxu0 0
        %1744 = vmatprep.subr.bf16.mxu0 0
        %1745 = vmatpush1.bf16.msra.mxu0 0
        %1746 = vmatprep.subr.bf16.mxu0 0
        %1747 = vmatpush1.bf16.msra.mxu0 0
        %1748 = vmatprep.mubr.bf16.mxu0 0
        %1749 = vmatmul.mubr.bf16.gmra.mrb[0].mxu0 %v1660
        %v1750 = vpop.f32.mrb[0].mxu0
        %v1751 = vadd.f32 %v1666, %v1750
        %v1752 = vpop.f32.mrb[0].mxu0
        %v1753 = vpop.f32.mrb[0].mxu0
        %v1754 = vpop.f32.mrb[0].mxu0
        %1755 = vdwg.mxu0
        %v1756 = vmul.f32 %v1751, 1.702
        %v1757 = vxor.u32 %v1756, 2147483648
        %v1758 = vmul.f32 %v1757, 1.442695
        %v1759 = vpow.pop %v1758
        %v1760 = vadd.f32 %v1759, 1.0
        %v1761 = vrcp.pop %v1760
        %v1762 = vmul.f32 1.0, %v1761
        %v1763 = vmul.f32 %v1751, %v1762
        %v1764 = vld [vmem:[#allocation13] sm:$0xf]
        %v1765 = vld [vmem:[#allocation13 + $0x4] sm:$0xf]
        %v1766 = vld [vmem:[#allocation13 + $0x8] sm:$0xf]
        %v1767 = vld [vmem:[#allocation13 + $0xc] sm:$0xf]
        %v1768 = vld [vmem:[#allocation13 + $0x10] sm:$0xf]
        %v1769 = vld [vmem:[#allocation13 + $0x14] sm:$0xf]
        %v1770 = vld [vmem:[#allocation13 + $0x18] sm:$0xf]
        %v1771 = vld [vmem:[#allocation13 + $0x1c] sm:$0xf]
        %v1772 = vld [vmem:[#allocation13 + $0x20] sm:$0xf]
        %v1773 = vld [vmem:[#allocation13 + $0x24] sm:$0xf]
        %v1774 = vld [vmem:[#allocation13 + $0x28] sm:$0xf]
        %v1775 = vld [vmem:[#allocation13 + $0x2c] sm:$0xf]
        %v1776 = vld [vmem:[#allocation13 + $0x30] sm:$0xf]
        %v1777 = vld [vmem:[#allocation13 + $0x34] sm:$0xf]
        %v1778 = vld [vmem:[#allocation13 + $0x38] sm:$0xf]
        %v1779 = vld [vmem:[#allocation13 + $0x3c] sm:$0xf]
        %v1780 = vpack.c.bf16 %v1763, %v1763
        %v1781 = vld [vmem:[#allocation15] sm:$0x1]
        %v1783 = vlaneseq
        %v1784 = vshrl.u32 %v1783, 7
        %v1785 = vsub.s32 0, %v1784
        %v1786 = vrot.slane %v1781, %v1785
        %v1804 = vunpack.c.l.b16 %v1764
        %v1805 = vunpack.c.l.b16 %v1765
        %v1806 = vunpack.c.l.b16 %v1766
        %v1807 = vunpack.c.l.b16 %v1767
        %v1808 = vunpack.c.l.b16 %v1768
        %v1809 = vunpack.c.l.b16 %v1769
        %v1810 = vunpack.c.l.b16 %v1770
        %v1811 = vunpack.c.l.b16 %v1771
        %v1812 = vunpack.c.l.b16 %v1772
        %v1813 = vunpack.c.l.b16 %v1773
        %v1814 = vunpack.c.l.b16 %v1774
        %v1815 = vunpack.c.l.b16 %v1775
        %v1816 = vunpack.c.l.b16 %v1776
        %v1817 = vunpack.c.l.b16 %v1777
        %v1818 = vunpack.c.l.b16 %v1778
        %v1819 = vunpack.c.l.b16 %v1779
        %v1820 = vpack.c.b16 %v1805, %v1804
        %v1821 = vpack.c.b16 %v1807, %v1806
        %v1822 = vpack.c.b16 %v1809, %v1808
        %v1823 = vpack.c.b16 %v1811, %v1810
        %v1824 = vpack.c.b16 %v1813, %v1812
        %v1825 = vpack.c.b16 %v1815, %v1814
        %v1826 = vpack.c.b16 %v1817, %v1816
        %v1827 = vpack.c.b16 %v1819, %v1818
        %1836 = vmatprep.subr.bf16.mxu0 0
        %1837 = vmatpush1.bf16.msra.mxu0 %v1820
        %1838 = vmatprep.subr.bf16.mxu0 0
        %1839 = vmatpush1.bf16.msra.mxu0 %v1821
        %1840 = vmatprep.subr.bf16.mxu0 0
        %1841 = vmatpush1.bf16.msra.mxu0 %v1822
        %1842 = vmatprep.subr.bf16.mxu0 0
        %1843 = vmatpush1.bf16.msra.mxu0 %v1823
        %1844 = vmatprep.subr.bf16.mxu0 0
        %1845 = vmatpush1.bf16.msra.mxu0 %v1824
        %1846 = vmatprep.subr.bf16.mxu0 0
        %1847 = vmatpush1.bf16.msra.mxu0 %v1825
        %1848 = vmatprep.subr.bf16.mxu0 0
        %1849 = vmatpush1.bf16.msra.mxu0 %v1826
        %1850 = vmatprep.subr.bf16.mxu0 0
        %1851 = vmatpush1.bf16.msra.mxu0 %v1827
        %1852 = vmatprep.subr.bf16.mxu0 0
        %1853 = vmatpush1.bf16.msra.mxu0 0
        %1854 = vmatprep.subr.bf16.mxu0 0
        %1855 = vmatpush1.bf16.msra.mxu0 0
        %1856 = vmatprep.subr.bf16.mxu0 0
        %1857 = vmatpush1.bf16.msra.mxu0 0
        %1858 = vmatprep.subr.bf16.mxu0 0
        %1859 = vmatpush1.bf16.msra.mxu0 0
        %1860 = vmatprep.subr.bf16.mxu0 0
        %1861 = vmatpush1.bf16.msra.mxu0 0
        %1862 = vmatprep.subr.bf16.mxu0 0
        %1863 = vmatpush1.bf16.msra.mxu0 0
        %1864 = vmatprep.subr.bf16.mxu0 0
        %1865 = vmatpush1.bf16.msra.mxu0 0
        %1866 = vmatprep.subr.bf16.mxu0 0
        %1867 = vmatpush1.bf16.msra.mxu0 0
        %1868 = vmatprep.mubr.bf16.mxu0 0
        %1869 = vmatmul.mubr.bf16.gmra.mrb[0].mxu0 %v1780
        %v1870 = vpop.f32.mrb[0].mxu0
        %v1871 = vadd.f32 %v1786, %v1870
        %v1872 = vpop.f32.mrb[0].mxu0
        %v1873 = vpop.f32.mrb[0].mxu0
        %v1874 = vpop.f32.mrb[0].mxu0
        %1875 = vdwg.mxu0
        %v1876 = vadd.f32 %v1615, %v1871
        %s1877 = scalar_lea.vmem %s5, 1
        %v1878 = vld [vmem:[%s1877] sm:$0x1]
        %s1879 = scalar_lea.vmem [#allocation4], 1
        %v1880 = vld [vmem:[%s1879] sm:$0x1]
        %1881 = vadd.xlane.f32.xlu0 %v1876
        %v1882 = vpop.xlane.xlu0 %1881
        %v1883 = vmul.f32 %v1882, 0.03125
        %v1884 = vsub.f32 %v1876, %v1883
        %v1885 = vmul.f32 %v1884, %v787
        %v1886 = vmul.f32 %v1885, %v1885
        %1887 = vadd.xlane.f32.xlu0 %v1886
        %v1888 = vpop.xlane.xlu0 %1887
        %v1889 = vmul.f32 %v1888, 0.03125
        %v1890 = vadd.f32 %v1889, 1e-05
        %v1891 = vrsqrt.pop %v1890
        %v1892 = vmul.f32 %v1885, %v1891
        %v1894 = vlaneseq
        %v1895 = vshrl.u32 %v1894, 7
        %v1896 = vsub.s32 0, %v1895
        %v1897 = vrot.slane %v1878, %v1896
        %v1899 = vmul.f32 %v1892, %v1897
        %v1901 = vlaneseq
        %v1902 = vshrl.u32 %v1901, 7
        %v1903 = vsub.s32 0, %v1902
        %v1904 = vrot.slane %v1880, %v1903
        %v1906 = vadd.f32 %v1899, %v1904
        %s1907 = scalar_lea.vmem %s7, 192
        %v1908 = vld [vmem:[%s1907] sm:$0xff]
        %v1909 = vld [vmem:[%s1907 + $0x8] sm:$0xf]
        %v1910 = vld [vmem:[%s1907 + $0xc] sm:$0xff]
        %v1911 = vld [vmem:[%s1907 + $0x14] sm:$0xf]
        %v1912 = vld [vmem:[%s1907 + $0x18] sm:$0xff]
        %v1913 = vld [vmem:[%s1907 + $0x20] sm:$0xf]
        %v1914 = vld [vmem:[%s1907 + $0x24] sm:$0xff]
        %v1915 = vld [vmem:[%s1907 + $0x2c] sm:$0xf]
        %v1916 = vld [vmem:[%s1907 + $0x30] sm:$0xff]
        %v1917 = vld [vmem:[%s1907 + $0x38] sm:$0xf]
        %v1918 = vld [vmem:[%s1907 + $0x3c] sm:$0xff]
        %v1919 = vld [vmem:[%s1907 + $0x44] sm:$0xf]
        %v1920 = vld [vmem:[%s1907 + $0x48] sm:$0xff]
        %v1921 = vld [vmem:[%s1907 + $0x50] sm:$0xf]
        %v1922 = vld [vmem:[%s1907 + $0x54] sm:$0xff]
        %v1923 = vld [vmem:[%s1907 + $0x5c] sm:$0xf]
        %v1924 = vld [vmem:[%s1907 + $0x60] sm:$0xff]
        %v1925 = vld [vmem:[%s1907 + $0x68] sm:$0xf]
        %v1926 = vld [vmem:[%s1907 + $0x6c] sm:$0xff]
        %v1927 = vld [vmem:[%s1907 + $0x74] sm:$0xf]
        %v1928 = vld [vmem:[%s1907 + $0x78] sm:$0xff]
        %v1929 = vld [vmem:[%s1907 + $0x80] sm:$0xf]
        %v1930 = vld [vmem:[%s1907 + $0x84] sm:$0xff]
        %v1931 = vld [vmem:[%s1907 + $0x8c] sm:$0xf]
        %v1932 = vld [vmem:[%s1907 + $0x90] sm:$0xff]
        %v1933 = vld [vmem:[%s1907 + $0x98] sm:$0xf]
        %v1934 = vld [vmem:[%s1907 + $0x9c] sm:$0xff]
        %v1935 = vld [vmem:[%s1907 + $0xa4] sm:$0xf]
        %v1936 = vld [vmem:[%s1907 + $0xa8] sm:$0xff]
        %v1937 = vld [vmem:[%s1907 + $0xb0] sm:$0xf]
        %v1938 = vld [vmem:[%s1907 + $0xb4] sm:$0xff]
        %v1939 = vld [vmem:[%s1907 + $0xbc] sm:$0xf]
        %v1940 = vpack.c.bf16 %v1906, %v1906
        %s1941 = scalar_lea.vmem [#allocation6], 3
        %v1942 = vld [vmem:[%s1941] sm:$0x7]
        %v1944 = vlaneseq
        %v1945 = vshrl.u32 %v1944, 7
        %v1946 = vsub.s32 0, %v1945
        %v1947 = vrot.slane %v1942, %v1946
        %v1948 = vlaneseq
        %v1949 = vshrl.u32 %v1948, 7
        %v1950 = vsub.s32 1, %v1949
        %v1951 = vrot.slane %v1942, %v1950
        %v1952 = vlaneseq
        %v1953 = vshrl.u32 %v1952, 7
        %v1954 = vsub.s32 2, %v1953
        %v1955 = vrot.slane %v1942, %v1954
        %v1991 = vunpack.c.l.b16 %v1908
        %v1992 = vunpack.c.h.b16 %v1908
        %v1993 = vunpack.c.l.b16 %v1909
        %v1994 = vunpack.c.l.b16 %v1910
        %v1995 = vunpack.c.h.b16 %v1910
        %v1996 = vunpack.c.l.b16 %v1911
        %v1997 = vunpack.c.l.b16 %v1912
        %v1998 = vunpack.c.h.b16 %v1912
        %v1999 = vunpack.c.l.b16 %v1913
        %v2000 = vunpack.c.l.b16 %v1914
        %v2001 = vunpack.c.h.b16 %v1914
        %v2002 = vunpack.c.l.b16 %v1915
        %v2003 = vunpack.c.l.b16 %v1916
        %v2004 = vunpack.c.h.b16 %v1916
        %v2005 = vunpack.c.l.b16 %v1917
        %v2006 = vunpack.c.l.b16 %v1918
        %v2007 = vunpack.c.h.b16 %v1918
        %v2008 = vunpack.c.l.b16 %v1919
        %v2009 = vunpack.c.l.b16 %v1920
        %v2010 = vunpack.c.h.b16 %v1920
        %v2011 = vunpack.c.l.b16 %v1921
        %v2012 = vunpack.c.l.b16 %v1922
        %v2013 = vunpack.c.h.b16 %v1922
        %v2014 = vunpack.c.l.b16 %v1923
        %v2015 = vunpack.c.l.b16 %v1924
        %v2016 = vunpack.c.h.b16 %v1924
        %v2017 = vunpack.c.l.b16 %v1925
        %v2018 = vunpack.c.l.b16 %v1926
        %v2019 = vunpack.c.h.b16 %v1926
        %v2020 = vunpack.c.l.b16 %v1927
        %v2021 = vunpack.c.l.b16 %v1928
        %v2022 = vunpack.c.h.b16 %v1928
        %v2023 = vunpack.c.l.b16 %v1929
        %v2024 = vunpack.c.l.b16 %v1930
        %v2025 = vunpack.c.h.b16 %v1930
        %v2026 = vunpack.c.l.b16 %v1931
        %v2027 = vunpack.c.l.b16 %v1932
        %v2028 = vunpack.c.h.b16 %v1932
        %v2029 = vunpack.c.l.b16 %v1933
        %v2030 = vunpack.c.l.b16 %v1934
        %v2031 = vunpack.c.h.b16 %v1934
        %v2032 = vunpack.c.l.b16 %v1935
        %v2033 = vunpack.c.l.b16 %v1936
        %v2034 = vunpack.c.h.b16 %v1936
        %v2035 = vunpack.c.l.b16 %v1937
        %v2036 = vunpack.c.l.b16 %v1938
        %v2037 = vunpack.c.h.b16 %v1938
        %v2038 = vunpack.c.l.b16 %v1939
        %v2039 = vpack.c.b16 %v1994, %v1991
        %v2040 = vpack.c.b16 %v1995, %v1992
        %v2041 = vpack.c.b16 %v1996, %v1993
        %v2042 = vpack.c.b16 %v2000, %v1997
        %v2043 = vpack.c.b16 %v2001, %v1998
        %v2044 = vpack.c.b16 %v2002, %v1999
        %v2045 = vpack.c.b16 %v2006, %v2003
        %v2046 = vpack.c.b16 %v2007, %v2004
        %v2047 = vpack.c.b16 %v2008, %v2005
        %v2048 = vpack.c.b16 %v2012, %v2009
        %v2049 = vpack.c.b16 %v2013, %v2010
        %v2050 = vpack.c.b16 %v2014, %v2011
        %v2051 = vpack.c.b16 %v2018, %v2015
        %v2052 = vpack.c.b16 %v2019, %v2016
        %v2053 = vpack.c.b16 %v2020, %v2017
        %v2054 = vpack.c.b16 %v2024, %v2021
        %v2055 = vpack.c.b16 %v2025, %v2022
        %v2056 = vpack.c.b16 %v2026, %v2023
        %v2057 = vpack.c.b16 %v2030, %v2027
        %v2058 = vpack.c.b16 %v2031, %v2028
        %v2059 = vpack.c.b16 %v2032, %v2029
        %v2060 = vpack.c.b16 %v2036, %v2033
        %v2061 = vpack.c.b16 %v2037, %v2034
        %v2062 = vpack.c.b16 %v2038, %v2035
        %2087 = vmatprep.subr.bf16.mxu0 %v2040
        %2088 = vmatpush1.bf16.msra.mxu0 %v2039
        %2089 = vmatprep.subr.bf16.mxu0 %v2043
        %2090 = vmatpush1.bf16.msra.mxu0 %v2042
        %2091 = vmatprep.subr.bf16.mxu0 %v2046
        %2092 = vmatpush1.bf16.msra.mxu0 %v2045
        %2093 = vmatprep.subr.bf16.mxu0 %v2049
        %2094 = vmatpush1.bf16.msra.mxu0 %v2048
        %2095 = vmatprep.subr.bf16.mxu0 %v2052
        %2096 = vmatpush1.bf16.msra.mxu0 %v2051
        %2097 = vmatprep.subr.bf16.mxu0 %v2055
        %2098 = vmatpush1.bf16.msra.mxu0 %v2054
        %2099 = vmatprep.subr.bf16.mxu0 %v2058
        %2100 = vmatpush1.bf16.msra.mxu0 %v2057
        %2101 = vmatprep.subr.bf16.mxu0 %v2061
        %2102 = vmatpush1.bf16.msra.mxu0 %v2060
        %2103 = vmatprep.subr.bf16.mxu0 0
        %2104 = vmatpush1.bf16.msra.mxu0 0
        %2105 = vmatprep.subr.bf16.mxu0 0
        %2106 = vmatpush1.bf16.msra.mxu0 0
        %2107 = vmatprep.subr.bf16.mxu0 0
        %2108 = vmatpush1.bf16.msra.mxu0 0
        %2109 = vmatprep.subr.bf16.mxu0 0
        %2110 = vmatpush1.bf16.msra.mxu0 0
        %2111 = vmatprep.subr.bf16.mxu0 0
        %2112 = vmatpush1.bf16.msra.mxu0 0
        %2113 = vmatprep.subr.bf16.mxu0 0
        %2114 = vmatpush1.bf16.msra.mxu0 0
        %2115 = vmatprep.subr.bf16.mxu0 0
        %2116 = vmatpush1.bf16.msra.mxu0 0
        %2117 = vmatprep.subr.bf16.mxu0 0
        %2118 = vmatpush1.bf16.msra.mxu0 0
        %2119 = vmatprep.mubr.bf16.mxu0 0
        %2120 = vmatmul.mubr.bf16.gmra.mrb[0].mxu0 %v1940
        %v2121 = vpop.f32.mrb[0].mxu0
        %v2122 = vadd.f32 %v1947, %v2121
        %v2123 = vpop.f32.mrb[0].mxu0
        %v2124 = vadd.f32 %v1951, %v2123
        %v2125 = vpop.f32.mrb[0].mxu0
        %v2126 = vpop.f32.mrb[0].mxu0
        %2127 = vdwg.mxu0
        %2128 = vmatprep.subr.bf16.mxu0 0
        %2129 = vmatpush1.bf16.msra.mxu0 %v2041
        %2130 = vmatprep.subr.bf16.mxu0 0
        %2131 = vmatpush1.bf16.msra.mxu0 %v2044
        %2132 = vmatprep.subr.bf16.mxu0 0
        %2133 = vmatpush1.bf16.msra.mxu0 %v2047
        %2134 = vmatprep.subr.bf16.mxu0 0
        %2135 = vmatpush1.bf16.msra.mxu0 %v2050
        %2136 = vmatprep.subr.bf16.mxu0 0
        %2137 = vmatpush1.bf16.msra.mxu0 %v2053
        %2138 = vmatprep.subr.bf16.mxu0 0
        %2139 = vmatpush1.bf16.msra.mxu0 %v2056
        %2140 = vmatprep.subr.bf16.mxu0 0
        %2141 = vmatpush1.bf16.msra.mxu0 %v2059
        %2142 = vmatprep.subr.bf16.mxu0 0
        %2143 = vmatpush1.bf16.msra.mxu0 %v2062
        %2144 = vmatprep.subr.bf16.mxu0 0
        %2145 = vmatpush1.bf16.msra.mxu0 0
        %2146 = vmatprep.subr.bf16.mxu0 0
        %2147 = vmatpush1.bf16.msra.mxu0 0
        %2148 = vmatprep.subr.bf16.mxu0 0
        %2149 = vmatpush1.bf16.msra.mxu0 0
        %2150 = vmatprep.subr.bf16.mxu0 0
        %2151 = vmatpush1.bf16.msra.mxu0 0
        %2152 = vmatprep.subr.bf16.mxu0 0
        %2153 = vmatpush1.bf16.msra.mxu0 0
        %2154 = vmatprep.subr.bf16.mxu0 0
        %2155 = vmatpush1.bf16.msra.mxu0 0
        %2156 = vmatprep.subr.bf16.mxu0 0
        %2157 = vmatpush1.bf16.msra.mxu0 0
        %2158 = vmatprep.subr.bf16.mxu0 0
        %2159 = vmatpush1.bf16.msra.mxu0 0
        %2160 = vmatprep.mubr.bf16.mxu0 0
        %2161 = vmatmul.mubr.bf16.gmra.mrb[0].mxu0 %v1940
        %v2162 = vpop.f32.mrb[0].mxu0
        %v2163 = vadd.f32 %v1955, %v2162
        %v2164 = vpop.f32.mrb[0].mxu0
        %v2165 = vpop.f32.mrb[0].mxu0
        %v2166 = vpop.f32.mrb[0].mxu0
        %2167 = vdwg.mxu0
        %v2168 = vpack.c.bf16 %v2124, %v2124
        %v2169 = vmul.f32 %v2122, %v792
        %v2170 = vpack.c.bf16 %v2169, %v2169
        %v2171 = vmul.f32 %v2163, %v792
        %v2172 = vpack.c.bf16 %v2171, %v2171
        %2173 = vmatprep.subr.bf16.mxu0 0
        %2174 = vmatpush1.bf16.xpose.msra.mxu0 %v2168
        %2175 = vmatprep.subr.bf16.mxu0 0
        %2176 = vmatpush1.bf16.xpose.msra.mxu0 0
        %2177 = vmatprep.subr.bf16.mxu0 0
        %2178 = vmatpush1.bf16.xpose.msra.mxu0 0
        %2179 = vmatprep.subr.bf16.mxu0 0
        %2180 = vmatpush1.bf16.xpose.msra.mxu0 0
        %2181 = vmatprep.subr.bf16.mxu0 0
        %2182 = vmatpush1.bf16.xpose.msra.mxu0 0
        %2183 = vmatprep.subr.bf16.mxu0 0
        %2184 = vmatpush1.bf16.xpose.msra.mxu0 0
        %2185 = vmatprep.subr.bf16.mxu0 0
        %2186 = vmatpush1.bf16.xpose.msra.mxu0 0
        %2187 = vmatprep.subr.bf16.mxu0 0
        %2188 = vmatpush1.bf16.xpose.msra.mxu0 0
        %2189 = vmatprep.subr.bf16.mxu0 0
        %2190 = vmatpush1.bf16.xpose.msra.mxu0 0
        %2191 = vmatprep.subr.bf16.mxu0 0
        %2192 = vmatpush1.bf16.xpose.msra.mxu0 0
        %2193 = vmatprep.subr.bf16.mxu0 0
        %2194 = vmatpush1.bf16.xpose.msra.mxu0 0
        %2195 = vmatprep.subr.bf16.mxu0 0
        %2196 = vmatpush1.bf16.xpose.msra.mxu0 0
        %2197 = vmatprep.subr.bf16.mxu0 0
        %2198 = vmatpush1.bf16.xpose.msra.mxu0 0
        %2199 = vmatprep.subr.bf16.mxu0 0
        %2200 = vmatpush1.bf16.xpose.msra.mxu0 0
        %2201 = vmatprep.subr.bf16.mxu0 0
        %2202 = vmatpush1.bf16.xpose.msra.mxu0 0
        %2203 = vmatprep.subr.bf16.mxu0 0
        %2204 = vmatpush1.bf16.xpose.msra.mxu0 0
        %2205 = vmatprep.mubr.bf16.mxu0 0
        %2206 = vmatmul.mubr.bf16.gmra.mrb[0].mxu0 %v2170
        %v2207 = vpop.f32.mrb[0].mxu0
        %v2208 = vadd.f32 0.0, %v2207
        %v2209 = vpop.f32.mrb[0].mxu0
        %v2210 = vpop.f32.mrb[0].mxu0
        %v2211 = vpop.f32.mrb[0].mxu0
        %2212 = vdwg.mxu0
        %v2213 = vmul.f32 %v2208, 0.25
        %v2214 = vsel %vm1337, %v2213, -1e+30
        %v2215 = vsel %vm1339, %v2214, -inf
        %2216 = vmax.xlane.f32.xlu0 %v2215
        %v2217 = vpop.xlane.xlu0 %2216
        %v2218 = vsub.f32 %v2214, %v2217
        %v2219 = vmul.f32 %v2218, 1.442695
        %v2220 = vpow.pop %v2219
        %v2221 = vsel %vm1339, %v2220, 0.0
        %2222 = vadd.xlane.f32.xlu0 %v2221
        %v2223 = vpop.xlane.xlu0 %2222
        %v2224 = vrcp.pop %v2223
        %v2225 = vmul.f32 %v2220, %v2224
        %v2226 = vpack.c.bf16 %v2225, %v2225
        %v2227 = vmul.f32 %v2122, %v796
        %v2228 = vpack.c.bf16 %v2227, %v2227
        %v2229 = vmul.f32 %v2163, %v796
        %v2230 = vpack.c.bf16 %v2229, %v2229
        %2231 = vmatprep.subr.bf16.mxu0 0
        %2232 = vmatpush1.bf16.xpose.msra.mxu0 %v2168
        %2233 = vmatprep.subr.bf16.mxu0 0
        %2234 = vmatpush1.bf16.xpose.msra.mxu0 0
        %2235 = vmatprep.subr.bf16.mxu0 0
        %2236 = vmatpush1.bf16.xpose.msra.mxu0 0
        %2237 = vmatprep.subr.bf16.mxu0 0
        %2238 = vmatpush1.bf16.xpose.msra.mxu0 0
        %2239 = vmatprep.subr.bf16.mxu0 0
        %2240 = vmatpush1.bf16.xpose.msra.mxu0 0
        %2241 = vmatprep.subr.bf16.mxu0 0
        %2242 = vmatpush1.bf16.xpose.msra.mxu0 0
        %2243 = vmatprep.subr.bf16.mxu0 0
        %2244 = vmatpush1.bf16.xpose.msra.mxu0 0
        %2245 = vmatprep.subr.bf16.mxu0 0
        %2246 = vmatpush1.bf16.xpose.msra.mxu0 0
        %2247 = vmatprep.subr.bf16.mxu0 0
        %2248 = vmatpush1.bf16.xpose.msra.mxu0 0
        %2249 = vmatprep.subr.bf16.mxu0 0
        %2250 = vmatpush1.bf16.xpose.msra.mxu0 0
        %2251 = vmatprep.subr.bf16.mxu0 0
        %2252 = vmatpush1.bf16.xpose.msra.mxu0 0
        %2253 = vmatprep.subr.bf16.mxu0 0
        %2254 = vmatpush1.bf16.xpose.msra.mxu0 0
        %2255 = vmatprep.subr.bf16.mxu0 0
        %2256 = vmatpush1.bf16.xpose.msra.mxu0 0
        %2257 = vmatprep.subr.bf16.mxu0 0
        %2258 = vmatpush1.bf16.xpose.msra.mxu0 0
        %2259 = vmatprep.subr.bf16.mxu0 0
        %2260 = vmatpush1.bf16.xpose.msra.mxu0 0
        %2261 = vmatprep.subr.bf16.mxu0 0
        %2262 = vmatpush1.bf16.xpose.msra.mxu0 0
        %2263 = vmatprep.mubr.bf16.mxu0 0
        %2264 = vmatmul.mubr.bf16.gmra.mrb[0].mxu0 %v2228
        %v2265 = vpop.f32.mrb[0].mxu0
        %v2266 = vadd.f32 0.0, %v2265
        %v2267 = vpop.f32.mrb[0].mxu0
        %v2268 = vpop.f32.mrb[0].mxu0
        %v2269 = vpop.f32.mrb[0].mxu0
        %2270 = vdwg.mxu0
        %v2271 = vmul.f32 %v2266, 0.25
        %v2272 = vsel %vm1337, %v2271, -1e+30
        %v2273 = vsel %vm1339, %v2272, -inf
        %2274 = vmax.xlane.f32.xlu0 %v2273
        %v2275 = vpop.xlane.xlu0 %2274
        %v2276 = vsub.f32 %v2272, %v2275
        %v2277 = vmul.f32 %v2276, 1.442695
        %v2278 = vpow.pop %v2277
        %v2279 = vsel %vm1339, %v2278, 0.0
        %2280 = vadd.xlane.f32.xlu0 %v2279
        %v2281 = vpop.xlane.xlu0 %2280
        %v2282 = vrcp.pop %v2281
        %v2283 = vmul.f32 %v2278, %v2282
        %v2284 = vpack.c.bf16 %v2283, %v2283
        %v2286 = vsel %vm1339, %v2284, 0
        %v2289 = vsel %vm1413, %v2230, 0
        %2291 = vmatprep.subr.bf16.mxu0 0
        %2292 = vmatpush1.bf16.msra.mxu0 %v2289
        %2293 = vmatprep.subr.bf16.mxu0 0
        %2294 = vmatpush1.bf16.msra.mxu0 0
        %2295 = vmatprep.subr.bf16.mxu0 0
        %2296 = vmatpush1.bf16.msra.mxu0 0
        %2297 = vmatprep.subr.bf16.mxu0 0
        %2298 = vmatpush1.bf16.msra.mxu0 0
        %2299 = vmatprep.subr.bf16.mxu0 0
        %2300 = vmatpush1.bf16.msra.mxu0 0
        %2301 = vmatprep.subr.bf16.mxu0 0
        %2302 = vmatpush1.bf16.msra.mxu0 0
        %2303 = vmatprep.subr.bf16.mxu0 0
        %2304 = vmatpush1.bf16.msra.mxu0 0
        %2305 = vmatprep.subr.bf16.mxu0 0
        %2306 = vmatpush1.bf16.msra.mxu0 0
        %2307 = vmatprep.subr.bf16.mxu0 0
        %2308 = vmatpush1.bf16.msra.mxu0 0
        %2309 = vmatprep.subr.bf16.mxu0 0
        %2310 = vmatpush1.bf16.msra.mxu0 0
        %2311 = vmatprep.subr.bf16.mxu0 0
        %2312 = vmatpush1.bf16.msra.mxu0 0
        %2313 = vmatprep.subr.bf16.mxu0 0
        %2314 = vmatpush1.bf16.msra.mxu0 0
        %2315 = vmatprep.subr.bf16.mxu0 0
        %2316 = vmatpush1.bf16.msra.mxu0 0
        %2317 = vmatprep.subr.bf16.mxu0 0
        %2318 = vmatpush1.bf16.msra.mxu0 0
        %2319 = vmatprep.subr.bf16.mxu0 0
        %2320 = vmatpush1.bf16.msra.mxu0 0
        %2321 = vmatprep.subr.bf16.mxu0 0
        %2322 = vmatpush1.bf16.msra.mxu0 0
        %2323 = vmatprep.mubr.bf16.mxu0 0
        %2324 = vmatmul.mubr.bf16.gmra.mrb[0].mxu0 %v2286
        %v2325 = vpop.f32.mrb[0].mxu0
        %v2326 = vadd.f32 0.0, %v2325
        %v2327 = vpop.f32.mrb[0].mxu0
        %v2328 = vpop.f32.mrb[0].mxu0
        %v2329 = vpop.f32.mrb[0].mxu0
        %2330 = vdwg.mxu0
        %v2332 = vsel %vm1339, %v2226, 0
        %v2335 = vsel %vm1413, %v2172, 0
        %2337 = vmatprep.subr.bf16.mxu0 0
        %2338 = vmatpush1.bf16.msra.mxu0 %v2335
        %2339 = vmatprep.subr.bf16.mxu0 0
        %2340 = vmatpush1.bf16.msra.mxu0 0
        %2341 = vmatprep.subr.bf16.mxu0 0
        %2342 = vmatpush1.bf16.msra.mxu0 0
        %2343 = vmatprep.subr.bf16.mxu0 0
        %2344 = vmatpush1.bf16.msra.mxu0 0
        %2345 = vmatprep.subr.bf16.mxu0 0
        %2346 = vmatpush1.bf16.msra.mxu0 0
        %2347 = vmatprep.subr.bf16.mxu0 0
        %2348 = vmatpush1.bf16.msra.mxu0 0
        %2349 = vmatprep.subr.bf16.mxu0 0
        %2350 = vmatpush1.bf16.msra.mxu0 0
        %2351 = vmatprep.subr.bf16.mxu0 0
        %2352 = vmatpush1.bf16.msra.mxu0 0
        %2353 = vmatprep.subr.bf16.mxu0 0
        %2354 = vmatpush1.bf16.msra.mxu0 0
        %2355 = vmatprep.subr.bf16.mxu0 0
        %2356 = vmatpush1.bf16.msra.mxu0 0
        %2357 = vmatprep.subr.bf16.mxu0 0
        %2358 = vmatpush1.bf16.msra.mxu0 0
        %2359 = vmatprep.subr.bf16.mxu0 0
        %2360 = vmatpush1.bf16.msra.mxu0 0
        %2361 = vmatprep.subr.bf16.mxu0 0
        %2362 = vmatpush1.bf16.msra.mxu0 0
        %2363 = vmatprep.subr.bf16.mxu0 0
        %2364 = vmatpush1.bf16.msra.mxu0 0
        %2365 = vmatprep.subr.bf16.mxu0 0
        %2366 = vmatpush1.bf16.msra.mxu0 0
        %2367 = vmatprep.subr.bf16.mxu0 0
        %2368 = vmatpush1.bf16.msra.mxu0 0
        %2369 = vmatprep.mubr.bf16.mxu0 0
        %2370 = vmatmul.mubr.bf16.gmra.mrb[0].mxu0 %v2332
        %v2371 = vpop.f32.mrb[0].mxu0
        %v2372 = vadd.f32 %v2326, %v2371
        %v2373 = vpop.f32.mrb[0].mxu0
        %v2374 = vpop.f32.mrb[0].mxu0
        %v2375 = vpop.f32.mrb[0].mxu0
        %2376 = vdwg.mxu0
        %s2377 = scalar_lea.vmem %s9, 64
        %v2378 = vld [vmem:[%s2377] sm:$0xf]
        %v2379 = vld [vmem:[%s2377 + $0x4] sm:$0xf]
        %v2380 = vld [vmem:[%s2377 + $0x8] sm:$0xf]
        %v2381 = vld [vmem:[%s2377 + $0xc] sm:$0xf]
        %v2382 = vld [vmem:[%s2377 + $0x10] sm:$0xf]
        %v2383 = vld [vmem:[%s2377 + $0x14] sm:$0xf]
        %v2384 = vld [vmem:[%s2377 + $0x18] sm:$0xf]
        %v2385 = vld [vmem:[%s2377 + $0x1c] sm:$0xf]
        %v2386 = vld [vmem:[%s2377 + $0x20] sm:$0xf]
        %v2387 = vld [vmem:[%s2377 + $0x24] sm:$0xf]
        %v2388 = vld [vmem:[%s2377 + $0x28] sm:$0xf]
        %v2389 = vld [vmem:[%s2377 + $0x2c] sm:$0xf]
        %v2390 = vld [vmem:[%s2377 + $0x30] sm:$0xf]
        %v2391 = vld [vmem:[%s2377 + $0x34] sm:$0xf]
        %v2392 = vld [vmem:[%s2377 + $0x38] sm:$0xf]
        %v2393 = vld [vmem:[%s2377 + $0x3c] sm:$0xf]
        %v2394 = vpack.c.bf16 %v2372, %v2372
        %s2395 = scalar_lea.vmem [#allocation7], 1
        %v2396 = vld [vmem:[%s2395] sm:$0x1]
        %v2398 = vlaneseq
        %v2399 = vshrl.u32 %v2398, 7
        %v2400 = vsub.s32 0, %v2399
        %v2401 = vrot.slane %v2396, %v2400
        %v2419 = vunpack.c.l.b16 %v2378
        %v2420 = vunpack.c.l.b16 %v2379
        %v2421 = vunpack.c.l.b16 %v2380
        %v2422 = vunpack.c.l.b16 %v2381
        %v2423 = vunpack.c.l.b16 %v2382
        %v2424 = vunpack.c.l.b16 %v2383
        %v2425 = vunpack.c.l.b16 %v2384
        %v2426 = vunpack.c.l.b16 %v2385
        %v2427 = vunpack.c.l.b16 %v2386
        %v2428 = vunpack.c.l.b16 %v2387
        %v2429 = vunpack.c.l.b16 %v2388
        %v2430 = vunpack.c.l.b16 %v2389
        %v2431 = vunpack.c.l.b16 %v2390
        %v2432 = vunpack.c.l.b16 %v2391
        %v2433 = vunpack.c.l.b16 %v2392
        %v2434 = vunpack.c.l.b16 %v2393
        %v2435 = vpack.c.b16 %v2420, %v2419
        %v2436 = vpack.c.b16 %v2422, %v2421
        %v2437 = vpack.c.b16 %v2424, %v2423
        %v2438 = vpack.c.b16 %v2426, %v2425
        %v2439 = vpack.c.b16 %v2428, %v2427
        %v2440 = vpack.c.b16 %v2430, %v2429
        %v2441 = vpack.c.b16 %v2432, %v2431
        %v2442 = vpack.c.b16 %v2434, %v2433
        %2451 = vmatprep.subr.bf16.mxu0 0
        %2452 = vmatpush1.bf16.msra.mxu0 %v2435
        %2453 = vmatprep.subr.bf16.mxu0 0
        %2454 = vmatpush1.bf16.msra.mxu0 %v2436
        %2455 = vmatprep.subr.bf16.mxu0 0
        %2456 = vmatpush1.bf16.msra.mxu0 %v2437
        %2457 = vmatprep.subr.bf16.mxu0 0
        %2458 = vmatpush1.bf16.msra.mxu0 %v2438
        %2459 = vmatprep.subr.bf16.mxu0 0
        %2460 = vmatpush1.bf16.msra.mxu0 %v2439
        %2461 = vmatprep.subr.bf16.mxu0 0
        %2462 = vmatpush1.bf16.msra.mxu0 %v2440
        %2463 = vmatprep.subr.bf16.mxu0 0
        %2464 = vmatpush1.bf16.msra.mxu0 %v2441
        %2465 = vmatprep.subr.bf16.mxu0 0
        %2466 = vmatpush1.bf16.msra.mxu0 %v2442
        %2467 = vmatprep.subr.bf16.mxu0 0
        %2468 = vmatpush1.bf16.msra.mxu0 0
        %2469 = vmatprep.subr.bf16.mxu0 0
        %2470 = vmatpush1.bf16.msra.mxu0 0
        %2471 = vmatprep.subr.bf16.mxu0 0
        %2472 = vmatpush1.bf16.msra.mxu0 0
        %2473 = vmatprep.subr.bf16.mxu0 0
        %2474 = vmatpush1.bf16.msra.mxu0 0
        %2475 = vmatprep.subr.bf16.mxu0 0
        %2476 = vmatpush1.bf16.msra.mxu0 0
        %2477 = vmatprep.subr.bf16.mxu0 0
        %2478 = vmatpush1.bf16.msra.mxu0 0
        %2479 = vmatprep.subr.bf16.mxu0 0
        %2480 = vmatpush1.bf16.msra.mxu0 0
        %2481 = vmatprep.subr.bf16.mxu0 0
        %2482 = vmatpush1.bf16.msra.mxu0 0
        %2483 = vmatprep.mubr.bf16.mxu0 0
        %2484 = vmatmul.mubr.bf16.gmra.mrb[0].mxu0 %v2394
        %v2485 = vpop.f32.mrb[0].mxu0
        %v2486 = vadd.f32 %v2401, %v2485
        %v2487 = vpop.f32.mrb[0].mxu0
        %v2488 = vpop.f32.mrb[0].mxu0
        %v2489 = vpop.f32.mrb[0].mxu0
        %2490 = vdwg.mxu0
        %v2491 = vadd.f32 %v1876, %v2486
        %s2492 = scalar_lea.vmem [#allocation9], 1
        %v2493 = vld [vmem:[%s2492] sm:$0x1]
        %s2494 = scalar_lea.vmem [#allocation10], 1
        %v2495 = vld [vmem:[%s2494] sm:$0x1]
        %2496 = vadd.xlane.f32.xlu0 %v2491
        %v2497 = vpop.xlane.xlu0 %2496
        %v2498 = vmul.f32 %v2497, 0.03125
        %v2499 = vsub.f32 %v2491, %v2498
        %v2500 = vmul.f32 %v2499, %v787
        %v2501 = vmul.f32 %v2500, %v2500
        %2502 = vadd.xlane.f32.xlu0 %v2501
        %v2503 = vpop.xlane.xlu0 %2502
        %v2504 = vmul.f32 %v2503, 0.03125
        %v2505 = vadd.f32 %v2504, 1e-05
        %v2506 = vrsqrt.pop %v2505
        %v2507 = vmul.f32 %v2500, %v2506
        %v2509 = vlaneseq
        %v2510 = vshrl.u32 %v2509, 7
        %v2511 = vsub.s32 0, %v2510
        %v2512 = vrot.slane %v2493, %v2511
        %v2514 = vmul.f32 %v2507, %v2512
        %v2516 = vlaneseq
        %v2517 = vshrl.u32 %v2516, 7
        %v2518 = vsub.s32 0, %v2517
        %v2519 = vrot.slane %v2495, %v2518
        %v2521 = vadd.f32 %v2514, %v2519
        %s2522 = scalar_lea.vmem %s13, 64
        %v2523 = vld [vmem:[%s2522] sm:$0xf]
        %v2524 = vld [vmem:[%s2522 + $0x4] sm:$0xf]
        %v2525 = vld [vmem:[%s2522 + $0x8] sm:$0xf]
        %v2526 = vld [vmem:[%s2522 + $0xc] sm:$0xf]
        %v2527 = vld [vmem:[%s2522 + $0x10] sm:$0xf]
        %v2528 = vld [vmem:[%s2522 + $0x14] sm:$0xf]
        %v2529 = vld [vmem:[%s2522 + $0x18] sm:$0xf]
        %v2530 = vld [vmem:[%s2522 + $0x1c] sm:$0xf]
        %v2531 = vld [vmem:[%s2522 + $0x20] sm:$0xf]
        %v2532 = vld [vmem:[%s2522 + $0x24] sm:$0xf]
        %v2533 = vld [vmem:[%s2522 + $0x28] sm:$0xf]
        %v2534 = vld [vmem:[%s2522 + $0x2c] sm:$0xf]
        %v2535 = vld [vmem:[%s2522 + $0x30] sm:$0xf]
        %v2536 = vld [vmem:[%s2522 + $0x34] sm:$0xf]
        %v2537 = vld [vmem:[%s2522 + $0x38] sm:$0xf]
        %v2538 = vld [vmem:[%s2522 + $0x3c] sm:$0xf]
        %v2539 = vpack.c.bf16 %v2521, %v2521
        %s2540 = scalar_lea.vmem [#allocation12], 1
        %v2541 = vld [vmem:[%s2540] sm:$0x1]
        %v2543 = vlaneseq
        %v2544 = vshrl.u32 %v2543, 7
        %v2545 = vsub.s32 0, %v2544
        %v2546 = vrot.slane %v2541, %v2545
        %v2564 = vunpack.c.l.b16 %v2523
        %v2565 = vunpack.c.l.b16 %v2524
        %v2566 = vunpack.c.l.b16 %v2525
        %v2567 = vunpack.c.l.b16 %v2526
        %v2568 = vunpack.c.l.b16 %v2527
        %v2569 = vunpack.c.l.b16 %v2528
        %v2570 = vunpack.c.l.b16 %v2529
        %v2571 = vunpack.c.l.b16 %v2530
        %v2572 = vunpack.c.l.b16 %v2531
        %v2573 = vunpack.c.l.b16 %v2532
        %v2574 = vunpack.c.l.b16 %v2533
        %v2575 = vunpack.c.l.b16 %v2534
        %v2576 = vunpack.c.l.b16 %v2535
        %v2577 = vunpack.c.l.b16 %v2536
        %v2578 = vunpack.c.l.b16 %v2537
        %v2579 = vunpack.c.l.b16 %v2538
        %v2580 = vpack.c.b16 %v2565, %v2564
        %v2581 = vpack.c.b16 %v2567, %v2566
        %v2582 = vpack.c.b16 %v2569, %v2568
        %v2583 = vpack.c.b16 %v2571, %v2570
        %v2584 = vpack.c.b16 %v2573, %v2572
        %v2585 = vpack.c.b16 %v2575, %v2574
        %v2586 = vpack.c.b16 %v2577, %v2576
        %v2587 = vpack.c.b16 %v2579, %v2578
        %2596 = vmatprep.subr.bf16.mxu0 0
        %2597 = vmatpush1.bf16.msra.mxu0 %v2580
        %2598 = vmatprep.subr.bf16.mxu0 0
        %2599 = vmatpush1.bf16.msra.mxu0 %v2581
        %2600 = vmatprep.subr.bf16.mxu0 0
        %2601 = vmatpush1.bf16.msra.mxu0 %v2582
        %2602 = vmatprep.subr.bf16.mxu0 0
        %2603 = vmatpush1.bf16.msra.mxu0 %v2583
        %2604 = vmatprep.subr.bf16.mxu0 0
        %2605 = vmatpush1.bf16.msra.mxu0 %v2584
        %2606 = vmatprep.subr.bf16.mxu0 0
        %2607 = vmatpush1.bf16.msra.mxu0 %v2585
        %2608 = vmatprep.subr.bf16.mxu0 0
        %2609 = vmatpush1.bf16.msra.mxu0 %v2586
        %2610 = vmatprep.subr.bf16.mxu0 0
        %2611 = vmatpush1.bf16.msra.mxu0 %v2587
        %2612 = vmatprep.subr.bf16.mxu0 0
        %2613 = vmatpush1.bf16.msra.mxu0 0
        %2614 = vmatprep.subr.bf16.mxu0 0
        %2615 = vmatpush1.bf16.msra.mxu0 0
        %2616 = vmatprep.subr.bf16.mxu0 0
        %2617 = vmatpush1.bf16.msra.mxu0 0
        %2618 = vmatprep.subr.bf16.mxu0 0
        %2619 = vmatpush1.bf16.msra.mxu0 0
        %2620 = vmatprep.subr.bf16.mxu0 0
        %2621 = vmatpush1.bf16.msra.mxu0 0
        %2622 = vmatprep.subr.bf16.mxu0 0
        %2623 = vmatpush1.bf16.msra.mxu0 0
        %2624 = vmatprep.subr.bf16.mxu0 0
        %2625 = vmatpush1.bf16.msra.mxu0 0
        %2626 = vmatprep.subr.bf16.mxu0 0
        %2627 = vmatpush1.bf16.msra.mxu0 0
        %2628 = vmatprep.mubr.bf16.mxu0 0
        %2629 = vmatmul.mubr.bf16.gmra.mrb[0].mxu0 %v2539
        %v2630 = vpop.f32.mrb[0].mxu0
        %v2631 = vadd.f32 %v2546, %v2630
        %v2632 = vpop.f32.mrb[0].mxu0
        %v2633 = vpop.f32.mrb[0].mxu0
        %v2634 = vpop.f32.mrb[0].mxu0
        %2635 = vdwg.mxu0
        %v2636 = vmul.f32 %v2631, 1.702
        %v2637 = vxor.u32 %v2636, 2147483648
        %v2638 = vmul.f32 %v2637, 1.442695
        %v2639 = vpow.pop %v2638
        %v2640 = vadd.f32 %v2639, 1.0
        %v2641 = vrcp.pop %v2640
        %v2642 = vmul.f32 1.0, %v2641
        %v2643 = vmul.f32 %v2631, %v2642
        %s2644 = scalar_lea.vmem [#allocation13], 64
        %v2645 = vld [vmem:[%s2644] sm:$0xf]
        %v2646 = vld [vmem:[%s2644 + $0x4] sm:$0xf]
        %v2647 = vld [vmem:[%s2644 + $0x8] sm:$0xf]
        %v2648 = vld [vmem:[%s2644 + $0xc] sm:$0xf]
        %v2649 = vld [vmem:[%s2644 + $0x10] sm:$0xf]
        %v2650 = vld [vmem:[%s2644 + $0x14] sm:$0xf]
        %v2651 = vld [vmem:[%s2644 + $0x18] sm:$0xf]
        %v2652 = vld [vmem:[%s2644 + $0x1c] sm:$0xf]
        %v2653 = vld [vmem:[%s2644 + $0x20] sm:$0xf]
        %v2654 = vld [vmem:[%s2644 + $0x24] sm:$0xf]
        %v2655 = vld [vmem:[%s2644 + $0x28] sm:$0xf]
        %v2656 = vld [vmem:[%s2644 + $0x2c] sm:$0xf]
        %v2657 = vld [vmem:[%s2644 + $0x30] sm:$0xf]
        %v2658 = vld [vmem:[%s2644 + $0x34] sm:$0xf]
        %v2659 = vld [vmem:[%s2644 + $0x38] sm:$0xf]
        %v2660 = vld [vmem:[%s2644 + $0x3c] sm:$0xf]
        %v2661 = vpack.c.bf16 %v2643, %v2643
        %s2662 = scalar_lea.vmem [#allocation15], 1
        %v2663 = vld [vmem:[%s2662] sm:$0x1]
        %v2665 = vlaneseq
        %v2666 = vshrl.u32 %v2665, 7
        %v2667 = vsub.s32 0, %v2666
        %v2668 = vrot.slane %v2663, %v2667
        %v2686 = vunpack.c.l.b16 %v2645
        %v2687 = vunpack.c.l.b16 %v2646
        %v2688 = vunpack.c.l.b16 %v2647
        %v2689 = vunpack.c.l.b16 %v2648
        %v2690 = vunpack.c.l.b16 %v2649
        %v2691 = vunpack.c.l.b16 %v2650
        %v2692 = vunpack.c.l.b16 %v2651
        %v2693 = vunpack.c.l.b16 %v2652
        %v2694 = vunpack.c.l.b16 %v2653
        %v2695 = vunpack.c.l.b16 %v2654
        %v2696 = vunpack.c.l.b16 %v2655
        %v2697 = vunpack.c.l.b16 %v2656
        %v2698 = vunpack.c.l.b16 %v2657
        %v2699 = vunpack.c.l.b16 %v2658
        %v2700 = vunpack.c.l.b16 %v2659
        %v2701 = vunpack.c.l.b16 %v2660
        %v2702 = vpack.c.b16 %v2687, %v2686
        %v2703 = vpack.c.b16 %v2689, %v2688
        %v2704 = vpack.c.b16 %v2691, %v2690
        %v2705 = vpack.c.b16 %v2693, %v2692
        %v2706 = vpack.c.b16 %v2695, %v2694
        %v2707 = vpack.c.b16 %v2697, %v2696
        %v2708 = vpack.c.b16 %v2699, %v2698
        %v2709 = vpack.c.b16 %v2701, %v2700
        %2718 = vmatprep.subr.bf16.mxu0 0
        %2719 = vmatpush1.bf16.msra.mxu0 %v2702
        %2720 = vmatprep.subr.bf16.mxu0 0
        %2721 = vmatpush1.bf16.msra.mxu0 %v2703
        %2722 = vmatprep.subr.bf16.mxu0 0
        %2723 = vmatpush1.bf16.msra.mxu0 %v2704
        %2724 = vmatprep.subr.bf16.mxu0 0
        %2725 = vmatpush1.bf16.msra.mxu0 %v2705
        %2726 = vmatprep.subr.bf16.mxu0 0
        %2727 = vmatpush1.bf16.msra.mxu0 %v2706
        %2728 = vmatprep.subr.bf16.mxu0 0
        %2729 = vmatpush1.bf16.msra.mxu0 %v2707
        %2730 = vmatprep.subr.bf16.mxu0 0
        %2731 = vmatpush1.bf16.msra.mxu0 %v2708
        %2732 = vmatprep.subr.bf16.mxu0 0
        %2733 = vmatpush1.bf16.msra.mxu0 %v2709
        %2734 = vmatprep.subr.bf16.mxu0 0
        %2735 = vmatpush1.bf16.msra.mxu0 0
        %2736 = vmatprep.subr.bf16.mxu0 0
        %2737 = vmatpush1.bf16.msra.mxu0 0
        %2738 = vmatprep.subr.bf16.mxu0 0
        %2739 = vmatpush1.bf16.msra.mxu0 0
        %2740 = vmatprep.subr.bf16.mxu0 0
        %2741 = vmatpush1.bf16.msra.mxu0 0
        %2742 = vmatprep.subr.bf16.mxu0 0
        %2743 = vmatpush1.bf16.msra.mxu0 0
        %2744 = vmatprep.subr.bf16.mxu0 0
        %2745 = vmatpush1.bf16.msra.mxu0 0
        %2746 = vmatprep.subr.bf16.mxu0 0
        %2747 = vmatpush1.bf16.msra.mxu0 0
        %2748 = vmatprep.subr.bf16.mxu0 0
        %2749 = vmatpush1.bf16.msra.mxu0 0
        %2750 = vmatprep.mubr.bf16.mxu0 0
        %2751 = vmatmul.mubr.bf16.gmra.mrb[0].mxu0 %v2661
        %v2752 = vpop.f32.mrb[0].mxu0
        %v2753 = vadd.f32 %v2668, %v2752
        %v2754 = vpop.f32.mrb[0].mxu0
        %v2755 = vpop.f32.mrb[0].mxu0
        %v2756 = vpop.f32.mrb[0].mxu0
        %2757 = vdwg.mxu0
        %v2758 = vadd.f32 %v2491, %v2753
        %v2759 = vld [vmem:[#allocation16] sm:$0x1]
        %v2760 = vld [vmem:[#allocation18] sm:$0x1]
        %2761 = vadd.xlane.f32.xlu0 %v2758
        %v2762 = vpop.xlane.xlu0 %2761
        %v2763 = vmul.f32 %v2762, 0.03125
        %v2764 = vsub.f32 %v2758, %v2763
        %v2765 = vmul.f32 %v2764, %v787
        %v2766 = vmul.f32 %v2765, %v2765
        %2767 = vadd.xlane.f32.xlu0 %v2766
        %v2768 = vpop.xlane.xlu0 %2767
        %v2769 = vmul.f32 %v2768, 0.03125
        %v2770 = vadd.f32 %v2769, 1e-05
        %v2771 = vrsqrt.pop %v2770
        %v2772 = vmul.f32 %v2765, %v2771
        %v2774 = vlaneseq
        %v2775 = vshrl.u32 %v2774, 7
        %v2776 = vsub.s32 0, %v2775
        %v2777 = vrot.slane %v2759, %v2776
        %v2779 = vmul.f32 %v2772, %v2777
        %v2781 = vlaneseq
        %v2782 = vshrl.u32 %v2781, 7
        %v2783 = vsub.s32 0, %v2782
        %v2784 = vrot.slane %v2760, %v2783
        %v2786 = vadd.f32 %v2779, %v2784
        %v2787 = vld [vmem:[%s19] sm:$0xf]
        %v2788 = vld [vmem:[%s19 + $0x4] sm:$0xf]
        %v2789 = vld [vmem:[%s19 + $0x8] sm:$0xf]
        %v2790 = vld [vmem:[%s19 + $0xc] sm:$0xf]
        %v2791 = vld [vmem:[%s19 + $0x10] sm:$0xf]
        %v2792 = vld [vmem:[%s19 + $0x14] sm:$0xf]
        %v2793 = vld [vmem:[%s19 + $0x18] sm:$0xf]
        %v2794 = vld [vmem:[%s19 + $0x1c] sm:$0xf]
        %v2795 = vld [vmem:[%s19 + $0x20] sm:$0xf]
        %v2796 = vld [vmem:[%s19 + $0x24] sm:$0xf]
        %v2797 = vld [vmem:[%s19 + $0x28] sm:$0xf]
        %v2798 = vld [vmem:[%s19 + $0x2c] sm:$0xf]
        %v2799 = vld [vmem:[%s19 + $0x30] sm:$0xf]
        %v2800 = vld [vmem:[%s19 + $0x34] sm:$0xf]
        %v2801 = vld [vmem:[%s19 + $0x38] sm:$0xf]
        %v2802 = vld [vmem:[%s19 + $0x3c] sm:$0xf]
        %v2803 = vpack.c.bf16 %v2786, %v2786
        %v2820 = vunpack.c.l.b16 %v2787
        %v2821 = vunpack.c.l.b16 %v2788
        %v2822 = vunpack.c.l.b16 %v2789
        %v2823 = vunpack.c.l.b16 %v2790
        %v2824 = vunpack.c.l.b16 %v2791
        %v2825 = vunpack.c.l.b16 %v2792
        %v2826 = vunpack.c.l.b16 %v2793
        %v2827 = vunpack.c.l.b16 %v2794
        %v2828 = vunpack.c.l.b16 %v2795
        %v2829 = vunpack.c.l.b16 %v2796
        %v2830 = vunpack.c.l.b16 %v2797
        %v2831 = vunpack.c.l.b16 %v2798
        %v2832 = vunpack.c.l.b16 %v2799
        %v2833 = vunpack.c.l.b16 %v2800
        %v2834 = vunpack.c.l.b16 %v2801
        %v2835 = vunpack.c.l.b16 %v2802
        %v2836 = vpack.c.b16 %v2821, %v2820
        %v2837 = vpack.c.b16 %v2823, %v2822
        %v2838 = vpack.c.b16 %v2825, %v2824
        %v2839 = vpack.c.b16 %v2827, %v2826
        %v2840 = vpack.c.b16 %v2829, %v2828
        %v2841 = vpack.c.b16 %v2831, %v2830
        %v2842 = vpack.c.b16 %v2833, %v2832
        %v2843 = vpack.c.b16 %v2835, %v2834
        %2852 = vmatprep.subr.bf16.mxu0 0
        %2853 = vmatpush1.bf16.msra.mxu0 %v2836
        %2854 = vmatprep.subr.bf16.mxu0 0
        %2855 = vmatpush1.bf16.msra.mxu0 %v2837
        %2856 = vmatprep.subr.bf16.mxu0 0
        %2857 = vmatpush1.bf16.msra.mxu0 %v2838
        %2858 = vmatprep.subr.bf16.mxu0 0
        %2859 = vmatpush1.bf16.msra.mxu0 %v2839
        %2860 = vmatprep.subr.bf16.mxu0 0
        %2861 = vmatpush1.bf16.msra.mxu0 %v2840
        %2862 = vmatprep.subr.bf16.mxu0 0
        %2863 = vmatpush1.bf16.msra.mxu0 %v2841
        %2864 = vmatprep.subr.bf16.mxu0 0
        %2865 = vmatpush1.bf16.msra.mxu0 %v2842
        %2866 = vmatprep.subr.bf16.mxu0 0
        %2867 = vmatpush1.bf16.msra.mxu0 %v2843
        %2868 = vmatprep.subr.bf16.mxu0 0
        %2869 = vmatpush1.bf16.msra.mxu0 0
        %2870 = vmatprep.subr.bf16.mxu0 0
        %2871 = vmatpush1.bf16.msra.mxu0 0
        %2872 = vmatprep.subr.bf16.mxu0 0
        %2873 = vmatpush1.bf16.msra.mxu0 0
        %2874 = vmatprep.subr.bf16.mxu0 0
        %2875 = vmatpush1.bf16.msra.mxu0 0
        %2876 = vmatprep.subr.bf16.mxu0 0
        %2877 = vmatpush1.bf16.msra.mxu0 0
        %2878 = vmatprep.subr.bf16.mxu0 0
        %2879 = vmatpush1.bf16.msra.mxu0 0
        %2880 = vmatprep.subr.bf16.mxu0 0
        %2881 = vmatpush1.bf16.msra.mxu0 0
        %2882 = vmatprep.subr.bf16.mxu0 0
        %2883 = vmatpush1.bf16.msra.mxu0 0
        %2884 = vmatprep.mubr.bf16.mxu0 0
        %2885 = vmatmul.mubr.bf16.gmra.mrb[0].mxu0 %v2803
        %v2886 = vpop.f32.mrb[0].mxu0
        %v2887 = vadd.f32 0.0, %v2886
        %v2888 = vpop.f32.mrb[0].mxu0
        %v2889 = vpop.f32.mrb[0].mxu0
        %v2890 = vpop.f32.mrb[0].mxu0
        %2891 = vdwg.mxu0
        %2892 = vst [vmem:[%s781] sm:$0xff] %v2887
        %p2893 = scmp.lt.s32.totalorder %s37, 1
        %s2894 = scalar_select %p2893, %s37, 1
        %s2895 = smul.addr %s2894, 8
        %s2896 = scalar_lea.vmem %s20, %s2895
        // Predicated region
        $region145: #{_encode_impl.1} parent=99 // pred_check
          %p2897 = pneg %p480
        $region146: #{_encode_impl.1} parent=99 // pred_check_branch
          %2899 = sbr.rel (%p2897) target = $region148
        $region147: #{_encode_impl.1} parent=99 // pred_region
          _
        $region148: #{_encode_impl.1} parent=99 // pred_fallthru
          _
      $region100: #{_encode_impl.1} parent=5 // pred_fallthru
        _
      %p2900 = scmp.le.s32.totalorder 2, %s32
      // Predicated region
      $region149: #{_encode_impl.1} parent=5 // pred_check
        %p2901 = pneg %p2900
      $region150: #{_encode_impl.1} parent=5 // pred_check_branch
        %2903 = sbr.rel (%p2901) target = $region152
      $region151: #{_encode_impl.1} parent=5 // pred_region
        %s2904 = ssub.s32 %s32, 2
        // Predicated region
        $region153: #{_encode_impl.1} parent=151 // pred_check
          %p2905 = pneg %p486
        $region154: #{_encode_impl.1} parent=151 // pred_check_branch
          %2907 = sbr.rel (%p2905) target = $region156
        $region155: #{_encode_impl.1} parent=151 // pred_region
          %p2908 = scmp.lt.s32.totalorder %s38, 1
          %s2909 = scalar_select %p2908, %s38, 1
          %s2910 = smul.addr %s2909, 8
          %s2911 = scalar_lea.vmem %s20, %s2910
        $region156: #{_encode_impl.1} parent=151 // pred_fallthru
          _
      $region152: #{_encode_impl.1} parent=5 // pred_fallthru
        _
    $region6: #{_encode_impl.1} parent=1 // loop_footer
      %s36 = sadd.s32 1, %s32
    $region7: #{_encode_impl.1} parent=1 // loop_footer_branch
      %31 = sbr.rel target = $region3
    $region8: #{_encode_impl.1} parent=1 // loop_exit
      _
    %2912 = vsyncpa [#allocation3], 1
    %s2913 = scalar_lea.sflag [#allocation3], 1
    %2914 = vsyncpa %s2913, 1
    %2915 = vsyncpa [#allocation5], 1
    %2916 = vsyncpa [#allocation8], 1
    %2917 = vsyncpa [#allocation11], 1
    %2918 = vsyncpa [#allocation14], 1
    %2919 = vsyncpa [#allocation17], 1

</llo_original>
